<compile_context>
chip_gen: v7x
topology: tpu7x:2x2x1
jax: 0.10.0
libtpu: 0.0.40
codegen_flags: <defaults>
</compile_context>

<pallas_src>
import functools

import jax
import jax.numpy as jnp
from jax.experimental import pallas as pl
from jax.experimental.pallas import tpu as pltpu

_OUT_PAD = 128  # lane-dense output width; true output is the first 2 columns


# --------------------------------------------------------------------------- #
# Kernels
# --------------------------------------------------------------------------- #
def _gd_kernel_folded(x_ref, w1_ref, b1_ref, w2_ref, b2_ref, w3_ref, b3_ref,
                      out_ref):
    # x_ref: (TN, 2C*HW), lane-dense.  The average pool is folded into w1
    # (w1[ch*HW+s, :] == W1[ch, :]/HW), so pool+FC1 is one MXU matmul with
    # f32 accumulation.
    h = jnp.dot(x_ref[...], w1_ref[...],
                preferred_element_type=jnp.float32) + b1_ref[...]
    h = jnp.maximum(h, 0.0)
    h = jnp.dot(h, w2_ref[...], preferred_element_type=jnp.float32) + b2_ref[...]
    h = jnp.maximum(h, 0.0)
    s = jnp.dot(h, w3_ref[...], preferred_element_type=jnp.float32) + b3_ref[...]
    out_ref[...] = s.astype(out_ref.dtype)          # (TN, 128) unmasked vst


def _gd_kernel_pooled(x_ref, w1_ref, b1_ref, w2_ref, b2_ref, w3_ref, b3_ref,
                      out_ref, *, inv_hw):
    # x_ref: (TN, 2C, HW).  Global average pool = lane-axis reduction with f32
    # accumulation inside the reduce (no full-tile f32 temp).
    pooled = jnp.sum(x_ref[...], axis=-1, dtype=jnp.float32) * inv_hw  # (TN, 2C)
    h = jnp.dot(pooled, w1_ref[...],
                preferred_element_type=jnp.float32) + b1_ref[...]
    h = jnp.maximum(h, 0.0)
    h = jnp.dot(h, w2_ref[...], preferred_element_type=jnp.float32) + b2_ref[...]
    h = jnp.maximum(h, 0.0)
    s = jnp.dot(h, w3_ref[...], preferred_element_type=jnp.float32) + b3_ref[...]
    out_ref[...] = s.astype(out_ref.dtype)


# --------------------------------------------------------------------------- #
# Helpers
# --------------------------------------------------------------------------- #
def _round_up(x, m):
    return (x + m - 1) // m * m


def _padded_block_bytes(shape, dtype):
    """VMEM footprint of one buffered block (last two dims tiled to (8, 128))."""
    itemsize = jnp.dtype(dtype).itemsize
    if len(shape) == 1:
        return _round_up(int(shape[0]), 128) * itemsize
    lead = 1
    for d in shape[:-2]:
        lead *= int(d)
    return (lead * _round_up(int(shape[-2]), 8)
            * _round_up(int(shape[-1]), 128) * itemsize)


def _device_kind():
    try:
        return jax.devices()[0].device_kind.lower()
    except Exception:  # pragma: no cover - defensive only
        return ""


def _default_vmem_cap():
    kind = _device_kind()
    if "v7" in kind:
        return 48 * 1024 * 1024   # 64 MiB physical VMEM -> leave headroom
    if "v6" in kind:
        return 96 * 1024 * 1024   # 128 MiB physical
    if "v5" in kind:
        return 64 * 1024 * 1024   # 128 MiB physical (v5e / v5p)
    return 32 * 1024 * 1024       # conservative default elsewhere


def _default_fold_pool():
    # Folding the pool into FC1 raises arithmetic intensity to ~256 FLOP/byte:
    # still HBM-bound on v6e (~640 crossover) / v7x (~310), but past v5-class
    # crossover (~240) -> keep the lane-reduce pool there.
    return "v5" not in _device_kind()


# --------------------------------------------------------------------------- #
# Parameters
# --------------------------------------------------------------------------- #
def init_params(key, in_channel, std=0.01):
    """Matches GlobalDetector._init_weights: Linear weights ~ N(0, std), biases 0.
    Weights are stored transposed (in, out) so the kernel computes x @ W."""
    c = in_channel
    k1, k2, k3 = jax.random.split(key, 3)
    w1 = std * jax.random.normal(k1, (2 * c, c), jnp.float32)   # Linear(2c, c)
    b1 = jnp.zeros((1, c), jnp.float32)
    w2 = std * jax.random.normal(k2, (c, c), jnp.float32)       # Linear(c, c)
    b2 = jnp.zeros((1, c), jnp.float32)
    w3 = std * jax.random.normal(k3, (c, 2), jnp.float32)       # Linear(c, 2)
    b3 = jnp.zeros((1, 2), jnp.float32)
    return (w1, b1, w2, b2, w3, b3)


def prepare_params(params, feat_size, *, fold_pool=None, w1_dtype=jnp.bfloat16):
    """One-time parameter prep (hoisted out of the per-call wrapper):
       * zero-pad the final fc to 128 output lanes (lane-dense store),
       * optionally expand FC1 to W1' = repeat(W1/HW, HW) so the average pool
         folds into the first matmul (lane-dense streamed input)."""
    if fold_pool is None:
        fold_pool = _default_fold_pool()
    w1, b1, w2, b2, w3, b3 = params
    c2, c = w1.shape
    hw = feat_size * feat_size
    n_out = w3.shape[1]
    w3p = jnp.zeros((c, _OUT_PAD), jnp.float32).at[:, :n_out].set(w3)
    b3p = jnp.zeros((1, _OUT_PAD), jnp.float32).at[:, :n_out].set(b3)
    if fold_pool:
        # W1'[ch*HW + s, :] = W1[ch, :] / HW  (row-major match for the
        # metadata-only reshape (N, 2C, HW) -> (N, 2C*HW)).
        w1p = jnp.repeat(w1 * (1.0 / hw), hw, axis=0).astype(w1_dtype)
    else:
        w1p = w1
    weights = tuple(jax.device_put(w) for w in (w1p, b1, w2, b2, w3p, b3p))
    return dict(fold_pool=bool(fold_pool), feat_size=int(feat_size),
                n_out=int(n_out), weights=weights)


# --------------------------------------------------------------------------- #
# Forward wrapper
# --------------------------------------------------------------------------- #
def global_detector_forward(cat_rois, prepared, *, batch_tile=1024,
                            vmem_cap_bytes=None):
    """cat_rois: (N, 2C, H, W) NCHW (f32 or bf16), like the PyTorch module."""
    n, c2, hh, ww = cat_rois.shape
    hw = hh * ww
    assert prepared["feat_size"] * prepared["feat_size"] == hw
    fold = prepared["fold_pool"]
    w1p, b1, w2, b2, w3p, b3p = prepared["weights"]
    c = w2.shape[0]

    if vmem_cap_bytes is None:
        vmem_cap_bytes = _default_vmem_cap()
    in_itemsize = jnp.dtype(cat_rois.dtype).itemsize

    # VMEM accounting with *padded* footprints.  Constant-index weight blocks
    # are conservatively charged as double-buffered too.
    weights = (w1p, b1, w2, b2, w3p, b3p)
    weight_bytes = 2 * sum(_padded_block_bytes(w.shape, w.dtype) for w in weights)

    if fold:
        k_in = c2 * hw
        x = cat_rois.reshape(n, k_in)                 # metadata-only reshape
        per_elem_in = _round_up(k_in, 128) * in_itemsize
        kernel = _gd_kernel_folded
        flops_per_row = 2 * k_in * c + 2 * c * c + 2 * c * _OUT_PAD
    else:
        x = cat_rois.reshape(n, c2, hw)               # metadata-only reshape
        per_elem_in = _round_up(c2, 8) * _round_up(hw, 128) * in_itemsize
        kernel = functools.partial(_gd_kernel_pooled, inv_hw=1.0 / hw)
        flops_per_row = c2 * hw + 2 * c2 * c + 2 * c * c + 2 * c * _OUT_PAD
    per_elem_out = _OUT_PAD * 4

    headroom = 2 * 1024 * 1024
    avail = max(int(vmem_cap_bytes) - weight_bytes - headroom, 512 * 1024)
    tn_max = max(8, avail // (2 * (per_elem_in + per_elem_out)))
    # >=2 grid steps so "parallel" can shard across both v7x TensorCores.
    tn_two = max(8, _round_up(-(-n // 2), 8))
    tn = min(int(batch_tile), n, int(tn_max), tn_two)
    if tn < n:
        tn = max(8, (tn // 8) * 8)     # keep output sublane dim 8-aligned
    grid = (pl.cdiv(n, tn),)

    const2 = lambda i: (0, 0)
    if fold:
        x_spec = pl.BlockSpec((tn, k_in), lambda i: (i, 0))
    else:
        x_spec = pl.BlockSpec((tn, c2, hw), lambda i: (i, 0, 0))
    in_specs = [
        x_spec,                                        # streamed input tile
        pl.BlockSpec(tuple(w1p.shape), const2),        # weights: constant block
        pl.BlockSpec(tuple(b1.shape), const2),         # index -> VMEM-resident
        pl.BlockSpec(tuple(w2.shape), const2),
        pl.BlockSpec(tuple(b2.shape), const2),
        pl.BlockSpec(tuple(w3p.shape), const2),
        pl.BlockSpec(tuple(b3p.shape), const2),
    ]

    bytes_accessed = (n * c2 * hw * in_itemsize + n * _OUT_PAD * 4
                      + sum(int(w.size) * jnp.dtype(w.dtype).itemsize
                            for w in weights))
    cost = pl.CostEstimate(flops=int(n * flops_per_row), transcendentals=0,
                           bytes_accessed=int(bytes_accessed))

    out = pl.pallas_call(
        kernel,
        out_shape=jax.ShapeDtypeStruct((n, _OUT_PAD), jnp.float32),
        grid_spec=pltpu.PrefetchScalarGridSpec(
            num_scalar_prefetch=0,
            grid=grid,
            in_specs=in_specs,
            out_specs=pl.BlockSpec((tn, _OUT_PAD), lambda i: (i, 0)),
        ),
        compiler_params=pltpu.CompilerParams(
            dimension_semantics=("parallel",),
            vmem_limit_bytes=int(vmem_cap_bytes),
        ),
        cost_estimate=cost,
    )(x, w1p, b1, w2, b2, w3p, b3p)
    return out[:, :prepared["n_out"]]


# --------------------------------------------------------------------------- #
# Reference (plain JAX) and self-test
# --------------------------------------------------------------------------- #
def reference_forward(cat_rois, params):
    """Plain-JAX reference of the PyTorch forward (for correctness check)."""
    w1, b1, w2, b2, w3, b3 = params
    pooled = jnp.mean(cat_rois.astype(jnp.float32), axis=(2, 3))  # AvgPool+squeeze
    h = jnp.maximum(jnp.dot(pooled, w1, precision="highest") + b1, 0.0)
    h = jnp.maximum(jnp.dot(h, w2, precision="highest") + b2, 0.0)
    return jnp.dot(h, w3, precision="highest") + b3


if __name__ == "__main__":
    feat_size = 8      # wh  (the real model uses 8)
    in_channel = 32    # c   (the real model uses 256; kept small here)
    batch = 96         # -> 2 batch tiles of 48, exercises the pipelined grid

    key = jax.random.PRNGKey(0)
    k_x, k_p = jax.random.split(key)

    # cat_rois has 2*c channels (concatenated target/box features), NCHW.
    cat_rois = jax.random.normal(
        k_x, (batch, 2 * in_channel, feat_size, feat_size), jnp.float32)
    # std=0.2 (instead of the module's 0.01) only so the numeric check operates
    # on non-vanishing scores; init_params' default matches _init_weights.
    params = init_params(k_p, in_channel, std=0.2)
    ref = reference_forward(cat_rois, params)

    # 1) Auto-selected path for this TPU generation (folded pool on v6e/v7x,
    #    lane-reduce pool on v5-class), f32 input.
    prep_auto = prepare_params(params, feat_size)
    score = jax.block_until_ready(global_detector_forward(cat_rois, prep_auto))
    assert score.shape == (batch, 2)
    assert jnp.allclose(score, ref, rtol=2e-2, atol=5e-3), (
        float(jnp.max(jnp.abs(score - ref))))

    # 2) Lane-reduce pooling path (v5-class / fallback) with bf16 streamed input.
    cat_bf16 = cat_rois.astype(jnp.bfloat16)
    ref_bf16 = reference_forward(cat_bf16.astype(jnp.float32), params)
    prep_pool = prepare_params(params, feat_size, fold_pool=False)
    score_pool = jax.block_until_ready(
        global_detector_forward(cat_bf16, prep_pool))
    assert jnp.allclose(score_pool, ref_bf16, rtol=2e-2, atol=5e-3), (
        float(jnp.max(jnp.abs(score_pool - ref_bf16))))

    # 3) Folded-pool path (v6e/v7x production config: bf16 input + bf16 W1').
    prep_fold = prepare_params(params, feat_size, fold_pool=True)
    score_fold = jax.block_until_ready(
        global_detector_forward(cat_bf16, prep_fold))
    assert jnp.allclose(score_fold, ref_bf16, rtol=2e-2, atol=5e-3), (
        float(jnp.max(jnp.abs(score_fold - ref_bf16))))

    print("KERNEL_OK")
</pallas_src>

<mosaic_0001>
module attributes {stable_mosaic.version = 11 : i64} {
  func.func @_gd_kernel_folded(%arg0: i32, %arg1: memref<48x4096xf32, #tpu.memory_space<vmem>>, %arg2: memref<4096x32xbf16, #tpu.memory_space<vmem>>, %arg3: memref<1x32xf32, #tpu.memory_space<vmem>>, %arg4: memref<32x32xf32, #tpu.memory_space<vmem>>, %arg5: memref<1x32xf32, #tpu.memory_space<vmem>>, %arg6: memref<32x128xf32, #tpu.memory_space<vmem>>, %arg7: memref<1x128xf32, #tpu.memory_space<vmem>>, %arg8: memref<48x128xf32, #tpu.memory_space<vmem>>) attributes {dimension_semantics = [#tpu.dimension_semantics<parallel>], iteration_bounds = array<i64: 2>, scalar_prefetch = 0 : i64, scratch_operands = 0 : i64, tpu.core_type = #tpu.core_type<tc>, window_params = [{transform_indices = @transform_0, window_bounds = array<i64: 48, 4096>}, {pipeline_mode = #tpu.pipeline_mode<synchronous>, transform_indices = @transform_1, window_bounds = array<i64: 4096, 32>}, {pipeline_mode = #tpu.pipeline_mode<synchronous>, transform_indices = @transform_2, window_bounds = array<i64: 1, 32>}, {pipeline_mode = #tpu.pipeline_mode<synchronous>, transform_indices = @transform_3, window_bounds = array<i64: 32, 32>}, {pipeline_mode = #tpu.pipeline_mode<synchronous>, transform_indices = @transform_4, window_bounds = array<i64: 1, 32>}, {pipeline_mode = #tpu.pipeline_mode<synchronous>, transform_indices = @transform_5, window_bounds = array<i64: 32, 128>}, {pipeline_mode = #tpu.pipeline_mode<synchronous>, transform_indices = @transform_6, window_bounds = array<i64: 1, 128>}, {transform_indices = @transform_7, window_bounds = array<i64: 48, 128>}]} {
    %c0 = arith.constant 0 : index
    %c0_0 = arith.constant 0 : index
    %0 = vector.load %arg1[%c0, %c0_0] : memref<48x4096xf32, #tpu.memory_space<vmem>>, vector<48x4096xf32>
    %c0_1 = arith.constant 0 : index
    %c0_2 = arith.constant 0 : index
    %1 = vector.load %arg2[%c0_1, %c0_2] : memref<4096x32xbf16, #tpu.memory_space<vmem>>, vector<4096x32xbf16>
    %cst = arith.constant dense<0.000000e+00> : vector<48x32xf32>
    %2 = tpu.matmul %0, %1, %cst {dimension_numbers = #tpu.dot_dimension_numbers<[1], [0], [0], [1], [0, 0, 1, 1], [], []>} : vector<48x4096xf32>, vector<4096x32xbf16>, vector<48x32xf32> -> vector<48x32xf32>
    %c0_3 = arith.constant 0 : index
    %c0_4 = arith.constant 0 : index
    %3 = vector.load %arg3[%c0_3, %c0_4] : memref<1x32xf32, #tpu.memory_space<vmem>>, vector<1x32xf32>
    %4 = vector.broadcast %3 : vector<1x32xf32> to vector<48x32xf32>
    %5 = arith.addf %2, %4 : vector<48x32xf32>
    %cst_5 = arith.constant 0.000000e+00 : f32
    %6 = vector.broadcast %cst_5 : f32 to vector<48x32xf32>
    %7 = arith.maximumf %5, %6 : vector<48x32xf32>
    %c0_6 = arith.constant 0 : index
    %c0_7 = arith.constant 0 : index
    %8 = vector.load %arg4[%c0_6, %c0_7] : memref<32x32xf32, #tpu.memory_space<vmem>>, vector<32x32xf32>
    %cst_8 = arith.constant dense<0.000000e+00> : vector<48x32xf32>
    %9 = tpu.matmul %7, %8, %cst_8 {dimension_numbers = #tpu.dot_dimension_numbers<[1], [0], [0], [1], [0, 0, 1, 1], [], []>} : vector<48x32xf32>, vector<32x32xf32>, vector<48x32xf32> -> vector<48x32xf32>
    %c0_9 = arith.constant 0 : index
    %c0_10 = arith.constant 0 : index
    %10 = vector.load %arg5[%c0_9, %c0_10] : memref<1x32xf32, #tpu.memory_space<vmem>>, vector<1x32xf32>
    %11 = vector.broadcast %10 : vector<1x32xf32> to vector<48x32xf32>
    %12 = arith.addf %9, %11 : vector<48x32xf32>
    %cst_11 = arith.constant 0.000000e+00 : f32
    %13 = vector.broadcast %cst_11 : f32 to vector<48x32xf32>
    %14 = arith.maximumf %12, %13 : vector<48x32xf32>
    %c0_12 = arith.constant 0 : index
    %c0_13 = arith.constant 0 : index
    %15 = vector.load %arg6[%c0_12, %c0_13] : memref<32x128xf32, #tpu.memory_space<vmem>>, vector<32x128xf32>
    %cst_14 = arith.constant dense<0.000000e+00> : vector<48x128xf32>
    %16 = tpu.matmul %14, %15, %cst_14 {dimension_numbers = #tpu.dot_dimension_numbers<[1], [0], [0], [1], [0, 0, 1, 1], [], []>} : vector<48x32xf32>, vector<32x128xf32>, vector<48x128xf32> -> vector<48x128xf32>
    %c0_15 = arith.constant 0 : index
    %c0_16 = arith.constant 0 : index
    %17 = vector.load %arg7[%c0_15, %c0_16] : memref<1x128xf32, #tpu.memory_space<vmem>>, vector<1x128xf32>
    %18 = vector.broadcast %17 : vector<1x128xf32> to vector<48x128xf32>
    %19 = arith.addf %16, %18 : vector<48x128xf32>
    %c0_17 = arith.constant 0 : index
    %c0_18 = arith.constant 0 : index
    %20 = vector.load %arg8[%c0_17, %c0_18] : memref<48x128xf32, #tpu.memory_space<vmem>>, vector<48x128xf32>
    tpu.vector_store %arg8[%c0_17, %c0_18], %19 {strides = array<i32>} : memref<48x128xf32, #tpu.memory_space<vmem>>, vector<48x128xf32>,
    return
  }
  func.func @transform_0(%arg0: i32) -> (i32, i32) {
    %c0_i32 = arith.constant 0 : i32
    %c0_i32_0 = arith.constant 0 : i32
    return %arg0, %c0_i32 : i32, i32
  }
  func.func @transform_1(%arg0: i32) -> (i32, i32) {
    %c0_i32 = arith.constant 0 : i32
    %c0_i32_0 = arith.constant 0 : i32
    %c0_i32_1 = arith.constant 0 : i32
    return %c0_i32, %c0_i32_0 : i32, i32
  }
  func.func @transform_2(%arg0: i32) -> (i32, i32) {
    %c0_i32 = arith.constant 0 : i32
    %c0_i32_0 = arith.constant 0 : i32
    %c0_i32_1 = arith.constant 0 : i32
    return %c0_i32, %c0_i32_0 : i32, i32
  }
  func.func @transform_3(%arg0: i32) -> (i32, i32) {
    %c0_i32 = arith.constant 0 : i32
    %c0_i32_0 = arith.constant 0 : i32
    %c0_i32_1 = arith.constant 0 : i32
    return %c0_i32, %c0_i32_0 : i32, i32
  }
  func.func @transform_4(%arg0: i32) -> (i32, i32) {
    %c0_i32 = arith.constant 0 : i32
    %c0_i32_0 = arith.constant 0 : i32
    %c0_i32_1 = arith.constant 0 : i32
    return %c0_i32, %c0_i32_0 : i32, i32
  }
  func.func @transform_5(%arg0: i32) -> (i32, i32) {
    %c0_i32 = arith.constant 0 : i32
    %c0_i32_0 = arith.constant 0 : i32
    %c0_i32_1 = arith.constant 0 : i32
    return %c0_i32, %c0_i32_0 : i32, i32
  }
  func.func @transform_6(%arg0: i32) -> (i32, i32) {
    %c0_i32 = arith.constant 0 : i32
    %c0_i32_0 = arith.constant 0 : i32
    %c0_i32_1 = arith.constant 0 : i32
    return %c0_i32, %c0_i32_0 : i32, i32
  }
  func.func @transform_7(%arg0: i32) -> (i32, i32) {
    %c0_i32 = arith.constant 0 : i32
    %c0_i32_0 = arith.constant 0 : i32
    return %arg0, %c0_i32 : i32, i32
  }
}

</mosaic_0001>

<llo_original>
// kernel: tpu_custom_call.1
$region0: #{tpu_custom_call.1}
  #allocation0 [shape = 'u32[]', space=smem, size = 0x4, offset = 0x4, fixed_abs, tag = 'smem constant byte address 0x4 - core index']
  #allocation1 [shape = 'u32[144,128]{1,0:T(1,128)}', space=vmem, size = 0x12000, scoped, tag = 'internal scratch']
  %s0 = inlined_call_operand.hbm [shape: f32[96,4096], index: 0, kind: input, shape index: {}]
  %s1 = inlined_call_operand.vmem [shape: bf16[4096,32], index: 1, kind: input, shape index: {}]
  %s2 = inlined_call_operand.hbm [shape: f32[1,32], index: 2, kind: input, shape index: {}]
  %s3 = inlined_call_operand.hbm [shape: f32[32,32], index: 3, kind: input, shape index: {}]
  %s4 = inlined_call_operand.hbm [shape: f32[1,32], index: 4, kind: input, shape index: {}]
  %s5 = inlined_call_operand.hbm [shape: f32[32,128], index: 5, kind: input, shape index: {}]
  %s6 = inlined_call_operand.hbm [shape: f32[1,128], index: 6, kind: input, shape index: {}]
  %s7 = inlined_call_operand.hbm [shape: f32[96,128], index: 7, kind: output, shape index: {}]
  %s8 = sld [smem:[#allocation0]]
  $region85: #{tpu_custom_call.1} parent=0
    _
  %s10 = ssub.s32 1, %s8
  %s11 = scalar_select 0, %s10, %s8
  $region1: #{tpu_custom_call.1} parent=0
    #allocation2 [shape = 'u8[1572864]{0}', space=vmem, size = 0x180000, scoped, tag = 'input window, operand 0']
    #allocation3 [shape = 's32[2]{0}', space=sflag, size = 0x8, scoped, tag = 'scoped memory for tpu_custom_call.1']
    #allocation4 [shape = 's32[2]{0}', space=sflag, size = 0x8, scoped, tag = 'scoped memory for tpu_custom_call.1']
    #allocation5 [shape = 'u8[512]{0}', space=vmem, size = 0x400, scoped, tag = 'input window, operand 2, single buffered']
    #allocation6 [shape = 's32[1]{0}', space=sflag, size = 0x4, scoped, tag = 'scoped memory for tpu_custom_call.1']
    #allocation7 [shape = 'u8[16384]{0}', space=vmem, size = 0x4000, scoped, tag = 'input window, operand 3, single buffered']
    #allocation8 [shape = 'u8[512]{0}', space=vmem, size = 0x400, scoped, tag = 'input window, operand 4, single buffered']
    #allocation9 [shape = 's32[1]{0}', space=sflag, size = 0x4, scoped, tag = 'scoped memory for tpu_custom_call.1']
    #allocation10 [shape = 'u8[16384]{0}', space=vmem, size = 0x4000, scoped, tag = 'input window, operand 5, single buffered']
    #allocation11 [shape = 'u8[512]{0}', space=vmem, size = 0x400, scoped, tag = 'input window, operand 6, single buffered']
    #allocation12 [shape = 's32[1]{0}', space=sflag, size = 0x4, scoped, tag = 'scoped memory for tpu_custom_call.1']
    #allocation13 [shape = 'u8[49152]{0}', space=vmem, size = 0xc000, scoped, tag = 'output window, operand 0']
    %12 = vsyncpa [#allocation3], 0
    %s13 = scalar_lea.sflag [#allocation3], 1
    %14 = vsyncpa %s13, 0
    %15 = vsyncpa [#allocation6], 0
    %16 = vsyncpa [#allocation9], 0
    %17 = vsyncpa [#allocation12], 0
    %18 = vsyncpa [#allocation4], 0
    %s19 = scalar_lea.sflag [#allocation4], 1
    %20 = vsyncpa %s19, 0
    loop: start=0, step=1, limit=4
    $region2: #{tpu_custom_call.1} parent=1 // loop_pre_header
      _
    $region3: #{tpu_custom_call.1} parent=1 // loop_header
      %s22 = sphi 0, %s26
      %p23 = scmp.ge.s32.totalorder %s22, 4
      %s32 = sphi 0, %s34
      %s35 = sphi 0, %s32
      %s36 = sphi 0, %s35
      %s52 = sphi 0, %s36
      %s56 = sphi 0, %s56
      %s58 = sphi 0, %s56
      %s59 = sphi 0, %s58
      %s73 = sphi 0, %s59
      %s77 = sphi 0, %s77
      %s79 = sphi 0, %s77
      %s80 = sphi 0, %s79
      %s94 = sphi 0, %s80
      %s98 = sphi 0, %s98
      %s100 = sphi 0, %s98
      %s101 = sphi 0, %s100
      %s115 = sphi 0, %s101
      %s119 = sphi 0, %s119
      %s121 = sphi 0, %s119
      %s122 = sphi 0, %s121
      %s136 = sphi 0, %s122
      %s140 = sphi 0, %s140
      %s142 = sphi 0, %s140
      %s143 = sphi 0, %s142
      %s157 = sphi 0, %s143
      %s161 = sphi 0, %s161
      %s163 = sphi 0, %s161
      %s164 = sphi 0, %s163
      %s178 = sphi 0, %s164
      %s184 = sphi 0, %s186
      %s187 = sphi 0, %s184
      %s188 = sphi 0, %s187
      %s204 = sphi 0, %s188
    $region4: #{tpu_custom_call.1} parent=1 // loop_header_branch
      %25 = sbr.rel (%p23) target = $region8
    $region5: #{tpu_custom_call.1} parent=1 // loop_body
      %s27 = ssub.s32 %s22, 1
      %s28 = ssub.s32 %s22, 2
      %s29 = sadd.s32 %s22, 1
      %s30 = ssub.s32 %s22, %s29
      %p31 = scmp.eq.s32.totalorder %s30, 0
      %s33 = sadd.s32 %s32, 1
      %s34 = scalar_select %p31, %s32, %s33
      %p37 = pneg %p31
      %p38 = scmp.eq.s32.totalorder %s22, 1
      %p39 = por %p37, %p38
      %p40 = scmp.ne.s32.totalorder %s32, %s35
      %p41 = scmp.eq.s32.totalorder %s22, 0
      %p42 = por %p40, %p41
      %p43 = scmp.ne.s32.totalorder %s32, %s35
      %p44 = scmp.eq.s32.totalorder %s27, 1
      %p45 = por %p43, %p44
      %p46 = scmp.ne.s32.totalorder %s35, %s36
      %p47 = scmp.eq.s32.totalorder %s27, 0
      %p48 = por %p46, %p47
      %p49 = scmp.ne.s32.totalorder %s35, %s36
      %p50 = scmp.eq.s32.totalorder %s28, 1
      %p51 = por %p49, %p50
      %p53 = scmp.ne.s32.totalorder %s36, %s52
      %p54 = scmp.eq.s32.totalorder %s28, 0
      %p55 = por %p53, %p54
      %s57 = sadd.s32 %s56, 1
      %p60 = scmp.eq.s32.totalorder %s22, 1
      %p61 = scmp.ne.s32.totalorder %s56, %s58
      %p62 = scmp.eq.s32.totalorder %s22, 0
      %p63 = por %p61, %p62
      %p64 = scmp.ne.s32.totalorder %s56, %s58
      %p65 = scmp.eq.s32.totalorder %s27, 1
      %p66 = por %p64, %p65
      %p67 = scmp.ne.s32.totalorder %s58, %s59
      %p68 = scmp.eq.s32.totalorder %s27, 0
      %p69 = por %p67, %p68
      %p70 = scmp.ne.s32.totalorder %s58, %s59
      %p71 = scmp.eq.s32.totalorder %s28, 1
      %p72 = por %p70, %p71
      %p74 = scmp.ne.s32.totalorder %s59, %s73
      %p75 = scmp.eq.s32.totalorder %s28, 0
      %p76 = por %p74, %p75
      %s78 = sadd.s32 %s77, 1
      %p81 = scmp.eq.s32.totalorder %s22, 1
      %p82 = scmp.ne.s32.totalorder %s77, %s79
      %p83 = scmp.eq.s32.totalorder %s22, 0
      %p84 = por %p82, %p83
      %p85 = scmp.ne.s32.totalorder %s77, %s79
      %p86 = scmp.eq.s32.totalorder %s27, 1
      %p87 = por %p85, %p86
      %p88 = scmp.ne.s32.totalorder %s79, %s80
      %p89 = scmp.eq.s32.totalorder %s27, 0
      %p90 = por %p88, %p89
      %p91 = scmp.ne.s32.totalorder %s79, %s80
      %p92 = scmp.eq.s32.totalorder %s28, 1
      %p93 = por %p91, %p92
      %p95 = scmp.ne.s32.totalorder %s80, %s94
      %p96 = scmp.eq.s32.totalorder %s28, 0
      %p97 = por %p95, %p96
      %s99 = sadd.s32 %s98, 1
      %p102 = scmp.eq.s32.totalorder %s22, 1
      %p103 = scmp.ne.s32.totalorder %s98, %s100
      %p104 = scmp.eq.s32.totalorder %s22, 0
      %p105 = por %p103, %p104
      %p106 = scmp.ne.s32.totalorder %s98, %s100
      %p107 = scmp.eq.s32.totalorder %s27, 1
      %p108 = por %p106, %p107
      %p109 = scmp.ne.s32.totalorder %s100, %s101
      %p110 = scmp.eq.s32.totalorder %s27, 0
      %p111 = por %p109, %p110
      %p112 = scmp.ne.s32.totalorder %s100, %s101
      %p113 = scmp.eq.s32.totalorder %s28, 1
      %p114 = por %p112, %p113
      %p116 = scmp.ne.s32.totalorder %s101, %s115
      %p117 = scmp.eq.s32.totalorder %s28, 0
      %p118 = por %p116, %p117
      %s120 = sadd.s32 %s119, 1
      %p123 = scmp.eq.s32.totalorder %s22, 1
      %p124 = scmp.ne.s32.totalorder %s119, %s121
      %p125 = scmp.eq.s32.totalorder %s22, 0
      %p126 = por %p124, %p125
      %p127 = scmp.ne.s32.totalorder %s119, %s121
      %p128 = scmp.eq.s32.totalorder %s27, 1
      %p129 = por %p127, %p128
      %p130 = scmp.ne.s32.totalorder %s121, %s122
      %p131 = scmp.eq.s32.totalorder %s27, 0
      %p132 = por %p130, %p131
      %p133 = scmp.ne.s32.totalorder %s121, %s122
      %p134 = scmp.eq.s32.totalorder %s28, 1
      %p135 = por %p133, %p134
      %p137 = scmp.ne.s32.totalorder %s122, %s136
      %p138 = scmp.eq.s32.totalorder %s28, 0
      %p139 = por %p137, %p138
      %s141 = sadd.s32 %s140, 1
      %p144 = scmp.eq.s32.totalorder %s22, 1
      %p145 = scmp.ne.s32.totalorder %s140, %s142
      %p146 = scmp.eq.s32.totalorder %s22, 0
      %p147 = por %p145, %p146
      %p148 = scmp.ne.s32.totalorder %s140, %s142
      %p149 = scmp.eq.s32.totalorder %s27, 1
      %p150 = por %p148, %p149
      %p151 = scmp.ne.s32.totalorder %s142, %s143
      %p152 = scmp.eq.s32.totalorder %s27, 0
      %p153 = por %p151, %p152
      %p154 = scmp.ne.s32.totalorder %s142, %s143
      %p155 = scmp.eq.s32.totalorder %s28, 1
      %p156 = por %p154, %p155
      %p158 = scmp.ne.s32.totalorder %s143, %s157
      %p159 = scmp.eq.s32.totalorder %s28, 0
      %p160 = por %p158, %p159
      %s162 = sadd.s32 %s161, 1
      %p165 = scmp.eq.s32.totalorder %s22, 1
      %p166 = scmp.ne.s32.totalorder %s161, %s163
      %p167 = scmp.eq.s32.totalorder %s22, 0
      %p168 = por %p166, %p167
      %p169 = scmp.ne.s32.totalorder %s161, %s163
      %p170 = scmp.eq.s32.totalorder %s27, 1
      %p171 = por %p169, %p170
      %p172 = scmp.ne.s32.totalorder %s163, %s164
      %p173 = scmp.eq.s32.totalorder %s27, 0
      %p174 = por %p172, %p173
      %p175 = scmp.ne.s32.totalorder %s163, %s164
      %p176 = scmp.eq.s32.totalorder %s28, 1
      %p177 = por %p175, %p176
      %p179 = scmp.ne.s32.totalorder %s164, %s178
      %p180 = scmp.eq.s32.totalorder %s28, 0
      %p181 = por %p179, %p180
      %s182 = ssub.s32 %s22, %s29
      %p183 = scmp.eq.s32.totalorder %s182, 0
      %s185 = sadd.s32 %s184, 1
      %s186 = scalar_select %p183, %s184, %s185
      %p189 = pneg %p183
      %p190 = scmp.eq.s32.totalorder %s22, 1
      %p191 = por %p189, %p190
      %p192 = scmp.ne.s32.totalorder %s184, %s187
      %p193 = scmp.eq.s32.totalorder %s22, 0
      %p194 = por %p192, %p193
      %p195 = scmp.ne.s32.totalorder %s184, %s187
      %p196 = scmp.eq.s32.totalorder %s27, 1
      %p197 = por %p195, %p196
      %p198 = scmp.ne.s32.totalorder %s187, %s188
      %p199 = scmp.eq.s32.totalorder %s27, 0
      %p200 = por %p198, %p199
      %p201 = scmp.ne.s32.totalorder %s187, %s188
      %p202 = scmp.eq.s32.totalorder %s28, 1
      %p203 = por %p201, %p202
      %p205 = scmp.ne.s32.totalorder %s188, %s204
      %p206 = scmp.eq.s32.totalorder %s28, 0
      %p207 = por %p205, %p206
      %p208 = scmp.le.s32.totalorder 1, %s22
      %p209 = scmp.lt.s32.totalorder %s22, 3
      %p210 = pnand %p208, %p209
      %p211 = pneg %p210
      // Predicated region
      $region9: #{tpu_custom_call.1} parent=5 // pred_check
        _
      $region10: #{tpu_custom_call.1} parent=5 // pred_check_branch
        %213 = sbr.rel (%p210) target = $region12
      $region11: #{tpu_custom_call.1} parent=5 // pred_region
        %s214 = ssub.s32 %s22, 1
        // Predicated region
        $region13: #{tpu_custom_call.1} parent=11 // pred_check
          %p215 = pneg %p69
        $region14: #{tpu_custom_call.1} parent=11 // pred_check_branch
          %217 = sbr.rel (%p215) target = $region16
        $region15: #{tpu_custom_call.1} parent=11 // pred_region
          _
        $region16: #{tpu_custom_call.1} parent=11 // pred_fallthru
          _
        // Predicated region
        $region17: #{tpu_custom_call.1} parent=11 // pred_check
          %p218 = pneg %p90
        $region18: #{tpu_custom_call.1} parent=11 // pred_check_branch
          %220 = sbr.rel (%p218) target = $region20
        $region19: #{tpu_custom_call.1} parent=11 // pred_region
          %s222 = ssub.s32 16, 16
          %223 = vsyncadd [#allocation6], %s222
          %s225 = sshll.u32 [#allocation5], 4
          %s226 = int_to_ptr.vmem [resolvable:$true] %s225
          %228 = dma.hbm_to_vmem [thread:$0]  %s2, 16, %s226, [#allocation6]
        $region20: #{tpu_custom_call.1} parent=11 // pred_fallthru
          _
        // Predicated region
        $region21: #{tpu_custom_call.1} parent=11 // pred_check
          %p229 = pneg %p111
        $region22: #{tpu_custom_call.1} parent=11 // pred_check_branch
          %231 = sbr.rel (%p229) target = $region24
        $region23: #{tpu_custom_call.1} parent=11 // pred_region
          %s233 = ssub.s32 512, 512
          %234 = vsyncadd [#allocation6], %s233
          %s235 = sshll.u32 [#allocation7], 4
          %s236 = int_to_ptr.vmem [resolvable:$true] %s235
          %241 = dma.hbm_to_vmem [thread:$0]  %s3, 512, %s236, [#allocation6], 128, 128, 8
        $region24: #{tpu_custom_call.1} parent=11 // pred_fallthru
          _
        // Predicated region
        $region25: #{tpu_custom_call.1} parent=11 // pred_check
          %p242 = pneg %p132
        $region26: #{tpu_custom_call.1} parent=11 // pred_check_branch
          %244 = sbr.rel (%p242) target = $region28
        $region27: #{tpu_custom_call.1} parent=11 // pred_region
          %s246 = ssub.s32 16, 16
          %247 = vsyncadd [#allocation9], %s246
          %s249 = sshll.u32 [#allocation8], 4
          %s250 = int_to_ptr.vmem [resolvable:$true] %s249
          %252 = dma.hbm_to_vmem [thread:$0]  %s4, 16, %s250, [#allocation9]
        $region28: #{tpu_custom_call.1} parent=11 // pred_fallthru
          _
        // Predicated region
        $region29: #{tpu_custom_call.1} parent=11 // pred_check
          %p253 = pneg %p153
        $region30: #{tpu_custom_call.1} parent=11 // pred_check_branch
          %255 = sbr.rel (%p253) target = $region32
        $region31: #{tpu_custom_call.1} parent=11 // pred_region
          %s257 = ssub.s32 512, 512
          %258 = vsyncadd [#allocation9], %s257
          %s259 = sshll.u32 [#allocation10], 4
          %s260 = int_to_ptr.vmem [resolvable:$true] %s259
          %265 = dma.hbm_to_vmem [thread:$0]  %s5, 512, %s260, [#allocation9], 128, 128, 8
        $region32: #{tpu_custom_call.1} parent=11 // pred_fallthru
          _
        // Predicated region
        $region33: #{tpu_custom_call.1} parent=11 // pred_check
          %p266 = pneg %p174
        $region34: #{tpu_custom_call.1} parent=11 // pred_check_branch
          %268 = sbr.rel (%p266) target = $region36
        $region35: #{tpu_custom_call.1} parent=11 // pred_region
          %s270 = ssub.s32 16, 16
          %271 = vsyncadd [#allocation12], %s270
          %s273 = sshll.u32 [#allocation11], 4
          %s274 = int_to_ptr.vmem [resolvable:$true] %s273
          %276 = dma.hbm_to_vmem [thread:$0]  %s6, 16, %s274, [#allocation12]
        $region36: #{tpu_custom_call.1} parent=11 // pred_fallthru
          _
      $region12: #{tpu_custom_call.1} parent=5 // pred_fallthru
        _
      %p277 = scmp.lt.s32.totalorder %s22, 2
      // Predicated region
      $region37: #{tpu_custom_call.1} parent=5 // pred_check
        %p278 = pneg %p277
      $region38: #{tpu_custom_call.1} parent=5 // pred_check_branch
        %280 = sbr.rel (%p278) target = $region40
      $region39: #{tpu_custom_call.1} parent=5 // pred_region
        // Predicated region
        $region41: #{tpu_custom_call.1} parent=39 // pred_check
          %p281 = pneg %p42
        $region42: #{tpu_custom_call.1} parent=39 // pred_check_branch
          %283 = sbr.rel (%p281) target = $region44
        $region43: #{tpu_custom_call.1} parent=39 // pred_region
          %s284 = sand.u32 %s32, 1
          %s285 = scalar_lea.sflag [#allocation3], %s284
          %s286 = sand.u32 %s32, 1
          %s287 = smul.addr %s286, 1536
          %s288 = scalar_lea.vmem [#allocation2], %s287
          %s289 = smul.u32 6, %s22
          %s291 = ssub.s32 24576, 24576
          %292 = vsyncadd %s285, %s291
          %s293 = smul.addr %s289, 32
          %s294 = smul.addr %s293, 128
          %s295 = scalar_lea.hbm %s0, %s294
          %s296 = sshll.u32 %s288, 4
          %s297 = int_to_ptr.vmem [resolvable:$true] %s296
          %302 = dma.hbm_to_vmem [thread:$0]  %s295, 24576, %s297, %s285, 4096, 4096, 256
        $region44: #{tpu_custom_call.1} parent=39 // pred_fallthru
          _
      $region40: #{tpu_custom_call.1} parent=5 // pred_fallthru
        _
      %p303 = scmp.le.s32.totalorder 1, %s22
      %p304 = scmp.lt.s32.totalorder %s22, 3
      %p305 = pnand %p303, %p304
      %p306 = pneg %p305
      // Predicated region
      $region45: #{tpu_custom_call.1} parent=5 // pred_check
        _
      $region46: #{tpu_custom_call.1} parent=5 // pred_check_branch
        %308 = sbr.rel (%p305) target = $region48
      $region47: #{tpu_custom_call.1} parent=5 // pred_region
        %s309 = ssub.s32 %s22, 1
        %s310 = sand.u32 %s35, 1
        %s311 = scalar_lea.sflag [#allocation3], %s310
        %s312 = sand.u32 %s35, 1
        %s313 = smul.addr %s312, 1536
        %s314 = scalar_lea.vmem [#allocation2], %s313
        // Predicated region
        $region49: #{tpu_custom_call.1} parent=47 // pred_check
          %p315 = pneg %p48
        $region50: #{tpu_custom_call.1} parent=47 // pred_check_branch
          %317 = sbr.rel (%p315) target = $region52
        $region51: #{tpu_custom_call.1} parent=47 // pred_region
          %318 = dma.done %s311, 24576
        $region52: #{tpu_custom_call.1} parent=47 // pred_fallthru
          _
        // Predicated region
        $region53: #{tpu_custom_call.1} parent=47 // pred_check
          %p319 = pneg %p90
        $region54: #{tpu_custom_call.1} parent=47 // pred_check_branch
          %321 = sbr.rel (%p319) target = $region56
        $region55: #{tpu_custom_call.1} parent=47 // pred_region
          %322 = dma.done [#allocation6], 16
        $region56: #{tpu_custom_call.1} parent=47 // pred_fallthru
          _
        // Predicated region
        $region57: #{tpu_custom_call.1} parent=47 // pred_check
          %p323 = pneg %p111
        $region58: #{tpu_custom_call.1} parent=47 // pred_check_branch
          %325 = sbr.rel (%p323) target = $region60
        $region59: #{tpu_custom_call.1} parent=47 // pred_region
          %326 = dma.done [#allocation6], 512
        $region60: #{tpu_custom_call.1} parent=47 // pred_fallthru
          _
        // Predicated region
        $region61: #{tpu_custom_call.1} parent=47 // pred_check
          %p327 = pneg %p132
        $region62: #{tpu_custom_call.1} parent=47 // pred_check_branch
          %329 = sbr.rel (%p327) target = $region64
        $region63: #{tpu_custom_call.1} parent=47 // pred_region
          %330 = dma.done [#allocation9], 16
        $region64: #{tpu_custom_call.1} parent=47 // pred_fallthru
          _
        // Predicated region
        $region65: #{tpu_custom_call.1} parent=47 // pred_check
          %p331 = pneg %p153
        $region66: #{tpu_custom_call.1} parent=47 // pred_check_branch
          %333 = sbr.rel (%p331) target = $region68
        $region67: #{tpu_custom_call.1} parent=47 // pred_region
          %334 = dma.done [#allocation9], 512
        $region68: #{tpu_custom_call.1} parent=47 // pred_fallthru
          _
        // Predicated region
        $region69: #{tpu_custom_call.1} parent=47 // pred_check
          %p335 = pneg %p174
        $region70: #{tpu_custom_call.1} parent=47 // pred_check_branch
          %337 = sbr.rel (%p335) target = $region72
        $region71: #{tpu_custom_call.1} parent=47 // pred_region
          %338 = dma.done [#allocation12], 16
        $region72: #{tpu_custom_call.1} parent=47 // pred_fallthru
          _
        %s339 = sand.u32 %s35, 1
        %s340 = scalar_lea.sflag [#allocation3], %s339
        %s341 = sand.u32 %s35, 1
        %s342 = smul.addr %s341, 1536
        %s343 = scalar_lea.vmem [#allocation2], %s342
        %p344 = pneg %p48
        %p345 = pneg %p45
        %p346 = pneg %p69
        %p347 = pneg %p66
        %p348 = pneg %p90
        %p349 = pneg %p87
        %p350 = pneg %p111
        %p351 = pneg %p108
        %p352 = pneg %p132
        %p353 = pneg %p129
        %p354 = pneg %p153
        %p355 = pneg %p150
        %p356 = pneg %p174
        %p357 = pneg %p171
        %p358 = pneg %p200
        %p359 = pneg %p197
        %s360 = sand.u32 %s187, 1
        %s361 = scalar_lea.sflag [#allocation4], %s360
        %s362 = sand.u32 %s187, 1
        %s363 = smul.addr %s362, 48
        %s364 = scalar_lea.vmem [#allocation13], %s363
        %s365 = smul.u32 6, %s27
        %s366 = smul.u32 6, %s27
        %v368 = vld [vmem:[%s314] sm:$0xff]
        %v369 = vld [vmem:[%s314 + $0x8] sm:$0xff]
        %v370 = vld [vmem:[%s314 + $0x10] sm:$0xff]
        %v371 = vld [vmem:[%s314 + $0x18] sm:$0xff]
        %v372 = vld [vmem:[%s314 + $0x20] sm:$0xff]
        %v373 = vld [vmem:[%s314 + $0x28] sm:$0xff]
        %v374 = vld [vmem:[%s314 + $0x30] sm:$0xff]
        %v375 = vld [vmem:[%s314 + $0x38] sm:$0xff]
        %v376 = vld [vmem:[%s314 + $0x40] sm:$0xff]
        %v377 = vld [vmem:[%s314 + $0x48] sm:$0xff]
        %v378 = vld [vmem:[%s314 + $0x50] sm:$0xff]
        %v379 = vld [vmem:[%s314 + $0x58] sm:$0xff]
        %v380 = vld [vmem:[%s314 + $0x60] sm:$0xff]
        %v381 = vld [vmem:[%s314 + $0x68] sm:$0xff]
        %v382 = vld [vmem:[%s314 + $0x70] sm:$0xff]
        %v383 = vld [vmem:[%s314 + $0x78] sm:$0xff]
        %v384 = vld [vmem:[%s314 + $0x80] sm:$0xff]
        %v385 = vld [vmem:[%s314 + $0x88] sm:$0xff]
        %v386 = vld [vmem:[%s314 + $0x90] sm:$0xff]
        %v387 = vld [vmem:[%s314 + $0x98] sm:$0xff]
        %v388 = vld [vmem:[%s314 + $0xa0] sm:$0xff]
        %v389 = vld [vmem:[%s314 + $0xa8] sm:$0xff]
        %v390 = vld [vmem:[%s314 + $0xb0] sm:$0xff]
        %v391 = vld [vmem:[%s314 + $0xb8] sm:$0xff]
        %v392 = vld [vmem:[%s314 + $0xc0] sm:$0xff]
        %v393 = vld [vmem:[%s314 + $0xc8] sm:$0xff]
        %v394 = vld [vmem:[%s314 + $0xd0] sm:$0xff]
        %v395 = vld [vmem:[%s314 + $0xd8] sm:$0xff]
        %v396 = vld [vmem:[%s314 + $0xe0] sm:$0xff]
        %v397 = vld [vmem:[%s314 + $0xe8] sm:$0xff]
        %v398 = vld [vmem:[%s314 + $0xf0] sm:$0xff]
        %v399 = vld [vmem:[%s314 + $0xf8] sm:$0xff]
        %v400 = vld [vmem:[%s314 + $0x100] sm:$0xff]
        %v401 = vld [vmem:[%s314 + $0x108] sm:$0xff]
        %v402 = vld [vmem:[%s314 + $0x110] sm:$0xff]
        %v403 = vld [vmem:[%s314 + $0x118] sm:$0xff]
        %v404 = vld [vmem:[%s314 + $0x120] sm:$0xff]
        %v405 = vld [vmem:[%s314 + $0x128] sm:$0xff]
        %v406 = vld [vmem:[%s314 + $0x130] sm:$0xff]
        %v407 = vld [vmem:[%s314 + $0x138] sm:$0xff]
        %v408 = vld [vmem:[%s314 + $0x140] sm:$0xff]
        %v409 = vld [vmem:[%s314 + $0x148] sm:$0xff]
        %v410 = vld [vmem:[%s314 + $0x150] sm:$0xff]
        %v411 = vld [vmem:[%s314 + $0x158] sm:$0xff]
        %v412 = vld [vmem:[%s314 + $0x160] sm:$0xff]
        %v413 = vld [vmem:[%s314 + $0x168] sm:$0xff]
        %v414 = vld [vmem:[%s314 + $0x170] sm:$0xff]
        %v415 = vld [vmem:[%s314 + $0x178] sm:$0xff]
        %v416 = vld [vmem:[%s314 + $0x180] sm:$0xff]
        %v417 = vld [vmem:[%s314 + $0x188] sm:$0xff]
        %v418 = vld [vmem:[%s314 + $0x190] sm:$0xff]
        %v419 = vld [vmem:[%s314 + $0x198] sm:$0xff]
        %v420 = vld [vmem:[%s314 + $0x1a0] sm:$0xff]
        %v421 = vld [vmem:[%s314 + $0x1a8] sm:$0xff]
        %v422 = vld [vmem:[%s314 + $0x1b0] sm:$0xff]
        %v423 = vld [vmem:[%s314 + $0x1b8] sm:$0xff]
        %v424 = vld [vmem:[%s314 + $0x1c0] sm:$0xff]
        %v425 = vld [vmem:[%s314 + $0x1c8] sm:$0xff]
        %v426 = vld [vmem:[%s314 + $0x1d0] sm:$0xff]
        %v427 = vld [vmem:[%s314 + $0x1d8] sm:$0xff]
        %v428 = vld [vmem:[%s314 + $0x1e0] sm:$0xff]
        %v429 = vld [vmem:[%s314 + $0x1e8] sm:$0xff]
        %v430 = vld [vmem:[%s314 + $0x1f0] sm:$0xff]
        %v431 = vld [vmem:[%s314 + $0x1f8] sm:$0xff]
        %v432 = vld [vmem:[%s314 + $0x200] sm:$0xff]
        %v433 = vld [vmem:[%s314 + $0x208] sm:$0xff]
        %v434 = vld [vmem:[%s314 + $0x210] sm:$0xff]
        %v435 = vld [vmem:[%s314 + $0x218] sm:$0xff]
        %v436 = vld [vmem:[%s314 + $0x220] sm:$0xff]
        %v437 = vld [vmem:[%s314 + $0x228] sm:$0xff]
        %v438 = vld [vmem:[%s314 + $0x230] sm:$0xff]
        %v439 = vld [vmem:[%s314 + $0x238] sm:$0xff]
        %v440 = vld [vmem:[%s314 + $0x240] sm:$0xff]
        %v441 = vld [vmem:[%s314 + $0x248] sm:$0xff]
        %v442 = vld [vmem:[%s314 + $0x250] sm:$0xff]
        %v443 = vld [vmem:[%s314 + $0x258] sm:$0xff]
        %v444 = vld [vmem:[%s314 + $0x260] sm:$0xff]
        %v445 = vld [vmem:[%s314 + $0x268] sm:$0xff]
        %v446 = vld [vmem:[%s314 + $0x270] sm:$0xff]
        %v447 = vld [vmem:[%s314 + $0x278] sm:$0xff]
        %v448 = vld [vmem:[%s314 + $0x280] sm:$0xff]
        %v449 = vld [vmem:[%s314 + $0x288] sm:$0xff]
        %v450 = vld [vmem:[%s314 + $0x290] sm:$0xff]
        %v451 = vld [vmem:[%s314 + $0x298] sm:$0xff]
        %v452 = vld [vmem:[%s314 + $0x2a0] sm:$0xff]
        %v453 = vld [vmem:[%s314 + $0x2a8] sm:$0xff]
        %v454 = vld [vmem:[%s314 + $0x2b0] sm:$0xff]
        %v455 = vld [vmem:[%s314 + $0x2b8] sm:$0xff]
        %v456 = vld [vmem:[%s314 + $0x2c0] sm:$0xff]
        %v457 = vld [vmem:[%s314 + $0x2c8] sm:$0xff]
        %v458 = vld [vmem:[%s314 + $0x2d0] sm:$0xff]
        %v459 = vld [vmem:[%s314 + $0x2d8] sm:$0xff]
        %v460 = vld [vmem:[%s314 + $0x2e0] sm:$0xff]
        %v461 = vld [vmem:[%s314 + $0x2e8] sm:$0xff]
        %v462 = vld [vmem:[%s314 + $0x2f0] sm:$0xff]
        %v463 = vld [vmem:[%s314 + $0x2f8] sm:$0xff]
        %v464 = vld [vmem:[%s314 + $0x300] sm:$0xff]
        %v465 = vld [vmem:[%s314 + $0x308] sm:$0xff]
        %v466 = vld [vmem:[%s314 + $0x310] sm:$0xff]
        %v467 = vld [vmem:[%s314 + $0x318] sm:$0xff]
        %v468 = vld [vmem:[%s314 + $0x320] sm:$0xff]
        %v469 = vld [vmem:[%s314 + $0x328] sm:$0xff]
        %v470 = vld [vmem:[%s314 + $0x330] sm:$0xff]
        %v471 = vld [vmem:[%s314 + $0x338] sm:$0xff]
        %v472 = vld [vmem:[%s314 + $0x340] sm:$0xff]
        %v473 = vld [vmem:[%s314 + $0x348] sm:$0xff]
        %v474 = vld [vmem:[%s314 + $0x350] sm:$0xff]
        %v475 = vld [vmem:[%s314 + $0x358] sm:$0xff]
        %v476 = vld [vmem:[%s314 + $0x360] sm:$0xff]
        %v477 = vld [vmem:[%s314 + $0x368] sm:$0xff]
        %v478 = vld [vmem:[%s314 + $0x370] sm:$0xff]
        %v479 = vld [vmem:[%s314 + $0x378] sm:$0xff]
        %v480 = vld [vmem:[%s314 + $0x380] sm:$0xff]
        %v481 = vld [vmem:[%s314 + $0x388] sm:$0xff]
        %v482 = vld [vmem:[%s314 + $0x390] sm:$0xff]
        %v483 = vld [vmem:[%s314 + $0x398] sm:$0xff]
        %v484 = vld [vmem:[%s314 + $0x3a0] sm:$0xff]
        %v485 = vld [vmem:[%s314 + $0x3a8] sm:$0xff]
        %v486 = vld [vmem:[%s314 + $0x3b0] sm:$0xff]
        %v487 = vld [vmem:[%s314 + $0x3b8] sm:$0xff]
        %v488 = vld [vmem:[%s314 + $0x3c0] sm:$0xff]
        %v489 = vld [vmem:[%s314 + $0x3c8] sm:$0xff]
        %v490 = vld [vmem:[%s314 + $0x3d0] sm:$0xff]
        %v491 = vld [vmem:[%s314 + $0x3d8] sm:$0xff]
        %v492 = vld [vmem:[%s314 + $0x3e0] sm:$0xff]
        %v493 = vld [vmem:[%s314 + $0x3e8] sm:$0xff]
        %v494 = vld [vmem:[%s314 + $0x3f0] sm:$0xff]
        %v495 = vld [vmem:[%s314 + $0x3f8] sm:$0xff]
        %v496 = vld [vmem:[%s314 + $0x400] sm:$0xff]
        %v497 = vld [vmem:[%s314 + $0x408] sm:$0xff]
        %v498 = vld [vmem:[%s314 + $0x410] sm:$0xff]
        %v499 = vld [vmem:[%s314 + $0x418] sm:$0xff]
        %v500 = vld [vmem:[%s314 + $0x420] sm:$0xff]
        %v501 = vld [vmem:[%s314 + $0x428] sm:$0xff]
        %v502 = vld [vmem:[%s314 + $0x430] sm:$0xff]
        %v503 = vld [vmem:[%s314 + $0x438] sm:$0xff]
        %v504 = vld [vmem:[%s314 + $0x440] sm:$0xff]
        %v505 = vld [vmem:[%s314 + $0x448] sm:$0xff]
        %v506 = vld [vmem:[%s314 + $0x450] sm:$0xff]
        %v507 = vld [vmem:[%s314 + $0x458] sm:$0xff]
        %v508 = vld [vmem:[%s314 + $0x460] sm:$0xff]
        %v509 = vld [vmem:[%s314 + $0x468] sm:$0xff]
        %v510 = vld [vmem:[%s314 + $0x470] sm:$0xff]
        %v511 = vld [vmem:[%s314 + $0x478] sm:$0xff]
        %v512 = vld [vmem:[%s314 + $0x480] sm:$0xff]
        %v513 = vld [vmem:[%s314 + $0x488] sm:$0xff]
        %v514 = vld [vmem:[%s314 + $0x490] sm:$0xff]
        %v515 = vld [vmem:[%s314 + $0x498] sm:$0xff]
        %v516 = vld [vmem:[%s314 + $0x4a0] sm:$0xff]
        %v517 = vld [vmem:[%s314 + $0x4a8] sm:$0xff]
        %v518 = vld [vmem:[%s314 + $0x4b0] sm:$0xff]
        %v519 = vld [vmem:[%s314 + $0x4b8] sm:$0xff]
        %v520 = vld [vmem:[%s314 + $0x4c0] sm:$0xff]
        %v521 = vld [vmem:[%s314 + $0x4c8] sm:$0xff]
        %v522 = vld [vmem:[%s314 + $0x4d0] sm:$0xff]
        %v523 = vld [vmem:[%s314 + $0x4d8] sm:$0xff]
        %v524 = vld [vmem:[%s314 + $0x4e0] sm:$0xff]
        %v525 = vld [vmem:[%s314 + $0x4e8] sm:$0xff]
        %v526 = vld [vmem:[%s314 + $0x4f0] sm:$0xff]
        %v527 = vld [vmem:[%s314 + $0x4f8] sm:$0xff]
        %v528 = vld [vmem:[%s314 + $0x500] sm:$0xff]
        %v529 = vld [vmem:[%s314 + $0x508] sm:$0xff]
        %v530 = vld [vmem:[%s314 + $0x510] sm:$0xff]
        %v531 = vld [vmem:[%s314 + $0x518] sm:$0xff]
        %v532 = vld [vmem:[%s314 + $0x520] sm:$0xff]
        %v533 = vld [vmem:[%s314 + $0x528] sm:$0xff]
        %v534 = vld [vmem:[%s314 + $0x530] sm:$0xff]
        %v535 = vld [vmem:[%s314 + $0x538] sm:$0xff]
        %v536 = vld [vmem:[%s314 + $0x540] sm:$0xff]
        %v537 = vld [vmem:[%s314 + $0x548] sm:$0xff]
        %v538 = vld [vmem:[%s314 + $0x550] sm:$0xff]
        %v539 = vld [vmem:[%s314 + $0x558] sm:$0xff]
        %v540 = vld [vmem:[%s314 + $0x560] sm:$0xff]
        %v541 = vld [vmem:[%s314 + $0x568] sm:$0xff]
        %v542 = vld [vmem:[%s314 + $0x570] sm:$0xff]
        %v543 = vld [vmem:[%s314 + $0x578] sm:$0xff]
        %v544 = vld [vmem:[%s314 + $0x580] sm:$0xff]
        %v545 = vld [vmem:[%s314 + $0x588] sm:$0xff]
        %v546 = vld [vmem:[%s314 + $0x590] sm:$0xff]
        %v547 = vld [vmem:[%s314 + $0x598] sm:$0xff]
        %v548 = vld [vmem:[%s314 + $0x5a0] sm:$0xff]
        %v549 = vld [vmem:[%s314 + $0x5a8] sm:$0xff]
        %v550 = vld [vmem:[%s314 + $0x5b0] sm:$0xff]
        %v551 = vld [vmem:[%s314 + $0x5b8] sm:$0xff]
        %v552 = vld [vmem:[%s314 + $0x5c0] sm:$0xff]
        %v553 = vld [vmem:[%s314 + $0x5c8] sm:$0xff]
        %v554 = vld [vmem:[%s314 + $0x5d0] sm:$0xff]
        %v555 = vld [vmem:[%s314 + $0x5d8] sm:$0xff]
        %v556 = vld [vmem:[%s314 + $0x5e0] sm:$0xff]
        %v557 = vld [vmem:[%s314 + $0x5e8] sm:$0xff]
        %v558 = vld [vmem:[%s314 + $0x5f0] sm:$0xff]
        %v559 = vld [vmem:[%s314 + $0x5f8] sm:$0xff]
        %v560 = vld [vmem:[%s1] sm:$0xf]
        %v561 = vld [vmem:[%s1 + $0x4] sm:$0xf]
        %v562 = vld [vmem:[%s1 + $0x8] sm:$0xf]
        %v563 = vld [vmem:[%s1 + $0xc] sm:$0xf]
        %v564 = vld [vmem:[%s1 + $0x10] sm:$0xf]
        %v565 = vld [vmem:[%s1 + $0x14] sm:$0xf]
        %v566 = vld [vmem:[%s1 + $0x18] sm:$0xf]
        %v567 = vld [vmem:[%s1 + $0x1c] sm:$0xf]
        %v568 = vld [vmem:[%s1 + $0x20] sm:$0xf]
        %v569 = vld [vmem:[%s1 + $0x24] sm:$0xf]
        %v570 = vld [vmem:[%s1 + $0x28] sm:$0xf]
        %v571 = vld [vmem:[%s1 + $0x2c] sm:$0xf]
        %v572 = vld [vmem:[%s1 + $0x30] sm:$0xf]
        %v573 = vld [vmem:[%s1 + $0x34] sm:$0xf]
        %v574 = vld [vmem:[%s1 + $0x38] sm:$0xf]
        %v575 = vld [vmem:[%s1 + $0x3c] sm:$0xf]
        %v576 = vld [vmem:[%s1 + $0x40] sm:$0xf]
        %v577 = vld [vmem:[%s1 + $0x44] sm:$0xf]
        %v578 = vld [vmem:[%s1 + $0x48] sm:$0xf]
        %v579 = vld [vmem:[%s1 + $0x4c] sm:$0xf]
        %v580 = vld [vmem:[%s1 + $0x50] sm:$0xf]
        %v581 = vld [vmem:[%s1 + $0x54] sm:$0xf]
        %v582 = vld [vmem:[%s1 + $0x58] sm:$0xf]
        %v583 = vld [vmem:[%s1 + $0x5c] sm:$0xf]
        %v584 = vld [vmem:[%s1 + $0x60] sm:$0xf]
        %v585 = vld [vmem:[%s1 + $0x64] sm:$0xf]
        %v586 = vld [vmem:[%s1 + $0x68] sm:$0xf]
        %v587 = vld [vmem:[%s1 + $0x6c] sm:$0xf]
        %v588 = vld [vmem:[%s1 + $0x70] sm:$0xf]
        %v589 = vld [vmem:[%s1 + $0x74] sm:$0xf]
        %v590 = vld [vmem:[%s1 + $0x78] sm:$0xf]
        %v591 = vld [vmem:[%s1 + $0x7c] sm:$0xf]
        %v592 = vld [vmem:[%s1 + $0x80] sm:$0xf]
        %v593 = vld [vmem:[%s1 + $0x84] sm:$0xf]
        %v594 = vld [vmem:[%s1 + $0x88] sm:$0xf]
        %v595 = vld [vmem:[%s1 + $0x8c] sm:$0xf]
        %v596 = vld [vmem:[%s1 + $0x90] sm:$0xf]
        %v597 = vld [vmem:[%s1 + $0x94] sm:$0xf]
        %v598 = vld [vmem:[%s1 + $0x98] sm:$0xf]
        %v599 = vld [vmem:[%s1 + $0x9c] sm:$0xf]
        %v600 = vld [vmem:[%s1 + $0xa0] sm:$0xf]
        %v601 = vld [vmem:[%s1 + $0xa4] sm:$0xf]
        %v602 = vld [vmem:[%s1 + $0xa8] sm:$0xf]
        %v603 = vld [vmem:[%s1 + $0xac] sm:$0xf]
        %v604 = vld [vmem:[%s1 + $0xb0] sm:$0xf]
        %v605 = vld [vmem:[%s1 + $0xb4] sm:$0xf]
        %v606 = vld [vmem:[%s1 + $0xb8] sm:$0xf]
        %v607 = vld [vmem:[%s1 + $0xbc] sm:$0xf]
        %v608 = vld [vmem:[%s1 + $0xc0] sm:$0xf]
        %v609 = vld [vmem:[%s1 + $0xc4] sm:$0xf]
        %v610 = vld [vmem:[%s1 + $0xc8] sm:$0xf]
        %v611 = vld [vmem:[%s1 + $0xcc] sm:$0xf]
        %v612 = vld [vmem:[%s1 + $0xd0] sm:$0xf]
        %v613 = vld [vmem:[%s1 + $0xd4] sm:$0xf]
        %v614 = vld [vmem:[%s1 + $0xd8] sm:$0xf]
        %v615 = vld [vmem:[%s1 + $0xdc] sm:$0xf]
        %v616 = vld [vmem:[%s1 + $0xe0] sm:$0xf]
        %v617 = vld [vmem:[%s1 + $0xe4] sm:$0xf]
        %v618 = vld [vmem:[%s1 + $0xe8] sm:$0xf]
        %v619 = vld [vmem:[%s1 + $0xec] sm:$0xf]
        %v620 = vld [vmem:[%s1 + $0xf0] sm:$0xf]
        %v621 = vld [vmem:[%s1 + $0xf4] sm:$0xf]
        %v622 = vld [vmem:[%s1 + $0xf8] sm:$0xf]
        %v623 = vld [vmem:[%s1 + $0xfc] sm:$0xf]
        %v624 = vld [vmem:[%s1 + $0x100] sm:$0xf]
        %v625 = vld [vmem:[%s1 + $0x104] sm:$0xf]
        %v626 = vld [vmem:[%s1 + $0x108] sm:$0xf]
        %v627 = vld [vmem:[%s1 + $0x10c] sm:$0xf]
        %v628 = vld [vmem:[%s1 + $0x110] sm:$0xf]
        %v629 = vld [vmem:[%s1 + $0x114] sm:$0xf]
        %v630 = vld [vmem:[%s1 + $0x118] sm:$0xf]
        %v631 = vld [vmem:[%s1 + $0x11c] sm:$0xf]
        %v632 = vld [vmem:[%s1 + $0x120] sm:$0xf]
        %v633 = vld [vmem:[%s1 + $0x124] sm:$0xf]
        %v634 = vld [vmem:[%s1 + $0x128] sm:$0xf]
        %v635 = vld [vmem:[%s1 + $0x12c] sm:$0xf]
        %v636 = vld [vmem:[%s1 + $0x130] sm:$0xf]
        %v637 = vld [vmem:[%s1 + $0x134] sm:$0xf]
        %v638 = vld [vmem:[%s1 + $0x138] sm:$0xf]
        %v639 = vld [vmem:[%s1 + $0x13c] sm:$0xf]
        %v640 = vld [vmem:[%s1 + $0x140] sm:$0xf]
        %v641 = vld [vmem:[%s1 + $0x144] sm:$0xf]
        %v642 = vld [vmem:[%s1 + $0x148] sm:$0xf]
        %v643 = vld [vmem:[%s1 + $0x14c] sm:$0xf]
        %v644 = vld [vmem:[%s1 + $0x150] sm:$0xf]
        %v645 = vld [vmem:[%s1 + $0x154] sm:$0xf]
        %v646 = vld [vmem:[%s1 + $0x158] sm:$0xf]
        %v647 = vld [vmem:[%s1 + $0x15c] sm:$0xf]
        %v648 = vld [vmem:[%s1 + $0x160] sm:$0xf]
        %v649 = vld [vmem:[%s1 + $0x164] sm:$0xf]
        %v650 = vld [vmem:[%s1 + $0x168] sm:$0xf]
        %v651 = vld [vmem:[%s1 + $0x16c] sm:$0xf]
        %v652 = vld [vmem:[%s1 + $0x170] sm:$0xf]
        %v653 = vld [vmem:[%s1 + $0x174] sm:$0xf]
        %v654 = vld [vmem:[%s1 + $0x178] sm:$0xf]
        %v655 = vld [vmem:[%s1 + $0x17c] sm:$0xf]
        %v656 = vld [vmem:[%s1 + $0x180] sm:$0xf]
        %v657 = vld [vmem:[%s1 + $0x184] sm:$0xf]
        %v658 = vld [vmem:[%s1 + $0x188] sm:$0xf]
        %v659 = vld [vmem:[%s1 + $0x18c] sm:$0xf]
        %v660 = vld [vmem:[%s1 + $0x190] sm:$0xf]
        %v661 = vld [vmem:[%s1 + $0x194] sm:$0xf]
        %v662 = vld [vmem:[%s1 + $0x198] sm:$0xf]
        %v663 = vld [vmem:[%s1 + $0x19c] sm:$0xf]
        %v664 = vld [vmem:[%s1 + $0x1a0] sm:$0xf]
        %v665 = vld [vmem:[%s1 + $0x1a4] sm:$0xf]
        %v666 = vld [vmem:[%s1 + $0x1a8] sm:$0xf]
        %v667 = vld [vmem:[%s1 + $0x1ac] sm:$0xf]
        %v668 = vld [vmem:[%s1 + $0x1b0] sm:$0xf]
        %v669 = vld [vmem:[%s1 + $0x1b4] sm:$0xf]
        %v670 = vld [vmem:[%s1 + $0x1b8] sm:$0xf]
        %v671 = vld [vmem:[%s1 + $0x1bc] sm:$0xf]
        %v672 = vld [vmem:[%s1 + $0x1c0] sm:$0xf]
        %v673 = vld [vmem:[%s1 + $0x1c4] sm:$0xf]
        %v674 = vld [vmem:[%s1 + $0x1c8] sm:$0xf]
        %v675 = vld [vmem:[%s1 + $0x1cc] sm:$0xf]
        %v676 = vld [vmem:[%s1 + $0x1d0] sm:$0xf]
        %v677 = vld [vmem:[%s1 + $0x1d4] sm:$0xf]
        %v678 = vld [vmem:[%s1 + $0x1d8] sm:$0xf]
        %v679 = vld [vmem:[%s1 + $0x1dc] sm:$0xf]
        %v680 = vld [vmem:[%s1 + $0x1e0] sm:$0xf]
        %v681 = vld [vmem:[%s1 + $0x1e4] sm:$0xf]
        %v682 = vld [vmem:[%s1 + $0x1e8] sm:$0xf]
        %v683 = vld [vmem:[%s1 + $0x1ec] sm:$0xf]
        %v684 = vld [vmem:[%s1 + $0x1f0] sm:$0xf]
        %v685 = vld [vmem:[%s1 + $0x1f4] sm:$0xf]
        %v686 = vld [vmem:[%s1 + $0x1f8] sm:$0xf]
        %v687 = vld [vmem:[%s1 + $0x1fc] sm:$0xf]
        %v688 = vld [vmem:[%s1 + $0x200] sm:$0xf]
        %v689 = vld [vmem:[%s1 + $0x204] sm:$0xf]
        %v690 = vld [vmem:[%s1 + $0x208] sm:$0xf]
        %v691 = vld [vmem:[%s1 + $0x20c] sm:$0xf]
        %v692 = vld [vmem:[%s1 + $0x210] sm:$0xf]
        %v693 = vld [vmem:[%s1 + $0x214] sm:$0xf]
        %v694 = vld [vmem:[%s1 + $0x218] sm:$0xf]
        %v695 = vld [vmem:[%s1 + $0x21c] sm:$0xf]
        %v696 = vld [vmem:[%s1 + $0x220] sm:$0xf]
        %v697 = vld [vmem:[%s1 + $0x224] sm:$0xf]
        %v698 = vld [vmem:[%s1 + $0x228] sm:$0xf]
        %v699 = vld [vmem:[%s1 + $0x22c] sm:$0xf]
        %v700 = vld [vmem:[%s1 + $0x230] sm:$0xf]
        %v701 = vld [vmem:[%s1 + $0x234] sm:$0xf]
        %v702 = vld [vmem:[%s1 + $0x238] sm:$0xf]
        %v703 = vld [vmem:[%s1 + $0x23c] sm:$0xf]
        %v704 = vld [vmem:[%s1 + $0x240] sm:$0xf]
        %v705 = vld [vmem:[%s1 + $0x244] sm:$0xf]
        %v706 = vld [vmem:[%s1 + $0x248] sm:$0xf]
        %v707 = vld [vmem:[%s1 + $0x24c] sm:$0xf]
        %v708 = vld [vmem:[%s1 + $0x250] sm:$0xf]
        %v709 = vld [vmem:[%s1 + $0x254] sm:$0xf]
        %v710 = vld [vmem:[%s1 + $0x258] sm:$0xf]
        %v711 = vld [vmem:[%s1 + $0x25c] sm:$0xf]
        %v712 = vld [vmem:[%s1 + $0x260] sm:$0xf]
        %v713 = vld [vmem:[%s1 + $0x264] sm:$0xf]
        %v714 = vld [vmem:[%s1 + $0x268] sm:$0xf]
        %v715 = vld [vmem:[%s1 + $0x26c] sm:$0xf]
        %v716 = vld [vmem:[%s1 + $0x270] sm:$0xf]
        %v717 = vld [vmem:[%s1 + $0x274] sm:$0xf]
        %v718 = vld [vmem:[%s1 + $0x278] sm:$0xf]
        %v719 = vld [vmem:[%s1 + $0x27c] sm:$0xf]
        %v720 = vld [vmem:[%s1 + $0x280] sm:$0xf]
        %v721 = vld [vmem:[%s1 + $0x284] sm:$0xf]
        %v722 = vld [vmem:[%s1 + $0x288] sm:$0xf]
        %v723 = vld [vmem:[%s1 + $0x28c] sm:$0xf]
        %v724 = vld [vmem:[%s1 + $0x290] sm:$0xf]
        %v725 = vld [vmem:[%s1 + $0x294] sm:$0xf]
        %v726 = vld [vmem:[%s1 + $0x298] sm:$0xf]
        %v727 = vld [vmem:[%s1 + $0x29c] sm:$0xf]
        %v728 = vld [vmem:[%s1 + $0x2a0] sm:$0xf]
        %v729 = vld [vmem:[%s1 + $0x2a4] sm:$0xf]
        %v730 = vld [vmem:[%s1 + $0x2a8] sm:$0xf]
        %v731 = vld [vmem:[%s1 + $0x2ac] sm:$0xf]
        %v732 = vld [vmem:[%s1 + $0x2b0] sm:$0xf]
        %v733 = vld [vmem:[%s1 + $0x2b4] sm:$0xf]
        %v734 = vld [vmem:[%s1 + $0x2b8] sm:$0xf]
        %v735 = vld [vmem:[%s1 + $0x2bc] sm:$0xf]
        %v736 = vld [vmem:[%s1 + $0x2c0] sm:$0xf]
        %v737 = vld [vmem:[%s1 + $0x2c4] sm:$0xf]
        %v738 = vld [vmem:[%s1 + $0x2c8] sm:$0xf]
        %v739 = vld [vmem:[%s1 + $0x2cc] sm:$0xf]
        %v740 = vld [vmem:[%s1 + $0x2d0] sm:$0xf]
        %v741 = vld [vmem:[%s1 + $0x2d4] sm:$0xf]
        %v742 = vld [vmem:[%s1 + $0x2d8] sm:$0xf]
        %v743 = vld [vmem:[%s1 + $0x2dc] sm:$0xf]
        %v744 = vld [vmem:[%s1 + $0x2e0] sm:$0xf]
        %v745 = vld [vmem:[%s1 + $0x2e4] sm:$0xf]
        %v746 = vld [vmem:[%s1 + $0x2e8] sm:$0xf]
        %v747 = vld [vmem:[%s1 + $0x2ec] sm:$0xf]
        %v748 = vld [vmem:[%s1 + $0x2f0] sm:$0xf]
        %v749 = vld [vmem:[%s1 + $0x2f4] sm:$0xf]
        %v750 = vld [vmem:[%s1 + $0x2f8] sm:$0xf]
        %v751 = vld [vmem:[%s1 + $0x2fc] sm:$0xf]
        %v752 = vld [vmem:[%s1 + $0x300] sm:$0xf]
        %v753 = vld [vmem:[%s1 + $0x304] sm:$0xf]
        %v754 = vld [vmem:[%s1 + $0x308] sm:$0xf]
        %v755 = vld [vmem:[%s1 + $0x30c] sm:$0xf]
        %v756 = vld [vmem:[%s1 + $0x310] sm:$0xf]
        %v757 = vld [vmem:[%s1 + $0x314] sm:$0xf]
        %v758 = vld [vmem:[%s1 + $0x318] sm:$0xf]
        %v759 = vld [vmem:[%s1 + $0x31c] sm:$0xf]
        %v760 = vld [vmem:[%s1 + $0x320] sm:$0xf]
        %v761 = vld [vmem:[%s1 + $0x324] sm:$0xf]
        %v762 = vld [vmem:[%s1 + $0x328] sm:$0xf]
        %v763 = vld [vmem:[%s1 + $0x32c] sm:$0xf]
        %v764 = vld [vmem:[%s1 + $0x330] sm:$0xf]
        %v765 = vld [vmem:[%s1 + $0x334] sm:$0xf]
        %v766 = vld [vmem:[%s1 + $0x338] sm:$0xf]
        %v767 = vld [vmem:[%s1 + $0x33c] sm:$0xf]
        %v768 = vld [vmem:[%s1 + $0x340] sm:$0xf]
        %v769 = vld [vmem:[%s1 + $0x344] sm:$0xf]
        %v770 = vld [vmem:[%s1 + $0x348] sm:$0xf]
        %v771 = vld [vmem:[%s1 + $0x34c] sm:$0xf]
        %v772 = vld [vmem:[%s1 + $0x350] sm:$0xf]
        %v773 = vld [vmem:[%s1 + $0x354] sm:$0xf]
        %v774 = vld [vmem:[%s1 + $0x358] sm:$0xf]
        %v775 = vld [vmem:[%s1 + $0x35c] sm:$0xf]
        %v776 = vld [vmem:[%s1 + $0x360] sm:$0xf]
        %v777 = vld [vmem:[%s1 + $0x364] sm:$0xf]
        %v778 = vld [vmem:[%s1 + $0x368] sm:$0xf]
        %v779 = vld [vmem:[%s1 + $0x36c] sm:$0xf]
        %v780 = vld [vmem:[%s1 + $0x370] sm:$0xf]
        %v781 = vld [vmem:[%s1 + $0x374] sm:$0xf]
        %v782 = vld [vmem:[%s1 + $0x378] sm:$0xf]
        %v783 = vld [vmem:[%s1 + $0x37c] sm:$0xf]
        %v784 = vld [vmem:[%s1 + $0x380] sm:$0xf]
        %v785 = vld [vmem:[%s1 + $0x384] sm:$0xf]
        %v786 = vld [vmem:[%s1 + $0x388] sm:$0xf]
        %v787 = vld [vmem:[%s1 + $0x38c] sm:$0xf]
        %v788 = vld [vmem:[%s1 + $0x390] sm:$0xf]
        %v789 = vld [vmem:[%s1 + $0x394] sm:$0xf]
        %v790 = vld [vmem:[%s1 + $0x398] sm:$0xf]
        %v791 = vld [vmem:[%s1 + $0x39c] sm:$0xf]
        %v792 = vld [vmem:[%s1 + $0x3a0] sm:$0xf]
        %v793 = vld [vmem:[%s1 + $0x3a4] sm:$0xf]
        %v794 = vld [vmem:[%s1 + $0x3a8] sm:$0xf]
        %v795 = vld [vmem:[%s1 + $0x3ac] sm:$0xf]
        %v796 = vld [vmem:[%s1 + $0x3b0] sm:$0xf]
        %v797 = vld [vmem:[%s1 + $0x3b4] sm:$0xf]
        %v798 = vld [vmem:[%s1 + $0x3b8] sm:$0xf]
        %v799 = vld [vmem:[%s1 + $0x3bc] sm:$0xf]
        %v800 = vld [vmem:[%s1 + $0x3c0] sm:$0xf]
        %v801 = vld [vmem:[%s1 + $0x3c4] sm:$0xf]
        %v802 = vld [vmem:[%s1 + $0x3c8] sm:$0xf]
        %v803 = vld [vmem:[%s1 + $0x3cc] sm:$0xf]
        %v804 = vld [vmem:[%s1 + $0x3d0] sm:$0xf]
        %v805 = vld [vmem:[%s1 + $0x3d4] sm:$0xf]
        %v806 = vld [vmem:[%s1 + $0x3d8] sm:$0xf]
        %v807 = vld [vmem:[%s1 + $0x3dc] sm:$0xf]
        %v808 = vld [vmem:[%s1 + $0x3e0] sm:$0xf]
        %v809 = vld [vmem:[%s1 + $0x3e4] sm:$0xf]
        %v810 = vld [vmem:[%s1 + $0x3e8] sm:$0xf]
        %v811 = vld [vmem:[%s1 + $0x3ec] sm:$0xf]
        %v812 = vld [vmem:[%s1 + $0x3f0] sm:$0xf]
        %v813 = vld [vmem:[%s1 + $0x3f4] sm:$0xf]
        %v814 = vld [vmem:[%s1 + $0x3f8] sm:$0xf]
        %v815 = vld [vmem:[%s1 + $0x3fc] sm:$0xf]
        %v816 = vld [vmem:[%s1 + $0x400] sm:$0xf]
        %v817 = vld [vmem:[%s1 + $0x404] sm:$0xf]
        %v818 = vld [vmem:[%s1 + $0x408] sm:$0xf]
        %v819 = vld [vmem:[%s1 + $0x40c] sm:$0xf]
        %v820 = vld [vmem:[%s1 + $0x410] sm:$0xf]
        %v821 = vld [vmem:[%s1 + $0x414] sm:$0xf]
        %v822 = vld [vmem:[%s1 + $0x418] sm:$0xf]
        %v823 = vld [vmem:[%s1 + $0x41c] sm:$0xf]
        %v824 = vld [vmem:[%s1 + $0x420] sm:$0xf]
        %v825 = vld [vmem:[%s1 + $0x424] sm:$0xf]
        %v826 = vld [vmem:[%s1 + $0x428] sm:$0xf]
        %v827 = vld [vmem:[%s1 + $0x42c] sm:$0xf]
        %v828 = vld [vmem:[%s1 + $0x430] sm:$0xf]
        %v829 = vld [vmem:[%s1 + $0x434] sm:$0xf]
        %v830 = vld [vmem:[%s1 + $0x438] sm:$0xf]
        %v831 = vld [vmem:[%s1 + $0x43c] sm:$0xf]
        %v832 = vld [vmem:[%s1 + $0x440] sm:$0xf]
        %v833 = vld [vmem:[%s1 + $0x444] sm:$0xf]
        %v834 = vld [vmem:[%s1 + $0x448] sm:$0xf]
        %v835 = vld [vmem:[%s1 + $0x44c] sm:$0xf]
        %v836 = vld [vmem:[%s1 + $0x450] sm:$0xf]
        %v837 = vld [vmem:[%s1 + $0x454] sm:$0xf]
        %v838 = vld [vmem:[%s1 + $0x458] sm:$0xf]
        %v839 = vld [vmem:[%s1 + $0x45c] sm:$0xf]
        %v840 = vld [vmem:[%s1 + $0x460] sm:$0xf]
        %v841 = vld [vmem:[%s1 + $0x464] sm:$0xf]
        %v842 = vld [vmem:[%s1 + $0x468] sm:$0xf]
        %v843 = vld [vmem:[%s1 + $0x46c] sm:$0xf]
        %v844 = vld [vmem:[%s1 + $0x470] sm:$0xf]
        %v845 = vld [vmem:[%s1 + $0x474] sm:$0xf]
        %v846 = vld [vmem:[%s1 + $0x478] sm:$0xf]
        %v847 = vld [vmem:[%s1 + $0x47c] sm:$0xf]
        %v848 = vld [vmem:[%s1 + $0x480] sm:$0xf]
        %v849 = vld [vmem:[%s1 + $0x484] sm:$0xf]
        %v850 = vld [vmem:[%s1 + $0x488] sm:$0xf]
        %v851 = vld [vmem:[%s1 + $0x48c] sm:$0xf]
        %v852 = vld [vmem:[%s1 + $0x490] sm:$0xf]
        %v853 = vld [vmem:[%s1 + $0x494] sm:$0xf]
        %v854 = vld [vmem:[%s1 + $0x498] sm:$0xf]
        %v855 = vld [vmem:[%s1 + $0x49c] sm:$0xf]
        %v856 = vld [vmem:[%s1 + $0x4a0] sm:$0xf]
        %v857 = vld [vmem:[%s1 + $0x4a4] sm:$0xf]
        %v858 = vld [vmem:[%s1 + $0x4a8] sm:$0xf]
        %v859 = vld [vmem:[%s1 + $0x4ac] sm:$0xf]
        %v860 = vld [vmem:[%s1 + $0x4b0] sm:$0xf]
        %v861 = vld [vmem:[%s1 + $0x4b4] sm:$0xf]
        %v862 = vld [vmem:[%s1 + $0x4b8] sm:$0xf]
        %v863 = vld [vmem:[%s1 + $0x4bc] sm:$0xf]
        %v864 = vld [vmem:[%s1 + $0x4c0] sm:$0xf]
        %v865 = vld [vmem:[%s1 + $0x4c4] sm:$0xf]
        %v866 = vld [vmem:[%s1 + $0x4c8] sm:$0xf]
        %v867 = vld [vmem:[%s1 + $0x4cc] sm:$0xf]
        %v868 = vld [vmem:[%s1 + $0x4d0] sm:$0xf]
        %v869 = vld [vmem:[%s1 + $0x4d4] sm:$0xf]
        %v870 = vld [vmem:[%s1 + $0x4d8] sm:$0xf]
        %v871 = vld [vmem:[%s1 + $0x4dc] sm:$0xf]
        %v872 = vld [vmem:[%s1 + $0x4e0] sm:$0xf]
        %v873 = vld [vmem:[%s1 + $0x4e4] sm:$0xf]
        %v874 = vld [vmem:[%s1 + $0x4e8] sm:$0xf]
        %v875 = vld [vmem:[%s1 + $0x4ec] sm:$0xf]
        %v876 = vld [vmem:[%s1 + $0x4f0] sm:$0xf]
        %v877 = vld [vmem:[%s1 + $0x4f4] sm:$0xf]
        %v878 = vld [vmem:[%s1 + $0x4f8] sm:$0xf]
        %v879 = vld [vmem:[%s1 + $0x4fc] sm:$0xf]
        %v880 = vld [vmem:[%s1 + $0x500] sm:$0xf]
        %v881 = vld [vmem:[%s1 + $0x504] sm:$0xf]
        %v882 = vld [vmem:[%s1 + $0x508] sm:$0xf]
        %v883 = vld [vmem:[%s1 + $0x50c] sm:$0xf]
        %v884 = vld [vmem:[%s1 + $0x510] sm:$0xf]
        %v885 = vld [vmem:[%s1 + $0x514] sm:$0xf]
        %v886 = vld [vmem:[%s1 + $0x518] sm:$0xf]
        %v887 = vld [vmem:[%s1 + $0x51c] sm:$0xf]
        %v888 = vld [vmem:[%s1 + $0x520] sm:$0xf]
        %v889 = vld [vmem:[%s1 + $0x524] sm:$0xf]
        %v890 = vld [vmem:[%s1 + $0x528] sm:$0xf]
        %v891 = vld [vmem:[%s1 + $0x52c] sm:$0xf]
        %v892 = vld [vmem:[%s1 + $0x530] sm:$0xf]
        %v893 = vld [vmem:[%s1 + $0x534] sm:$0xf]
        %v894 = vld [vmem:[%s1 + $0x538] sm:$0xf]
        %v895 = vld [vmem:[%s1 + $0x53c] sm:$0xf]
        %v896 = vld [vmem:[%s1 + $0x540] sm:$0xf]
        %v897 = vld [vmem:[%s1 + $0x544] sm:$0xf]
        %v898 = vld [vmem:[%s1 + $0x548] sm:$0xf]
        %v899 = vld [vmem:[%s1 + $0x54c] sm:$0xf]
        %v900 = vld [vmem:[%s1 + $0x550] sm:$0xf]
        %v901 = vld [vmem:[%s1 + $0x554] sm:$0xf]
        %v902 = vld [vmem:[%s1 + $0x558] sm:$0xf]
        %v903 = vld [vmem:[%s1 + $0x55c] sm:$0xf]
        %v904 = vld [vmem:[%s1 + $0x560] sm:$0xf]
        %v905 = vld [vmem:[%s1 + $0x564] sm:$0xf]
        %v906 = vld [vmem:[%s1 + $0x568] sm:$0xf]
        %v907 = vld [vmem:[%s1 + $0x56c] sm:$0xf]
        %v908 = vld [vmem:[%s1 + $0x570] sm:$0xf]
        %v909 = vld [vmem:[%s1 + $0x574] sm:$0xf]
        %v910 = vld [vmem:[%s1 + $0x578] sm:$0xf]
        %v911 = vld [vmem:[%s1 + $0x57c] sm:$0xf]
        %v912 = vld [vmem:[%s1 + $0x580] sm:$0xf]
        %v913 = vld [vmem:[%s1 + $0x584] sm:$0xf]
        %v914 = vld [vmem:[%s1 + $0x588] sm:$0xf]
        %v915 = vld [vmem:[%s1 + $0x58c] sm:$0xf]
        %v916 = vld [vmem:[%s1 + $0x590] sm:$0xf]
        %v917 = vld [vmem:[%s1 + $0x594] sm:$0xf]
        %v918 = vld [vmem:[%s1 + $0x598] sm:$0xf]
        %v919 = vld [vmem:[%s1 + $0x59c] sm:$0xf]
        %v920 = vld [vmem:[%s1 + $0x5a0] sm:$0xf]
        %v921 = vld [vmem:[%s1 + $0x5a4] sm:$0xf]
        %v922 = vld [vmem:[%s1 + $0x5a8] sm:$0xf]
        %v923 = vld [vmem:[%s1 + $0x5ac] sm:$0xf]
        %v924 = vld [vmem:[%s1 + $0x5b0] sm:$0xf]
        %v925 = vld [vmem:[%s1 + $0x5b4] sm:$0xf]
        %v926 = vld [vmem:[%s1 + $0x5b8] sm:$0xf]
        %v927 = vld [vmem:[%s1 + $0x5bc] sm:$0xf]
        %v928 = vld [vmem:[%s1 + $0x5c0] sm:$0xf]
        %v929 = vld [vmem:[%s1 + $0x5c4] sm:$0xf]
        %v930 = vld [vmem:[%s1 + $0x5c8] sm:$0xf]
        %v931 = vld [vmem:[%s1 + $0x5cc] sm:$0xf]
        %v932 = vld [vmem:[%s1 + $0x5d0] sm:$0xf]
        %v933 = vld [vmem:[%s1 + $0x5d4] sm:$0xf]
        %v934 = vld [vmem:[%s1 + $0x5d8] sm:$0xf]
        %v935 = vld [vmem:[%s1 + $0x5dc] sm:$0xf]
        %v936 = vld [vmem:[%s1 + $0x5e0] sm:$0xf]
        %v937 = vld [vmem:[%s1 + $0x5e4] sm:$0xf]
        %v938 = vld [vmem:[%s1 + $0x5e8] sm:$0xf]
        %v939 = vld [vmem:[%s1 + $0x5ec] sm:$0xf]
        %v940 = vld [vmem:[%s1 + $0x5f0] sm:$0xf]
        %v941 = vld [vmem:[%s1 + $0x5f4] sm:$0xf]
        %v942 = vld [vmem:[%s1 + $0x5f8] sm:$0xf]
        %v943 = vld [vmem:[%s1 + $0x5fc] sm:$0xf]
        %v944 = vld [vmem:[%s1 + $0x600] sm:$0xf]
        %v945 = vld [vmem:[%s1 + $0x604] sm:$0xf]
        %v946 = vld [vmem:[%s1 + $0x608] sm:$0xf]
        %v947 = vld [vmem:[%s1 + $0x60c] sm:$0xf]
        %v948 = vld [vmem:[%s1 + $0x610] sm:$0xf]
        %v949 = vld [vmem:[%s1 + $0x614] sm:$0xf]
        %v950 = vld [vmem:[%s1 + $0x618] sm:$0xf]
        %v951 = vld [vmem:[%s1 + $0x61c] sm:$0xf]
        %v952 = vld [vmem:[%s1 + $0x620] sm:$0xf]
        %v953 = vld [vmem:[%s1 + $0x624] sm:$0xf]
        %v954 = vld [vmem:[%s1 + $0x628] sm:$0xf]
        %v955 = vld [vmem:[%s1 + $0x62c] sm:$0xf]
        %v956 = vld [vmem:[%s1 + $0x630] sm:$0xf]
        %v957 = vld [vmem:[%s1 + $0x634] sm:$0xf]
        %v958 = vld [vmem:[%s1 + $0x638] sm:$0xf]
        %v959 = vld [vmem:[%s1 + $0x63c] sm:$0xf]
        %v960 = vld [vmem:[%s1 + $0x640] sm:$0xf]
        %v961 = vld [vmem:[%s1 + $0x644] sm:$0xf]
        %v962 = vld [vmem:[%s1 + $0x648] sm:$0xf]
        %v963 = vld [vmem:[%s1 + $0x64c] sm:$0xf]
        %v964 = vld [vmem:[%s1 + $0x650] sm:$0xf]
        %v965 = vld [vmem:[%s1 + $0x654] sm:$0xf]
        %v966 = vld [vmem:[%s1 + $0x658] sm:$0xf]
        %v967 = vld [vmem:[%s1 + $0x65c] sm:$0xf]
        %v968 = vld [vmem:[%s1 + $0x660] sm:$0xf]
        %v969 = vld [vmem:[%s1 + $0x664] sm:$0xf]
        %v970 = vld [vmem:[%s1 + $0x668] sm:$0xf]
        %v971 = vld [vmem:[%s1 + $0x66c] sm:$0xf]
        %v972 = vld [vmem:[%s1 + $0x670] sm:$0xf]
        %v973 = vld [vmem:[%s1 + $0x674] sm:$0xf]
        %v974 = vld [vmem:[%s1 + $0x678] sm:$0xf]
        %v975 = vld [vmem:[%s1 + $0x67c] sm:$0xf]
        %v976 = vld [vmem:[%s1 + $0x680] sm:$0xf]
        %v977 = vld [vmem:[%s1 + $0x684] sm:$0xf]
        %v978 = vld [vmem:[%s1 + $0x688] sm:$0xf]
        %v979 = vld [vmem:[%s1 + $0x68c] sm:$0xf]
        %v980 = vld [vmem:[%s1 + $0x690] sm:$0xf]
        %v981 = vld [vmem:[%s1 + $0x694] sm:$0xf]
        %v982 = vld [vmem:[%s1 + $0x698] sm:$0xf]
        %v983 = vld [vmem:[%s1 + $0x69c] sm:$0xf]
        %v984 = vld [vmem:[%s1 + $0x6a0] sm:$0xf]
        %v985 = vld [vmem:[%s1 + $0x6a4] sm:$0xf]
        %v986 = vld [vmem:[%s1 + $0x6a8] sm:$0xf]
        %v987 = vld [vmem:[%s1 + $0x6ac] sm:$0xf]
        %v988 = vld [vmem:[%s1 + $0x6b0] sm:$0xf]
        %v989 = vld [vmem:[%s1 + $0x6b4] sm:$0xf]
        %v990 = vld [vmem:[%s1 + $0x6b8] sm:$0xf]
        %v991 = vld [vmem:[%s1 + $0x6bc] sm:$0xf]
        %v992 = vld [vmem:[%s1 + $0x6c0] sm:$0xf]
        %v993 = vld [vmem:[%s1 + $0x6c4] sm:$0xf]
        %v994 = vld [vmem:[%s1 + $0x6c8] sm:$0xf]
        %v995 = vld [vmem:[%s1 + $0x6cc] sm:$0xf]
        %v996 = vld [vmem:[%s1 + $0x6d0] sm:$0xf]
        %v997 = vld [vmem:[%s1 + $0x6d4] sm:$0xf]
        %v998 = vld [vmem:[%s1 + $0x6d8] sm:$0xf]
        %v999 = vld [vmem:[%s1 + $0x6dc] sm:$0xf]
        %v1000 = vld [vmem:[%s1 + $0x6e0] sm:$0xf]
        %v1001 = vld [vmem:[%s1 + $0x6e4] sm:$0xf]
        %v1002 = vld [vmem:[%s1 + $0x6e8] sm:$0xf]
        %v1003 = vld [vmem:[%s1 + $0x6ec] sm:$0xf]
        %v1004 = vld [vmem:[%s1 + $0x6f0] sm:$0xf]
        %v1005 = vld [vmem:[%s1 + $0x6f4] sm:$0xf]
        %v1006 = vld [vmem:[%s1 + $0x6f8] sm:$0xf]
        %v1007 = vld [vmem:[%s1 + $0x6fc] sm:$0xf]
        %v1008 = vld [vmem:[%s1 + $0x700] sm:$0xf]
        %v1009 = vld [vmem:[%s1 + $0x704] sm:$0xf]
        %v1010 = vld [vmem:[%s1 + $0x708] sm:$0xf]
        %v1011 = vld [vmem:[%s1 + $0x70c] sm:$0xf]
        %v1012 = vld [vmem:[%s1 + $0x710] sm:$0xf]
        %v1013 = vld [vmem:[%s1 + $0x714] sm:$0xf]
        %v1014 = vld [vmem:[%s1 + $0x718] sm:$0xf]
        %v1015 = vld [vmem:[%s1 + $0x71c] sm:$0xf]
        %v1016 = vld [vmem:[%s1 + $0x720] sm:$0xf]
        %v1017 = vld [vmem:[%s1 + $0x724] sm:$0xf]
        %v1018 = vld [vmem:[%s1 + $0x728] sm:$0xf]
        %v1019 = vld [vmem:[%s1 + $0x72c] sm:$0xf]
        %v1020 = vld [vmem:[%s1 + $0x730] sm:$0xf]
        %v1021 = vld [vmem:[%s1 + $0x734] sm:$0xf]
        %v1022 = vld [vmem:[%s1 + $0x738] sm:$0xf]
        %v1023 = vld [vmem:[%s1 + $0x73c] sm:$0xf]
        %v1024 = vld [vmem:[%s1 + $0x740] sm:$0xf]
        %v1025 = vld [vmem:[%s1 + $0x744] sm:$0xf]
        %v1026 = vld [vmem:[%s1 + $0x748] sm:$0xf]
        %v1027 = vld [vmem:[%s1 + $0x74c] sm:$0xf]
        %v1028 = vld [vmem:[%s1 + $0x750] sm:$0xf]
        %v1029 = vld [vmem:[%s1 + $0x754] sm:$0xf]
        %v1030 = vld [vmem:[%s1 + $0x758] sm:$0xf]
        %v1031 = vld [vmem:[%s1 + $0x75c] sm:$0xf]
        %v1032 = vld [vmem:[%s1 + $0x760] sm:$0xf]
        %v1033 = vld [vmem:[%s1 + $0x764] sm:$0xf]
        %v1034 = vld [vmem:[%s1 + $0x768] sm:$0xf]
        %v1035 = vld [vmem:[%s1 + $0x76c] sm:$0xf]
        %v1036 = vld [vmem:[%s1 + $0x770] sm:$0xf]
        %v1037 = vld [vmem:[%s1 + $0x774] sm:$0xf]
        %v1038 = vld [vmem:[%s1 + $0x778] sm:$0xf]
        %v1039 = vld [vmem:[%s1 + $0x77c] sm:$0xf]
        %v1040 = vld [vmem:[%s1 + $0x780] sm:$0xf]
        %v1041 = vld [vmem:[%s1 + $0x784] sm:$0xf]
        %v1042 = vld [vmem:[%s1 + $0x788] sm:$0xf]
        %v1043 = vld [vmem:[%s1 + $0x78c] sm:$0xf]
        %v1044 = vld [vmem:[%s1 + $0x790] sm:$0xf]
        %v1045 = vld [vmem:[%s1 + $0x794] sm:$0xf]
        %v1046 = vld [vmem:[%s1 + $0x798] sm:$0xf]
        %v1047 = vld [vmem:[%s1 + $0x79c] sm:$0xf]
        %v1048 = vld [vmem:[%s1 + $0x7a0] sm:$0xf]
        %v1049 = vld [vmem:[%s1 + $0x7a4] sm:$0xf]
        %v1050 = vld [vmem:[%s1 + $0x7a8] sm:$0xf]
        %v1051 = vld [vmem:[%s1 + $0x7ac] sm:$0xf]
        %v1052 = vld [vmem:[%s1 + $0x7b0] sm:$0xf]
        %v1053 = vld [vmem:[%s1 + $0x7b4] sm:$0xf]
        %v1054 = vld [vmem:[%s1 + $0x7b8] sm:$0xf]
        %v1055 = vld [vmem:[%s1 + $0x7bc] sm:$0xf]
        %v1056 = vld [vmem:[%s1 + $0x7c0] sm:$0xf]
        %v1057 = vld [vmem:[%s1 + $0x7c4] sm:$0xf]
        %v1058 = vld [vmem:[%s1 + $0x7c8] sm:$0xf]
        %v1059 = vld [vmem:[%s1 + $0x7cc] sm:$0xf]
        %v1060 = vld [vmem:[%s1 + $0x7d0] sm:$0xf]
        %v1061 = vld [vmem:[%s1 + $0x7d4] sm:$0xf]
        %v1062 = vld [vmem:[%s1 + $0x7d8] sm:$0xf]
        %v1063 = vld [vmem:[%s1 + $0x7dc] sm:$0xf]
        %v1064 = vld [vmem:[%s1 + $0x7e0] sm:$0xf]
        %v1065 = vld [vmem:[%s1 + $0x7e4] sm:$0xf]
        %v1066 = vld [vmem:[%s1 + $0x7e8] sm:$0xf]
        %v1067 = vld [vmem:[%s1 + $0x7ec] sm:$0xf]
        %v1068 = vld [vmem:[%s1 + $0x7f0] sm:$0xf]
        %v1069 = vld [vmem:[%s1 + $0x7f4] sm:$0xf]
        %v1070 = vld [vmem:[%s1 + $0x7f8] sm:$0xf]
        %v1071 = vld [vmem:[%s1 + $0x7fc] sm:$0xf]
        %v1072 = vld [vmem:[#allocation5] sm:$0x1]
        %v1074 = vlaneseq
        %v1075 = vshrl.u32 %v1074, 7
        %v1076 = vsub.s32 0, %v1075
        %v1077 = vrot.slane %v1072, %v1076
        %v1591 = vunpack.c.l.b16 %v560
        %v1592 = vunpack.c.l.b16 %v561
        %v1593 = vunpack.c.l.b16 %v562
        %v1594 = vunpack.c.l.b16 %v563
        %v1595 = vunpack.c.l.b16 %v564
        %v1596 = vunpack.c.l.b16 %v565
        %v1597 = vunpack.c.l.b16 %v566
        %v1598 = vunpack.c.l.b16 %v567
        %v1599 = vunpack.c.l.b16 %v568
        %v1600 = vunpack.c.l.b16 %v569
        %v1601 = vunpack.c.l.b16 %v570
        %v1602 = vunpack.c.l.b16 %v571
        %v1603 = vunpack.c.l.b16 %v572
        %v1604 = vunpack.c.l.b16 %v573
        %v1605 = vunpack.c.l.b16 %v574
        %v1606 = vunpack.c.l.b16 %v575
        %v1607 = vunpack.c.l.b16 %v576
        %v1608 = vunpack.c.l.b16 %v577
        %v1609 = vunpack.c.l.b16 %v578
        %v1610 = vunpack.c.l.b16 %v579
        %v1611 = vunpack.c.l.b16 %v580
        %v1612 = vunpack.c.l.b16 %v581
        %v1613 = vunpack.c.l.b16 %v582
        %v1614 = vunpack.c.l.b16 %v583
        %v1615 = vunpack.c.l.b16 %v584
        %v1616 = vunpack.c.l.b16 %v585
        %v1617 = vunpack.c.l.b16 %v586
        %v1618 = vunpack.c.l.b16 %v587
        %v1619 = vunpack.c.l.b16 %v588
        %v1620 = vunpack.c.l.b16 %v589
        %v1621 = vunpack.c.l.b16 %v590
        %v1622 = vunpack.c.l.b16 %v591
        %v1623 = vunpack.c.l.b16 %v592
        %v1624 = vunpack.c.l.b16 %v593
        %v1625 = vunpack.c.l.b16 %v594
        %v1626 = vunpack.c.l.b16 %v595
        %v1627 = vunpack.c.l.b16 %v596
        %v1628 = vunpack.c.l.b16 %v597
        %v1629 = vunpack.c.l.b16 %v598
        %v1630 = vunpack.c.l.b16 %v599
        %v1631 = vunpack.c.l.b16 %v600
        %v1632 = vunpack.c.l.b16 %v601
        %v1633 = vunpack.c.l.b16 %v602
        %v1634 = vunpack.c.l.b16 %v603
        %v1635 = vunpack.c.l.b16 %v604
        %v1636 = vunpack.c.l.b16 %v605
        %v1637 = vunpack.c.l.b16 %v606
        %v1638 = vunpack.c.l.b16 %v607
        %v1639 = vunpack.c.l.b16 %v608
        %v1640 = vunpack.c.l.b16 %v609
        %v1641 = vunpack.c.l.b16 %v610
        %v1642 = vunpack.c.l.b16 %v611
        %v1643 = vunpack.c.l.b16 %v612
        %v1644 = vunpack.c.l.b16 %v613
        %v1645 = vunpack.c.l.b16 %v614
        %v1646 = vunpack.c.l.b16 %v615
        %v1647 = vunpack.c.l.b16 %v616
        %v1648 = vunpack.c.l.b16 %v617
        %v1649 = vunpack.c.l.b16 %v618
        %v1650 = vunpack.c.l.b16 %v619
        %v1651 = vunpack.c.l.b16 %v620
        %v1652 = vunpack.c.l.b16 %v621
        %v1653 = vunpack.c.l.b16 %v622
        %v1654 = vunpack.c.l.b16 %v623
        %v1655 = vunpack.c.l.b16 %v624
        %v1656 = vunpack.c.l.b16 %v625
        %v1657 = vunpack.c.l.b16 %v626
        %v1658 = vunpack.c.l.b16 %v627
        %v1659 = vunpack.c.l.b16 %v628
        %v1660 = vunpack.c.l.b16 %v629
        %v1661 = vunpack.c.l.b16 %v630
        %v1662 = vunpack.c.l.b16 %v631
        %v1663 = vunpack.c.l.b16 %v632
        %v1664 = vunpack.c.l.b16 %v633
        %v1665 = vunpack.c.l.b16 %v634
        %v1666 = vunpack.c.l.b16 %v635
        %v1667 = vunpack.c.l.b16 %v636
        %v1668 = vunpack.c.l.b16 %v637
        %v1669 = vunpack.c.l.b16 %v638
        %v1670 = vunpack.c.l.b16 %v639
        %v1671 = vunpack.c.l.b16 %v640
        %v1672 = vunpack.c.l.b16 %v641
        %v1673 = vunpack.c.l.b16 %v642
        %v1674 = vunpack.c.l.b16 %v643
        %v1675 = vunpack.c.l.b16 %v644
        %v1676 = vunpack.c.l.b16 %v645
        %v1677 = vunpack.c.l.b16 %v646
        %v1678 = vunpack.c.l.b16 %v647
        %v1679 = vunpack.c.l.b16 %v648
        %v1680 = vunpack.c.l.b16 %v649
        %v1681 = vunpack.c.l.b16 %v650
        %v1682 = vunpack.c.l.b16 %v651
        %v1683 = vunpack.c.l.b16 %v652
        %v1684 = vunpack.c.l.b16 %v653
        %v1685 = vunpack.c.l.b16 %v654
        %v1686 = vunpack.c.l.b16 %v655
        %v1687 = vunpack.c.l.b16 %v656
        %v1688 = vunpack.c.l.b16 %v657
        %v1689 = vunpack.c.l.b16 %v658
        %v1690 = vunpack.c.l.b16 %v659
        %v1691 = vunpack.c.l.b16 %v660
        %v1692 = vunpack.c.l.b16 %v661
        %v1693 = vunpack.c.l.b16 %v662
        %v1694 = vunpack.c.l.b16 %v663
        %v1695 = vunpack.c.l.b16 %v664
        %v1696 = vunpack.c.l.b16 %v665
        %v1697 = vunpack.c.l.b16 %v666
        %v1698 = vunpack.c.l.b16 %v667
        %v1699 = vunpack.c.l.b16 %v668
        %v1700 = vunpack.c.l.b16 %v669
        %v1701 = vunpack.c.l.b16 %v670
        %v1702 = vunpack.c.l.b16 %v671
        %v1703 = vunpack.c.l.b16 %v672
        %v1704 = vunpack.c.l.b16 %v673
        %v1705 = vunpack.c.l.b16 %v674
        %v1706 = vunpack.c.l.b16 %v675
        %v1707 = vunpack.c.l.b16 %v676
        %v1708 = vunpack.c.l.b16 %v677
        %v1709 = vunpack.c.l.b16 %v678
        %v1710 = vunpack.c.l.b16 %v679
        %v1711 = vunpack.c.l.b16 %v680
        %v1712 = vunpack.c.l.b16 %v681
        %v1713 = vunpack.c.l.b16 %v682
        %v1714 = vunpack.c.l.b16 %v683
        %v1715 = vunpack.c.l.b16 %v684
        %v1716 = vunpack.c.l.b16 %v685
        %v1717 = vunpack.c.l.b16 %v686
        %v1718 = vunpack.c.l.b16 %v687
        %v1719 = vunpack.c.l.b16 %v688
        %v1720 = vunpack.c.l.b16 %v689
        %v1721 = vunpack.c.l.b16 %v690
        %v1722 = vunpack.c.l.b16 %v691
        %v1723 = vunpack.c.l.b16 %v692
        %v1724 = vunpack.c.l.b16 %v693
        %v1725 = vunpack.c.l.b16 %v694
        %v1726 = vunpack.c.l.b16 %v695
        %v1727 = vunpack.c.l.b16 %v696
        %v1728 = vunpack.c.l.b16 %v697
        %v1729 = vunpack.c.l.b16 %v698
        %v1730 = vunpack.c.l.b16 %v699
        %v1731 = vunpack.c.l.b16 %v700
        %v1732 = vunpack.c.l.b16 %v701
        %v1733 = vunpack.c.l.b16 %v702
        %v1734 = vunpack.c.l.b16 %v703
        %v1735 = vunpack.c.l.b16 %v704
        %v1736 = vunpack.c.l.b16 %v705
        %v1737 = vunpack.c.l.b16 %v706
        %v1738 = vunpack.c.l.b16 %v707
        %v1739 = vunpack.c.l.b16 %v708
        %v1740 = vunpack.c.l.b16 %v709
        %v1741 = vunpack.c.l.b16 %v710
        %v1742 = vunpack.c.l.b16 %v711
        %v1743 = vunpack.c.l.b16 %v712
        %v1744 = vunpack.c.l.b16 %v713
        %v1745 = vunpack.c.l.b16 %v714
        %v1746 = vunpack.c.l.b16 %v715
        %v1747 = vunpack.c.l.b16 %v716
        %v1748 = vunpack.c.l.b16 %v717
        %v1749 = vunpack.c.l.b16 %v718
        %v1750 = vunpack.c.l.b16 %v719
        %v1751 = vunpack.c.l.b16 %v720
        %v1752 = vunpack.c.l.b16 %v721
        %v1753 = vunpack.c.l.b16 %v722
        %v1754 = vunpack.c.l.b16 %v723
        %v1755 = vunpack.c.l.b16 %v724
        %v1756 = vunpack.c.l.b16 %v725
        %v1757 = vunpack.c.l.b16 %v726
        %v1758 = vunpack.c.l.b16 %v727
        %v1759 = vunpack.c.l.b16 %v728
        %v1760 = vunpack.c.l.b16 %v729
        %v1761 = vunpack.c.l.b16 %v730
        %v1762 = vunpack.c.l.b16 %v731
        %v1763 = vunpack.c.l.b16 %v732
        %v1764 = vunpack.c.l.b16 %v733
        %v1765 = vunpack.c.l.b16 %v734
        %v1766 = vunpack.c.l.b16 %v735
        %v1767 = vunpack.c.l.b16 %v736
        %v1768 = vunpack.c.l.b16 %v737
        %v1769 = vunpack.c.l.b16 %v738
        %v1770 = vunpack.c.l.b16 %v739
        %v1771 = vunpack.c.l.b16 %v740
        %v1772 = vunpack.c.l.b16 %v741
        %v1773 = vunpack.c.l.b16 %v742
        %v1774 = vunpack.c.l.b16 %v743
        %v1775 = vunpack.c.l.b16 %v744
        %v1776 = vunpack.c.l.b16 %v745
        %v1777 = vunpack.c.l.b16 %v746
        %v1778 = vunpack.c.l.b16 %v747
        %v1779 = vunpack.c.l.b16 %v748
        %v1780 = vunpack.c.l.b16 %v749
        %v1781 = vunpack.c.l.b16 %v750
        %v1782 = vunpack.c.l.b16 %v751
        %v1783 = vunpack.c.l.b16 %v752
        %v1784 = vunpack.c.l.b16 %v753
        %v1785 = vunpack.c.l.b16 %v754
        %v1786 = vunpack.c.l.b16 %v755
        %v1787 = vunpack.c.l.b16 %v756
        %v1788 = vunpack.c.l.b16 %v757
        %v1789 = vunpack.c.l.b16 %v758
        %v1790 = vunpack.c.l.b16 %v759
        %v1791 = vunpack.c.l.b16 %v760
        %v1792 = vunpack.c.l.b16 %v761
        %v1793 = vunpack.c.l.b16 %v762
        %v1794 = vunpack.c.l.b16 %v763
        %v1795 = vunpack.c.l.b16 %v764
        %v1796 = vunpack.c.l.b16 %v765
        %v1797 = vunpack.c.l.b16 %v766
        %v1798 = vunpack.c.l.b16 %v767
        %v1799 = vunpack.c.l.b16 %v768
        %v1800 = vunpack.c.l.b16 %v769
        %v1801 = vunpack.c.l.b16 %v770
        %v1802 = vunpack.c.l.b16 %v771
        %v1803 = vunpack.c.l.b16 %v772
        %v1804 = vunpack.c.l.b16 %v773
        %v1805 = vunpack.c.l.b16 %v774
        %v1806 = vunpack.c.l.b16 %v775
        %v1807 = vunpack.c.l.b16 %v776
        %v1808 = vunpack.c.l.b16 %v777
        %v1809 = vunpack.c.l.b16 %v778
        %v1810 = vunpack.c.l.b16 %v779
        %v1811 = vunpack.c.l.b16 %v780
        %v1812 = vunpack.c.l.b16 %v781
        %v1813 = vunpack.c.l.b16 %v782
        %v1814 = vunpack.c.l.b16 %v783
        %v1815 = vunpack.c.l.b16 %v784
        %v1816 = vunpack.c.l.b16 %v785
        %v1817 = vunpack.c.l.b16 %v786
        %v1818 = vunpack.c.l.b16 %v787
        %v1819 = vunpack.c.l.b16 %v788
        %v1820 = vunpack.c.l.b16 %v789
        %v1821 = vunpack.c.l.b16 %v790
        %v1822 = vunpack.c.l.b16 %v791
        %v1823 = vunpack.c.l.b16 %v792
        %v1824 = vunpack.c.l.b16 %v793
        %v1825 = vunpack.c.l.b16 %v794
        %v1826 = vunpack.c.l.b16 %v795
        %v1827 = vunpack.c.l.b16 %v796
        %v1828 = vunpack.c.l.b16 %v797
        %v1829 = vunpack.c.l.b16 %v798
        %v1830 = vunpack.c.l.b16 %v799
        %v1831 = vunpack.c.l.b16 %v800
        %v1832 = vunpack.c.l.b16 %v801
        %v1833 = vunpack.c.l.b16 %v802
        %v1834 = vunpack.c.l.b16 %v803
        %v1835 = vunpack.c.l.b16 %v804
        %v1836 = vunpack.c.l.b16 %v805
        %v1837 = vunpack.c.l.b16 %v806
        %v1838 = vunpack.c.l.b16 %v807
        %v1839 = vunpack.c.l.b16 %v808
        %v1840 = vunpack.c.l.b16 %v809
        %v1841 = vunpack.c.l.b16 %v810
        %v1842 = vunpack.c.l.b16 %v811
        %v1843 = vunpack.c.l.b16 %v812
        %v1844 = vunpack.c.l.b16 %v813
        %v1845 = vunpack.c.l.b16 %v814
        %v1846 = vunpack.c.l.b16 %v815
        %v1847 = vunpack.c.l.b16 %v816
        %v1848 = vunpack.c.l.b16 %v817
        %v1849 = vunpack.c.l.b16 %v818
        %v1850 = vunpack.c.l.b16 %v819
        %v1851 = vunpack.c.l.b16 %v820
        %v1852 = vunpack.c.l.b16 %v821
        %v1853 = vunpack.c.l.b16 %v822
        %v1854 = vunpack.c.l.b16 %v823
        %v1855 = vunpack.c.l.b16 %v824
        %v1856 = vunpack.c.l.b16 %v825
        %v1857 = vunpack.c.l.b16 %v826
        %v1858 = vunpack.c.l.b16 %v827
        %v1859 = vunpack.c.l.b16 %v828
        %v1860 = vunpack.c.l.b16 %v829
        %v1861 = vunpack.c.l.b16 %v830
        %v1862 = vunpack.c.l.b16 %v831
        %v1863 = vunpack.c.l.b16 %v832
        %v1864 = vunpack.c.l.b16 %v833
        %v1865 = vunpack.c.l.b16 %v834
        %v1866 = vunpack.c.l.b16 %v835
        %v1867 = vunpack.c.l.b16 %v836
        %v1868 = vunpack.c.l.b16 %v837
        %v1869 = vunpack.c.l.b16 %v838
        %v1870 = vunpack.c.l.b16 %v839
        %v1871 = vunpack.c.l.b16 %v840
        %v1872 = vunpack.c.l.b16 %v841
        %v1873 = vunpack.c.l.b16 %v842
        %v1874 = vunpack.c.l.b16 %v843
        %v1875 = vunpack.c.l.b16 %v844
        %v1876 = vunpack.c.l.b16 %v845
        %v1877 = vunpack.c.l.b16 %v846
        %v1878 = vunpack.c.l.b16 %v847
        %v1879 = vunpack.c.l.b16 %v848
        %v1880 = vunpack.c.l.b16 %v849
        %v1881 = vunpack.c.l.b16 %v850
        %v1882 = vunpack.c.l.b16 %v851
        %v1883 = vunpack.c.l.b16 %v852
        %v1884 = vunpack.c.l.b16 %v853
        %v1885 = vunpack.c.l.b16 %v854
        %v1886 = vunpack.c.l.b16 %v855
        %v1887 = vunpack.c.l.b16 %v856
        %v1888 = vunpack.c.l.b16 %v857
        %v1889 = vunpack.c.l.b16 %v858
        %v1890 = vunpack.c.l.b16 %v859
        %v1891 = vunpack.c.l.b16 %v860
        %v1892 = vunpack.c.l.b16 %v861
        %v1893 = vunpack.c.l.b16 %v862
        %v1894 = vunpack.c.l.b16 %v863
        %v1895 = vunpack.c.l.b16 %v864
        %v1896 = vunpack.c.l.b16 %v865
        %v1897 = vunpack.c.l.b16 %v866
        %v1898 = vunpack.c.l.b16 %v867
        %v1899 = vunpack.c.l.b16 %v868
        %v1900 = vunpack.c.l.b16 %v869
        %v1901 = vunpack.c.l.b16 %v870
        %v1902 = vunpack.c.l.b16 %v871
        %v1903 = vunpack.c.l.b16 %v872
        %v1904 = vunpack.c.l.b16 %v873
        %v1905 = vunpack.c.l.b16 %v874
        %v1906 = vunpack.c.l.b16 %v875
        %v1907 = vunpack.c.l.b16 %v876
        %v1908 = vunpack.c.l.b16 %v877
        %v1909 = vunpack.c.l.b16 %v878
        %v1910 = vunpack.c.l.b16 %v879
        %v1911 = vunpack.c.l.b16 %v880
        %v1912 = vunpack.c.l.b16 %v881
        %v1913 = vunpack.c.l.b16 %v882
        %v1914 = vunpack.c.l.b16 %v883
        %v1915 = vunpack.c.l.b16 %v884
        %v1916 = vunpack.c.l.b16 %v885
        %v1917 = vunpack.c.l.b16 %v886
        %v1918 = vunpack.c.l.b16 %v887
        %v1919 = vunpack.c.l.b16 %v888
        %v1920 = vunpack.c.l.b16 %v889
        %v1921 = vunpack.c.l.b16 %v890
        %v1922 = vunpack.c.l.b16 %v891
        %v1923 = vunpack.c.l.b16 %v892
        %v1924 = vunpack.c.l.b16 %v893
        %v1925 = vunpack.c.l.b16 %v894
        %v1926 = vunpack.c.l.b16 %v895
        %v1927 = vunpack.c.l.b16 %v896
        %v1928 = vunpack.c.l.b16 %v897
        %v1929 = vunpack.c.l.b16 %v898
        %v1930 = vunpack.c.l.b16 %v899
        %v1931 = vunpack.c.l.b16 %v900
        %v1932 = vunpack.c.l.b16 %v901
        %v1933 = vunpack.c.l.b16 %v902
        %v1934 = vunpack.c.l.b16 %v903
        %v1935 = vunpack.c.l.b16 %v904
        %v1936 = vunpack.c.l.b16 %v905
        %v1937 = vunpack.c.l.b16 %v906
        %v1938 = vunpack.c.l.b16 %v907
        %v1939 = vunpack.c.l.b16 %v908
        %v1940 = vunpack.c.l.b16 %v909
        %v1941 = vunpack.c.l.b16 %v910
        %v1942 = vunpack.c.l.b16 %v911
        %v1943 = vunpack.c.l.b16 %v912
        %v1944 = vunpack.c.l.b16 %v913
        %v1945 = vunpack.c.l.b16 %v914
        %v1946 = vunpack.c.l.b16 %v915
        %v1947 = vunpack.c.l.b16 %v916
        %v1948 = vunpack.c.l.b16 %v917
        %v1949 = vunpack.c.l.b16 %v918
        %v1950 = vunpack.c.l.b16 %v919
        %v1951 = vunpack.c.l.b16 %v920
        %v1952 = vunpack.c.l.b16 %v921
        %v1953 = vunpack.c.l.b16 %v922
        %v1954 = vunpack.c.l.b16 %v923
        %v1955 = vunpack.c.l.b16 %v924
        %v1956 = vunpack.c.l.b16 %v925
        %v1957 = vunpack.c.l.b16 %v926
        %v1958 = vunpack.c.l.b16 %v927
        %v1959 = vunpack.c.l.b16 %v928
        %v1960 = vunpack.c.l.b16 %v929
        %v1961 = vunpack.c.l.b16 %v930
        %v1962 = vunpack.c.l.b16 %v931
        %v1963 = vunpack.c.l.b16 %v932
        %v1964 = vunpack.c.l.b16 %v933
        %v1965 = vunpack.c.l.b16 %v934
        %v1966 = vunpack.c.l.b16 %v935
        %v1967 = vunpack.c.l.b16 %v936
        %v1968 = vunpack.c.l.b16 %v937
        %v1969 = vunpack.c.l.b16 %v938
        %v1970 = vunpack.c.l.b16 %v939
        %v1971 = vunpack.c.l.b16 %v940
        %v1972 = vunpack.c.l.b16 %v941
        %v1973 = vunpack.c.l.b16 %v942
        %v1974 = vunpack.c.l.b16 %v943
        %v1975 = vunpack.c.l.b16 %v944
        %v1976 = vunpack.c.l.b16 %v945
        %v1977 = vunpack.c.l.b16 %v946
        %v1978 = vunpack.c.l.b16 %v947
        %v1979 = vunpack.c.l.b16 %v948
        %v1980 = vunpack.c.l.b16 %v949
        %v1981 = vunpack.c.l.b16 %v950
        %v1982 = vunpack.c.l.b16 %v951
        %v1983 = vunpack.c.l.b16 %v952
        %v1984 = vunpack.c.l.b16 %v953
        %v1985 = vunpack.c.l.b16 %v954
        %v1986 = vunpack.c.l.b16 %v955
        %v1987 = vunpack.c.l.b16 %v956
        %v1988 = vunpack.c.l.b16 %v957
        %v1989 = vunpack.c.l.b16 %v958
        %v1990 = vunpack.c.l.b16 %v959
        %v1991 = vunpack.c.l.b16 %v960
        %v1992 = vunpack.c.l.b16 %v961
        %v1993 = vunpack.c.l.b16 %v962
        %v1994 = vunpack.c.l.b16 %v963
        %v1995 = vunpack.c.l.b16 %v964
        %v1996 = vunpack.c.l.b16 %v965
        %v1997 = vunpack.c.l.b16 %v966
        %v1998 = vunpack.c.l.b16 %v967
        %v1999 = vunpack.c.l.b16 %v968
        %v2000 = vunpack.c.l.b16 %v969
        %v2001 = vunpack.c.l.b16 %v970
        %v2002 = vunpack.c.l.b16 %v971
        %v2003 = vunpack.c.l.b16 %v972
        %v2004 = vunpack.c.l.b16 %v973
        %v2005 = vunpack.c.l.b16 %v974
        %v2006 = vunpack.c.l.b16 %v975
        %v2007 = vunpack.c.l.b16 %v976
        %v2008 = vunpack.c.l.b16 %v977
        %v2009 = vunpack.c.l.b16 %v978
        %v2010 = vunpack.c.l.b16 %v979
        %v2011 = vunpack.c.l.b16 %v980
        %v2012 = vunpack.c.l.b16 %v981
        %v2013 = vunpack.c.l.b16 %v982
        %v2014 = vunpack.c.l.b16 %v983
        %v2015 = vunpack.c.l.b16 %v984
        %v2016 = vunpack.c.l.b16 %v985
        %v2017 = vunpack.c.l.b16 %v986
        %v2018 = vunpack.c.l.b16 %v987
        %v2019 = vunpack.c.l.b16 %v988
        %v2020 = vunpack.c.l.b16 %v989
        %v2021 = vunpack.c.l.b16 %v990
        %v2022 = vunpack.c.l.b16 %v991
        %v2023 = vunpack.c.l.b16 %v992
        %v2024 = vunpack.c.l.b16 %v993
        %v2025 = vunpack.c.l.b16 %v994
        %v2026 = vunpack.c.l.b16 %v995
        %v2027 = vunpack.c.l.b16 %v996
        %v2028 = vunpack.c.l.b16 %v997
        %v2029 = vunpack.c.l.b16 %v998
        %v2030 = vunpack.c.l.b16 %v999
        %v2031 = vunpack.c.l.b16 %v1000
        %v2032 = vunpack.c.l.b16 %v1001
        %v2033 = vunpack.c.l.b16 %v1002
        %v2034 = vunpack.c.l.b16 %v1003
        %v2035 = vunpack.c.l.b16 %v1004
        %v2036 = vunpack.c.l.b16 %v1005
        %v2037 = vunpack.c.l.b16 %v1006
        %v2038 = vunpack.c.l.b16 %v1007
        %v2039 = vunpack.c.l.b16 %v1008
        %v2040 = vunpack.c.l.b16 %v1009
        %v2041 = vunpack.c.l.b16 %v1010
        %v2042 = vunpack.c.l.b16 %v1011
        %v2043 = vunpack.c.l.b16 %v1012
        %v2044 = vunpack.c.l.b16 %v1013
        %v2045 = vunpack.c.l.b16 %v1014
        %v2046 = vunpack.c.l.b16 %v1015
        %v2047 = vunpack.c.l.b16 %v1016
        %v2048 = vunpack.c.l.b16 %v1017
        %v2049 = vunpack.c.l.b16 %v1018
        %v2050 = vunpack.c.l.b16 %v1019
        %v2051 = vunpack.c.l.b16 %v1020
        %v2052 = vunpack.c.l.b16 %v1021
        %v2053 = vunpack.c.l.b16 %v1022
        %v2054 = vunpack.c.l.b16 %v1023
        %v2055 = vunpack.c.l.b16 %v1024
        %v2056 = vunpack.c.l.b16 %v1025
        %v2057 = vunpack.c.l.b16 %v1026
        %v2058 = vunpack.c.l.b16 %v1027
        %v2059 = vunpack.c.l.b16 %v1028
        %v2060 = vunpack.c.l.b16 %v1029
        %v2061 = vunpack.c.l.b16 %v1030
        %v2062 = vunpack.c.l.b16 %v1031
        %v2063 = vunpack.c.l.b16 %v1032
        %v2064 = vunpack.c.l.b16 %v1033
        %v2065 = vunpack.c.l.b16 %v1034
        %v2066 = vunpack.c.l.b16 %v1035
        %v2067 = vunpack.c.l.b16 %v1036
        %v2068 = vunpack.c.l.b16 %v1037
        %v2069 = vunpack.c.l.b16 %v1038
        %v2070 = vunpack.c.l.b16 %v1039
        %v2071 = vunpack.c.l.b16 %v1040
        %v2072 = vunpack.c.l.b16 %v1041
        %v2073 = vunpack.c.l.b16 %v1042
        %v2074 = vunpack.c.l.b16 %v1043
        %v2075 = vunpack.c.l.b16 %v1044
        %v2076 = vunpack.c.l.b16 %v1045
        %v2077 = vunpack.c.l.b16 %v1046
        %v2078 = vunpack.c.l.b16 %v1047
        %v2079 = vunpack.c.l.b16 %v1048
        %v2080 = vunpack.c.l.b16 %v1049
        %v2081 = vunpack.c.l.b16 %v1050
        %v2082 = vunpack.c.l.b16 %v1051
        %v2083 = vunpack.c.l.b16 %v1052
        %v2084 = vunpack.c.l.b16 %v1053
        %v2085 = vunpack.c.l.b16 %v1054
        %v2086 = vunpack.c.l.b16 %v1055
        %v2087 = vunpack.c.l.b16 %v1056
        %v2088 = vunpack.c.l.b16 %v1057
        %v2089 = vunpack.c.l.b16 %v1058
        %v2090 = vunpack.c.l.b16 %v1059
        %v2091 = vunpack.c.l.b16 %v1060
        %v2092 = vunpack.c.l.b16 %v1061
        %v2093 = vunpack.c.l.b16 %v1062
        %v2094 = vunpack.c.l.b16 %v1063
        %v2095 = vunpack.c.l.b16 %v1064
        %v2096 = vunpack.c.l.b16 %v1065
        %v2097 = vunpack.c.l.b16 %v1066
        %v2098 = vunpack.c.l.b16 %v1067
        %v2099 = vunpack.c.l.b16 %v1068
        %v2100 = vunpack.c.l.b16 %v1069
        %v2101 = vunpack.c.l.b16 %v1070
        %v2102 = vunpack.c.l.b16 %v1071
        %v2103 = vpack.c.b16 %v1592, %v1591
        %v2104 = vpack.c.b16 %v1594, %v1593
        %v2105 = vpack.c.b16 %v1596, %v1595
        %v2106 = vpack.c.b16 %v1598, %v1597
        %v2107 = vpack.c.b16 %v1600, %v1599
        %v2108 = vpack.c.b16 %v1602, %v1601
        %v2109 = vpack.c.b16 %v1604, %v1603
        %v2110 = vpack.c.b16 %v1606, %v1605
        %v2111 = vpack.c.b16 %v1608, %v1607
        %v2112 = vpack.c.b16 %v1610, %v1609
        %v2113 = vpack.c.b16 %v1612, %v1611
        %v2114 = vpack.c.b16 %v1614, %v1613
        %v2115 = vpack.c.b16 %v1616, %v1615
        %v2116 = vpack.c.b16 %v1618, %v1617
        %v2117 = vpack.c.b16 %v1620, %v1619
        %v2118 = vpack.c.b16 %v1622, %v1621
        %v2119 = vpack.c.b16 %v1624, %v1623
        %v2120 = vpack.c.b16 %v1626, %v1625
        %v2121 = vpack.c.b16 %v1628, %v1627
        %v2122 = vpack.c.b16 %v1630, %v1629
        %v2123 = vpack.c.b16 %v1632, %v1631
        %v2124 = vpack.c.b16 %v1634, %v1633
        %v2125 = vpack.c.b16 %v1636, %v1635
        %v2126 = vpack.c.b16 %v1638, %v1637
        %v2127 = vpack.c.b16 %v1640, %v1639
        %v2128 = vpack.c.b16 %v1642, %v1641
        %v2129 = vpack.c.b16 %v1644, %v1643
        %v2130 = vpack.c.b16 %v1646, %v1645
        %v2131 = vpack.c.b16 %v1648, %v1647
        %v2132 = vpack.c.b16 %v1650, %v1649
        %v2133 = vpack.c.b16 %v1652, %v1651
        %v2134 = vpack.c.b16 %v1654, %v1653
        %v2135 = vpack.c.b16 %v1656, %v1655
        %v2136 = vpack.c.b16 %v1658, %v1657
        %v2137 = vpack.c.b16 %v1660, %v1659
        %v2138 = vpack.c.b16 %v1662, %v1661
        %v2139 = vpack.c.b16 %v1664, %v1663
        %v2140 = vpack.c.b16 %v1666, %v1665
        %v2141 = vpack.c.b16 %v1668, %v1667
        %v2142 = vpack.c.b16 %v1670, %v1669
        %v2143 = vpack.c.b16 %v1672, %v1671
        %v2144 = vpack.c.b16 %v1674, %v1673
        %v2145 = vpack.c.b16 %v1676, %v1675
        %v2146 = vpack.c.b16 %v1678, %v1677
        %v2147 = vpack.c.b16 %v1680, %v1679
        %v2148 = vpack.c.b16 %v1682, %v1681
        %v2149 = vpack.c.b16 %v1684, %v1683
        %v2150 = vpack.c.b16 %v1686, %v1685
        %v2151 = vpack.c.b16 %v1688, %v1687
        %v2152 = vpack.c.b16 %v1690, %v1689
        %v2153 = vpack.c.b16 %v1692, %v1691
        %v2154 = vpack.c.b16 %v1694, %v1693
        %v2155 = vpack.c.b16 %v1696, %v1695
        %v2156 = vpack.c.b16 %v1698, %v1697
        %v2157 = vpack.c.b16 %v1700, %v1699
        %v2158 = vpack.c.b16 %v1702, %v1701
        %v2159 = vpack.c.b16 %v1704, %v1703
        %v2160 = vpack.c.b16 %v1706, %v1705
        %v2161 = vpack.c.b16 %v1708, %v1707
        %v2162 = vpack.c.b16 %v1710, %v1709
        %v2163 = vpack.c.b16 %v1712, %v1711
        %v2164 = vpack.c.b16 %v1714, %v1713
        %v2165 = vpack.c.b16 %v1716, %v1715
        %v2166 = vpack.c.b16 %v1718, %v1717
        %v2167 = vpack.c.b16 %v1720, %v1719
        %v2168 = vpack.c.b16 %v1722, %v1721
        %v2169 = vpack.c.b16 %v1724, %v1723
        %v2170 = vpack.c.b16 %v1726, %v1725
        %v2171 = vpack.c.b16 %v1728, %v1727
        %v2172 = vpack.c.b16 %v1730, %v1729
        %v2173 = vpack.c.b16 %v1732, %v1731
        %v2174 = vpack.c.b16 %v1734, %v1733
        %v2175 = vpack.c.b16 %v1736, %v1735
        %v2176 = vpack.c.b16 %v1738, %v1737
        %v2177 = vpack.c.b16 %v1740, %v1739
        %v2178 = vpack.c.b16 %v1742, %v1741
        %v2179 = vpack.c.b16 %v1744, %v1743
        %v2180 = vpack.c.b16 %v1746, %v1745
        %v2181 = vpack.c.b16 %v1748, %v1747
        %v2182 = vpack.c.b16 %v1750, %v1749
        %v2183 = vpack.c.b16 %v1752, %v1751
        %v2184 = vpack.c.b16 %v1754, %v1753
        %v2185 = vpack.c.b16 %v1756, %v1755
        %v2186 = vpack.c.b16 %v1758, %v1757
        %v2187 = vpack.c.b16 %v1760, %v1759
        %v2188 = vpack.c.b16 %v1762, %v1761
        %v2189 = vpack.c.b16 %v1764, %v1763
        %v2190 = vpack.c.b16 %v1766, %v1765
        %v2191 = vpack.c.b16 %v1768, %v1767
        %v2192 = vpack.c.b16 %v1770, %v1769
        %v2193 = vpack.c.b16 %v1772, %v1771
        %v2194 = vpack.c.b16 %v1774, %v1773
        %v2195 = vpack.c.b16 %v1776, %v1775
        %v2196 = vpack.c.b16 %v1778, %v1777
        %v2197 = vpack.c.b16 %v1780, %v1779
        %v2198 = vpack.c.b16 %v1782, %v1781
        %v2199 = vpack.c.b16 %v1784, %v1783
        %v2200 = vpack.c.b16 %v1786, %v1785
        %v2201 = vpack.c.b16 %v1788, %v1787
        %v2202 = vpack.c.b16 %v1790, %v1789
        %v2203 = vpack.c.b16 %v1792, %v1791
        %v2204 = vpack.c.b16 %v1794, %v1793
        %v2205 = vpack.c.b16 %v1796, %v1795
        %v2206 = vpack.c.b16 %v1798, %v1797
        %v2207 = vpack.c.b16 %v1800, %v1799
        %v2208 = vpack.c.b16 %v1802, %v1801
        %v2209 = vpack.c.b16 %v1804, %v1803
        %v2210 = vpack.c.b16 %v1806, %v1805
        %v2211 = vpack.c.b16 %v1808, %v1807
        %v2212 = vpack.c.b16 %v1810, %v1809
        %v2213 = vpack.c.b16 %v1812, %v1811
        %v2214 = vpack.c.b16 %v1814, %v1813
        %v2215 = vpack.c.b16 %v1816, %v1815
        %v2216 = vpack.c.b16 %v1818, %v1817
        %v2217 = vpack.c.b16 %v1820, %v1819
        %v2218 = vpack.c.b16 %v1822, %v1821
        %v2219 = vpack.c.b16 %v1824, %v1823
        %v2220 = vpack.c.b16 %v1826, %v1825
        %v2221 = vpack.c.b16 %v1828, %v1827
        %v2222 = vpack.c.b16 %v1830, %v1829
        %v2223 = vpack.c.b16 %v1832, %v1831
        %v2224 = vpack.c.b16 %v1834, %v1833
        %v2225 = vpack.c.b16 %v1836, %v1835
        %v2226 = vpack.c.b16 %v1838, %v1837
        %v2227 = vpack.c.b16 %v1840, %v1839
        %v2228 = vpack.c.b16 %v1842, %v1841
        %v2229 = vpack.c.b16 %v1844, %v1843
        %v2230 = vpack.c.b16 %v1846, %v1845
        %v2231 = vpack.c.b16 %v1848, %v1847
        %v2232 = vpack.c.b16 %v1850, %v1849
        %v2233 = vpack.c.b16 %v1852, %v1851
        %v2234 = vpack.c.b16 %v1854, %v1853
        %v2235 = vpack.c.b16 %v1856, %v1855
        %v2236 = vpack.c.b16 %v1858, %v1857
        %v2237 = vpack.c.b16 %v1860, %v1859
        %v2238 = vpack.c.b16 %v1862, %v1861
        %v2239 = vpack.c.b16 %v1864, %v1863
        %v2240 = vpack.c.b16 %v1866, %v1865
        %v2241 = vpack.c.b16 %v1868, %v1867
        %v2242 = vpack.c.b16 %v1870, %v1869
        %v2243 = vpack.c.b16 %v1872, %v1871
        %v2244 = vpack.c.b16 %v1874, %v1873
        %v2245 = vpack.c.b16 %v1876, %v1875
        %v2246 = vpack.c.b16 %v1878, %v1877
        %v2247 = vpack.c.b16 %v1880, %v1879
        %v2248 = vpack.c.b16 %v1882, %v1881
        %v2249 = vpack.c.b16 %v1884, %v1883
        %v2250 = vpack.c.b16 %v1886, %v1885
        %v2251 = vpack.c.b16 %v1888, %v1887
        %v2252 = vpack.c.b16 %v1890, %v1889
        %v2253 = vpack.c.b16 %v1892, %v1891
        %v2254 = vpack.c.b16 %v1894, %v1893
        %v2255 = vpack.c.b16 %v1896, %v1895
        %v2256 = vpack.c.b16 %v1898, %v1897
        %v2257 = vpack.c.b16 %v1900, %v1899
        %v2258 = vpack.c.b16 %v1902, %v1901
        %v2259 = vpack.c.b16 %v1904, %v1903
        %v2260 = vpack.c.b16 %v1906, %v1905
        %v2261 = vpack.c.b16 %v1908, %v1907
        %v2262 = vpack.c.b16 %v1910, %v1909
        %v2263 = vpack.c.b16 %v1912, %v1911
        %v2264 = vpack.c.b16 %v1914, %v1913
        %v2265 = vpack.c.b16 %v1916, %v1915
        %v2266 = vpack.c.b16 %v1918, %v1917
        %v2267 = vpack.c.b16 %v1920, %v1919
        %v2268 = vpack.c.b16 %v1922, %v1921
        %v2269 = vpack.c.b16 %v1924, %v1923
        %v2270 = vpack.c.b16 %v1926, %v1925
        %v2271 = vpack.c.b16 %v1928, %v1927
        %v2272 = vpack.c.b16 %v1930, %v1929
        %v2273 = vpack.c.b16 %v1932, %v1931
        %v2274 = vpack.c.b16 %v1934, %v1933
        %v2275 = vpack.c.b16 %v1936, %v1935
        %v2276 = vpack.c.b16 %v1938, %v1937
        %v2277 = vpack.c.b16 %v1940, %v1939
        %v2278 = vpack.c.b16 %v1942, %v1941
        %v2279 = vpack.c.b16 %v1944, %v1943
        %v2280 = vpack.c.b16 %v1946, %v1945
        %v2281 = vpack.c.b16 %v1948, %v1947
        %v2282 = vpack.c.b16 %v1950, %v1949
        %v2283 = vpack.c.b16 %v1952, %v1951
        %v2284 = vpack.c.b16 %v1954, %v1953
        %v2285 = vpack.c.b16 %v1956, %v1955
        %v2286 = vpack.c.b16 %v1958, %v1957
        %v2287 = vpack.c.b16 %v1960, %v1959
        %v2288 = vpack.c.b16 %v1962, %v1961
        %v2289 = vpack.c.b16 %v1964, %v1963
        %v2290 = vpack.c.b16 %v1966, %v1965
        %v2291 = vpack.c.b16 %v1968, %v1967
        %v2292 = vpack.c.b16 %v1970, %v1969
        %v2293 = vpack.c.b16 %v1972, %v1971
        %v2294 = vpack.c.b16 %v1974, %v1973
        %v2295 = vpack.c.b16 %v1976, %v1975
        %v2296 = vpack.c.b16 %v1978, %v1977
        %v2297 = vpack.c.b16 %v1980, %v1979
        %v2298 = vpack.c.b16 %v1982, %v1981
        %v2299 = vpack.c.b16 %v1984, %v1983
        %v2300 = vpack.c.b16 %v1986, %v1985
        %v2301 = vpack.c.b16 %v1988, %v1987
        %v2302 = vpack.c.b16 %v1990, %v1989
        %v2303 = vpack.c.b16 %v1992, %v1991
        %v2304 = vpack.c.b16 %v1994, %v1993
        %v2305 = vpack.c.b16 %v1996, %v1995
        %v2306 = vpack.c.b16 %v1998, %v1997
        %v2307 = vpack.c.b16 %v2000, %v1999
        %v2308 = vpack.c.b16 %v2002, %v2001
        %v2309 = vpack.c.b16 %v2004, %v2003
        %v2310 = vpack.c.b16 %v2006, %v2005
        %v2311 = vpack.c.b16 %v2008, %v2007
        %v2312 = vpack.c.b16 %v2010, %v2009
        %v2313 = vpack.c.b16 %v2012, %v2011
        %v2314 = vpack.c.b16 %v2014, %v2013
        %v2315 = vpack.c.b16 %v2016, %v2015
        %v2316 = vpack.c.b16 %v2018, %v2017
        %v2317 = vpack.c.b16 %v2020, %v2019
        %v2318 = vpack.c.b16 %v2022, %v2021
        %v2319 = vpack.c.b16 %v2024, %v2023
        %v2320 = vpack.c.b16 %v2026, %v2025
        %v2321 = vpack.c.b16 %v2028, %v2027
        %v2322 = vpack.c.b16 %v2030, %v2029
        %v2323 = vpack.c.b16 %v2032, %v2031
        %v2324 = vpack.c.b16 %v2034, %v2033
        %v2325 = vpack.c.b16 %v2036, %v2035
        %v2326 = vpack.c.b16 %v2038, %v2037
        %v2327 = vpack.c.b16 %v2040, %v2039
        %v2328 = vpack.c.b16 %v2042, %v2041
        %v2329 = vpack.c.b16 %v2044, %v2043
        %v2330 = vpack.c.b16 %v2046, %v2045
        %v2331 = vpack.c.b16 %v2048, %v2047
        %v2332 = vpack.c.b16 %v2050, %v2049
        %v2333 = vpack.c.b16 %v2052, %v2051
        %v2334 = vpack.c.b16 %v2054, %v2053
        %v2335 = vpack.c.b16 %v2056, %v2055
        %v2336 = vpack.c.b16 %v2058, %v2057
        %v2337 = vpack.c.b16 %v2060, %v2059
        %v2338 = vpack.c.b16 %v2062, %v2061
        %v2339 = vpack.c.b16 %v2064, %v2063
        %v2340 = vpack.c.b16 %v2066, %v2065
        %v2341 = vpack.c.b16 %v2068, %v2067
        %v2342 = vpack.c.b16 %v2070, %v2069
        %v2343 = vpack.c.b16 %v2072, %v2071
        %v2344 = vpack.c.b16 %v2074, %v2073
        %v2345 = vpack.c.b16 %v2076, %v2075
        %v2346 = vpack.c.b16 %v2078, %v2077
        %v2347 = vpack.c.b16 %v2080, %v2079
        %v2348 = vpack.c.b16 %v2082, %v2081
        %v2349 = vpack.c.b16 %v2084, %v2083
        %v2350 = vpack.c.b16 %v2086, %v2085
        %v2351 = vpack.c.b16 %v2088, %v2087
        %v2352 = vpack.c.b16 %v2090, %v2089
        %v2353 = vpack.c.b16 %v2092, %v2091
        %v2354 = vpack.c.b16 %v2094, %v2093
        %v2355 = vpack.c.b16 %v2096, %v2095
        %v2356 = vpack.c.b16 %v2098, %v2097
        %v2357 = vpack.c.b16 %v2100, %v2099
        %v2358 = vpack.c.b16 %v2102, %v2101
        %2615 = vmatprep.subr.bf16.mxu0 0
        %2616 = vmatpush1.bf16.msra.mxu0 %v2103
        %2617 = vmatprep.subr.bf16.mxu0 0
        %2618 = vmatpush1.bf16.msra.mxu0 %v2104
        %2619 = vmatprep.subr.bf16.mxu0 0
        %2620 = vmatpush1.bf16.msra.mxu0 %v2105
        %2621 = vmatprep.subr.bf16.mxu0 0
        %2622 = vmatpush1.bf16.msra.mxu0 %v2106
        %2623 = vmatprep.subr.bf16.mxu0 0
        %2624 = vmatpush1.bf16.msra.mxu0 %v2107
        %2625 = vmatprep.subr.bf16.mxu0 0
        %2626 = vmatpush1.bf16.msra.mxu0 %v2108
        %2627 = vmatprep.subr.bf16.mxu0 0
        %2628 = vmatpush1.bf16.msra.mxu0 %v2109
        %2629 = vmatprep.subr.bf16.mxu0 0
        %2630 = vmatpush1.bf16.msra.mxu0 %v2110
        %2631 = vmatprep.subr.bf16.mxu0 0
        %2632 = vmatpush1.bf16.msra.mxu0 %v2111
        %2633 = vmatprep.subr.bf16.mxu0 0
        %2634 = vmatpush1.bf16.msra.mxu0 %v2112
        %2635 = vmatprep.subr.bf16.mxu0 0
        %2636 = vmatpush1.bf16.msra.mxu0 %v2113
        %2637 = vmatprep.subr.bf16.mxu0 0
        %2638 = vmatpush1.bf16.msra.mxu0 %v2114
        %2639 = vmatprep.subr.bf16.mxu0 0
        %2640 = vmatpush1.bf16.msra.mxu0 %v2115
        %2641 = vmatprep.subr.bf16.mxu0 0
        %2642 = vmatpush1.bf16.msra.mxu0 %v2116
        %2643 = vmatprep.subr.bf16.mxu0 0
        %2644 = vmatpush1.bf16.msra.mxu0 %v2117
        %2645 = vmatprep.subr.bf16.mxu0 0
        %2646 = vmatpush1.bf16.msra.mxu0 %v2118
        %2647 = vmatprep.mubr.f32.mxu0 %v369
        %2648 = vmatmul.mubr.f32.gmra.mrb[0].mxu0 %v368
        %v2649 = vpop.f32.mrb[0].mxu0
        %v2650 = vadd.f32 %v1077, %v2649
        %v2651 = vpop.f32.mrb[0].mxu0
        %2652 = vmatprep.mubr.f32.mxu0 %v401
        %2653 = vmatmul.mubr.f32.gmra.mrb[0].mxu0 %v400
        %v2654 = vpop.f32.mrb[0].mxu0
        %v2655 = vadd.f32 %v1077, %v2654
        %v2656 = vpop.f32.mrb[0].mxu0
        %2657 = vmatprep.mubr.f32.mxu0 %v433
        %2658 = vmatmul.mubr.f32.gmra.mrb[0].mxu0 %v432
        %v2659 = vpop.f32.mrb[0].mxu0
        %v2660 = vadd.f32 %v1077, %v2659
        %v2661 = vpop.f32.mrb[0].mxu0
        %2662 = vmatprep.mubr.f32.mxu0 %v465
        %2663 = vmatmul.mubr.f32.gmra.mrb[0].mxu0 %v464
        %v2664 = vpop.f32.mrb[0].mxu0
        %v2665 = vadd.f32 %v1077, %v2664
        %v2666 = vpop.f32.mrb[0].mxu0
        %2667 = vmatprep.mubr.f32.mxu0 %v497
        %2668 = vmatmul.mubr.f32.gmra.mrb[0].mxu0 %v496
        %v2669 = vpop.f32.mrb[0].mxu0
        %v2670 = vadd.f32 %v1077, %v2669
        %v2671 = vpop.f32.mrb[0].mxu0
        %2672 = vmatprep.mubr.f32.mxu0 %v529
        %2673 = vmatmul.mubr.f32.gmra.mrb[0].mxu0 %v528
        %v2674 = vpop.f32.mrb[0].mxu0
        %v2675 = vadd.f32 %v1077, %v2674
        %v2676 = vpop.f32.mrb[0].mxu0
        %2677 = vdwg.mxu0
        %2678 = vmatprep.subr.bf16.mxu0 0
        %2679 = vmatpush1.bf16.msra.mxu0 %v2119
        %2680 = vmatprep.subr.bf16.mxu0 0
        %2681 = vmatpush1.bf16.msra.mxu0 %v2120
        %2682 = vmatprep.subr.bf16.mxu0 0
        %2683 = vmatpush1.bf16.msra.mxu0 %v2121
        %2684 = vmatprep.subr.bf16.mxu0 0
        %2685 = vmatpush1.bf16.msra.mxu0 %v2122
        %2686 = vmatprep.subr.bf16.mxu0 0
        %2687 = vmatpush1.bf16.msra.mxu0 %v2123
        %2688 = vmatprep.subr.bf16.mxu0 0
        %2689 = vmatpush1.bf16.msra.mxu0 %v2124
        %2690 = vmatprep.subr.bf16.mxu0 0
        %2691 = vmatpush1.bf16.msra.mxu0 %v2125
        %2692 = vmatprep.subr.bf16.mxu0 0
        %2693 = vmatpush1.bf16.msra.mxu0 %v2126
        %2694 = vmatprep.subr.bf16.mxu0 0
        %2695 = vmatpush1.bf16.msra.mxu0 %v2127
        %2696 = vmatprep.subr.bf16.mxu0 0
        %2697 = vmatpush1.bf16.msra.mxu0 %v2128
        %2698 = vmatprep.subr.bf16.mxu0 0
        %2699 = vmatpush1.bf16.msra.mxu0 %v2129
        %2700 = vmatprep.subr.bf16.mxu0 0
        %2701 = vmatpush1.bf16.msra.mxu0 %v2130
        %2702 = vmatprep.subr.bf16.mxu0 0
        %2703 = vmatpush1.bf16.msra.mxu0 %v2131
        %2704 = vmatprep.subr.bf16.mxu0 0
        %2705 = vmatpush1.bf16.msra.mxu0 %v2132
        %2706 = vmatprep.subr.bf16.mxu0 0
        %2707 = vmatpush1.bf16.msra.mxu0 %v2133
        %2708 = vmatprep.subr.bf16.mxu0 0
        %2709 = vmatpush1.bf16.msra.mxu0 %v2134
        %2710 = vmatprep.mubr.f32.mxu0 %v371
        %2711 = vmatmul.mubr.f32.gmra.mrb[0].mxu0 %v370
        %v2712 = vpop.f32.mrb[0].mxu0
        %v2713 = vadd.f32 %v2650, %v2712
        %v2714 = vpop.f32.mrb[0].mxu0
        %2715 = vmatprep.mubr.f32.mxu0 %v403
        %2716 = vmatmul.mubr.f32.gmra.mrb[0].mxu0 %v402
        %v2717 = vpop.f32.mrb[0].mxu0
        %v2718 = vadd.f32 %v2655, %v2717
        %v2719 = vpop.f32.mrb[0].mxu0
        %2720 = vmatprep.mubr.f32.mxu0 %v435
        %2721 = vmatmul.mubr.f32.gmra.mrb[0].mxu0 %v434
        %v2722 = vpop.f32.mrb[0].mxu0
        %v2723 = vadd.f32 %v2660, %v2722
        %v2724 = vpop.f32.mrb[0].mxu0
        %2725 = vmatprep.mubr.f32.mxu0 %v467
        %2726 = vmatmul.mubr.f32.gmra.mrb[0].mxu0 %v466
        %v2727 = vpop.f32.mrb[0].mxu0
        %v2728 = vadd.f32 %v2665, %v2727
        %v2729 = vpop.f32.mrb[0].mxu0
        %2730 = vmatprep.mubr.f32.mxu0 %v499
        %2731 = vmatmul.mubr.f32.gmra.mrb[0].mxu0 %v498
        %v2732 = vpop.f32.mrb[0].mxu0
        %v2733 = vadd.f32 %v2670, %v2732
        %v2734 = vpop.f32.mrb[0].mxu0
        %2735 = vmatprep.mubr.f32.mxu0 %v531
        %2736 = vmatmul.mubr.f32.gmra.mrb[0].mxu0 %v530
        %v2737 = vpop.f32.mrb[0].mxu0
        %v2738 = vadd.f32 %v2675, %v2737
        %v2739 = vpop.f32.mrb[0].mxu0
        %2740 = vdwg.mxu0
        %2741 = vmatprep.subr.bf16.mxu0 0
        %2742 = vmatpush1.bf16.msra.mxu0 %v2135
        %2743 = vmatprep.subr.bf16.mxu0 0
        %2744 = vmatpush1.bf16.msra.mxu0 %v2136
        %2745 = vmatprep.subr.bf16.mxu0 0
        %2746 = vmatpush1.bf16.msra.mxu0 %v2137
        %2747 = vmatprep.subr.bf16.mxu0 0
        %2748 = vmatpush1.bf16.msra.mxu0 %v2138
        %2749 = vmatprep.subr.bf16.mxu0 0
        %2750 = vmatpush1.bf16.msra.mxu0 %v2139
        %2751 = vmatprep.subr.bf16.mxu0 0
        %2752 = vmatpush1.bf16.msra.mxu0 %v2140
        %2753 = vmatprep.subr.bf16.mxu0 0
        %2754 = vmatpush1.bf16.msra.mxu0 %v2141
        %2755 = vmatprep.subr.bf16.mxu0 0
        %2756 = vmatpush1.bf16.msra.mxu0 %v2142
        %2757 = vmatprep.subr.bf16.mxu0 0
        %2758 = vmatpush1.bf16.msra.mxu0 %v2143
        %2759 = vmatprep.subr.bf16.mxu0 0
        %2760 = vmatpush1.bf16.msra.mxu0 %v2144
        %2761 = vmatprep.subr.bf16.mxu0 0
        %2762 = vmatpush1.bf16.msra.mxu0 %v2145
        %2763 = vmatprep.subr.bf16.mxu0 0
        %2764 = vmatpush1.bf16.msra.mxu0 %v2146
        %2765 = vmatprep.subr.bf16.mxu0 0
        %2766 = vmatpush1.bf16.msra.mxu0 %v2147
        %2767 = vmatprep.subr.bf16.mxu0 0
        %2768 = vmatpush1.bf16.msra.mxu0 %v2148
        %2769 = vmatprep.subr.bf16.mxu0 0
        %2770 = vmatpush1.bf16.msra.mxu0 %v2149
        %2771 = vmatprep.subr.bf16.mxu0 0
        %2772 = vmatpush1.bf16.msra.mxu0 %v2150
        %2773 = vmatprep.mubr.f32.mxu0 %v373
        %2774 = vmatmul.mubr.f32.gmra.mrb[0].mxu0 %v372
        %v2775 = vpop.f32.mrb[0].mxu0
        %v2776 = vadd.f32 %v2713, %v2775
        %v2777 = vpop.f32.mrb[0].mxu0
        %2778 = vmatprep.mubr.f32.mxu0 %v405
        %2779 = vmatmul.mubr.f32.gmra.mrb[0].mxu0 %v404
        %v2780 = vpop.f32.mrb[0].mxu0
        %v2781 = vadd.f32 %v2718, %v2780
        %v2782 = vpop.f32.mrb[0].mxu0
        %2783 = vmatprep.mubr.f32.mxu0 %v437
        %2784 = vmatmul.mubr.f32.gmra.mrb[0].mxu0 %v436
        %v2785 = vpop.f32.mrb[0].mxu0
        %v2786 = vadd.f32 %v2723, %v2785
        %v2787 = vpop.f32.mrb[0].mxu0
        %2788 = vmatprep.mubr.f32.mxu0 %v469
        %2789 = vmatmul.mubr.f32.gmra.mrb[0].mxu0 %v468
        %v2790 = vpop.f32.mrb[0].mxu0
        %v2791 = vadd.f32 %v2728, %v2790
        %v2792 = vpop.f32.mrb[0].mxu0
        %2793 = vmatprep.mubr.f32.mxu0 %v501
        %2794 = vmatmul.mubr.f32.gmra.mrb[0].mxu0 %v500
        %v2795 = vpop.f32.mrb[0].mxu0
        %v2796 = vadd.f32 %v2733, %v2795
        %v2797 = vpop.f32.mrb[0].mxu0
        %2798 = vmatprep.mubr.f32.mxu0 %v533
        %2799 = vmatmul.mubr.f32.gmra.mrb[0].mxu0 %v532
        %v2800 = vpop.f32.mrb[0].mxu0
        %v2801 = vadd.f32 %v2738, %v2800
        %v2802 = vpop.f32.mrb[0].mxu0
        %2803 = vdwg.mxu0
        %2804 = vmatprep.subr.bf16.mxu0 0
        %2805 = vmatpush1.bf16.msra.mxu0 %v2151
        %2806 = vmatprep.subr.bf16.mxu0 0
        %2807 = vmatpush1.bf16.msra.mxu0 %v2152
        %2808 = vmatprep.subr.bf16.mxu0 0
        %2809 = vmatpush1.bf16.msra.mxu0 %v2153
        %2810 = vmatprep.subr.bf16.mxu0 0
        %2811 = vmatpush1.bf16.msra.mxu0 %v2154
        %2812 = vmatprep.subr.bf16.mxu0 0
        %2813 = vmatpush1.bf16.msra.mxu0 %v2155
        %2814 = vmatprep.subr.bf16.mxu0 0
        %2815 = vmatpush1.bf16.msra.mxu0 %v2156
        %2816 = vmatprep.subr.bf16.mxu0 0
        %2817 = vmatpush1.bf16.msra.mxu0 %v2157
        %2818 = vmatprep.subr.bf16.mxu0 0
        %2819 = vmatpush1.bf16.msra.mxu0 %v2158
        %2820 = vmatprep.subr.bf16.mxu0 0
        %2821 = vmatpush1.bf16.msra.mxu0 %v2159
        %2822 = vmatprep.subr.bf16.mxu0 0
        %2823 = vmatpush1.bf16.msra.mxu0 %v2160
        %2824 = vmatprep.subr.bf16.mxu0 0
        %2825 = vmatpush1.bf16.msra.mxu0 %v2161
        %2826 = vmatprep.subr.bf16.mxu0 0
        %2827 = vmatpush1.bf16.msra.mxu0 %v2162
        %2828 = vmatprep.subr.bf16.mxu0 0
        %2829 = vmatpush1.bf16.msra.mxu0 %v2163
        %2830 = vmatprep.subr.bf16.mxu0 0
        %2831 = vmatpush1.bf16.msra.mxu0 %v2164
        %2832 = vmatprep.subr.bf16.mxu0 0
        %2833 = vmatpush1.bf16.msra.mxu0 %v2165
        %2834 = vmatprep.subr.bf16.mxu0 0
        %2835 = vmatpush1.bf16.msra.mxu0 %v2166
        %2836 = vmatprep.mubr.f32.mxu0 %v375
        %2837 = vmatmul.mubr.f32.gmra.mrb[0].mxu0 %v374
        %v2838 = vpop.f32.mrb[0].mxu0
        %v2839 = vadd.f32 %v2776, %v2838
        %v2840 = vpop.f32.mrb[0].mxu0
        %2841 = vmatprep.mubr.f32.mxu0 %v407
        %2842 = vmatmul.mubr.f32.gmra.mrb[0].mxu0 %v406
        %v2843 = vpop.f32.mrb[0].mxu0
        %v2844 = vadd.f32 %v2781, %v2843
        %v2845 = vpop.f32.mrb[0].mxu0
        %2846 = vmatprep.mubr.f32.mxu0 %v439
        %2847 = vmatmul.mubr.f32.gmra.mrb[0].mxu0 %v438
        %v2848 = vpop.f32.mrb[0].mxu0
        %v2849 = vadd.f32 %v2786, %v2848
        %v2850 = vpop.f32.mrb[0].mxu0
        %2851 = vmatprep.mubr.f32.mxu0 %v471
        %2852 = vmatmul.mubr.f32.gmra.mrb[0].mxu0 %v470
        %v2853 = vpop.f32.mrb[0].mxu0
        %v2854 = vadd.f32 %v2791, %v2853
        %v2855 = vpop.f32.mrb[0].mxu0
        %2856 = vmatprep.mubr.f32.mxu0 %v503
        %2857 = vmatmul.mubr.f32.gmra.mrb[0].mxu0 %v502
        %v2858 = vpop.f32.mrb[0].mxu0
        %v2859 = vadd.f32 %v2796, %v2858
        %v2860 = vpop.f32.mrb[0].mxu0
        %2861 = vmatprep.mubr.f32.mxu0 %v535
        %2862 = vmatmul.mubr.f32.gmra.mrb[0].mxu0 %v534
        %v2863 = vpop.f32.mrb[0].mxu0
        %v2864 = vadd.f32 %v2801, %v2863
        %v2865 = vpop.f32.mrb[0].mxu0
        %2866 = vdwg.mxu0
        %2867 = vmatprep.subr.bf16.mxu0 0
        %2868 = vmatpush1.bf16.msra.mxu0 %v2167
        %2869 = vmatprep.subr.bf16.mxu0 0
        %2870 = vmatpush1.bf16.msra.mxu0 %v2168
        %2871 = vmatprep.subr.bf16.mxu0 0
        %2872 = vmatpush1.bf16.msra.mxu0 %v2169
        %2873 = vmatprep.subr.bf16.mxu0 0
        %2874 = vmatpush1.bf16.msra.mxu0 %v2170
        %2875 = vmatprep.subr.bf16.mxu0 0
        %2876 = vmatpush1.bf16.msra.mxu0 %v2171
        %2877 = vmatprep.subr.bf16.mxu0 0
        %2878 = vmatpush1.bf16.msra.mxu0 %v2172
        %2879 = vmatprep.subr.bf16.mxu0 0
        %2880 = vmatpush1.bf16.msra.mxu0 %v2173
        %2881 = vmatprep.subr.bf16.mxu0 0
        %2882 = vmatpush1.bf16.msra.mxu0 %v2174
        %2883 = vmatprep.subr.bf16.mxu0 0
        %2884 = vmatpush1.bf16.msra.mxu0 %v2175
        %2885 = vmatprep.subr.bf16.mxu0 0
        %2886 = vmatpush1.bf16.msra.mxu0 %v2176
        %2887 = vmatprep.subr.bf16.mxu0 0
        %2888 = vmatpush1.bf16.msra.mxu0 %v2177
        %2889 = vmatprep.subr.bf16.mxu0 0
        %2890 = vmatpush1.bf16.msra.mxu0 %v2178
        %2891 = vmatprep.subr.bf16.mxu0 0
        %2892 = vmatpush1.bf16.msra.mxu0 %v2179
        %2893 = vmatprep.subr.bf16.mxu0 0
        %2894 = vmatpush1.bf16.msra.mxu0 %v2180
        %2895 = vmatprep.subr.bf16.mxu0 0
        %2896 = vmatpush1.bf16.msra.mxu0 %v2181
        %2897 = vmatprep.subr.bf16.mxu0 0
        %2898 = vmatpush1.bf16.msra.mxu0 %v2182
        %2899 = vmatprep.mubr.f32.mxu0 %v377
        %2900 = vmatmul.mubr.f32.gmra.mrb[0].mxu0 %v376
        %v2901 = vpop.f32.mrb[0].mxu0
        %v2902 = vadd.f32 %v2839, %v2901
        %v2903 = vpop.f32.mrb[0].mxu0
        %2904 = vmatprep.mubr.f32.mxu0 %v409
        %2905 = vmatmul.mubr.f32.gmra.mrb[0].mxu0 %v408
        %v2906 = vpop.f32.mrb[0].mxu0
        %v2907 = vadd.f32 %v2844, %v2906
        %v2908 = vpop.f32.mrb[0].mxu0
        %2909 = vmatprep.mubr.f32.mxu0 %v441
        %2910 = vmatmul.mubr.f32.gmra.mrb[0].mxu0 %v440
        %v2911 = vpop.f32.mrb[0].mxu0
        %v2912 = vadd.f32 %v2849, %v2911
        %v2913 = vpop.f32.mrb[0].mxu0
        %2914 = vmatprep.mubr.f32.mxu0 %v473
        %2915 = vmatmul.mubr.f32.gmra.mrb[0].mxu0 %v472
        %v2916 = vpop.f32.mrb[0].mxu0
        %v2917 = vadd.f32 %v2854, %v2916
        %v2918 = vpop.f32.mrb[0].mxu0
        %2919 = vmatprep.mubr.f32.mxu0 %v505
        %2920 = vmatmul.mubr.f32.gmra.mrb[0].mxu0 %v504
        %v2921 = vpop.f32.mrb[0].mxu0
        %v2922 = vadd.f32 %v2859, %v2921
        %v2923 = vpop.f32.mrb[0].mxu0
        %2924 = vmatprep.mubr.f32.mxu0 %v537
        %2925 = vmatmul.mubr.f32.gmra.mrb[0].mxu0 %v536
        %v2926 = vpop.f32.mrb[0].mxu0
        %v2927 = vadd.f32 %v2864, %v2926
        %v2928 = vpop.f32.mrb[0].mxu0
        %2929 = vdwg.mxu0
        %2930 = vmatprep.subr.bf16.mxu0 0
        %2931 = vmatpush1.bf16.msra.mxu0 %v2183
        %2932 = vmatprep.subr.bf16.mxu0 0
        %2933 = vmatpush1.bf16.msra.mxu0 %v2184
        %2934 = vmatprep.subr.bf16.mxu0 0
        %2935 = vmatpush1.bf16.msra.mxu0 %v2185
        %2936 = vmatprep.subr.bf16.mxu0 0
        %2937 = vmatpush1.bf16.msra.mxu0 %v2186
        %2938 = vmatprep.subr.bf16.mxu0 0
        %2939 = vmatpush1.bf16.msra.mxu0 %v2187
        %2940 = vmatprep.subr.bf16.mxu0 0
        %2941 = vmatpush1.bf16.msra.mxu0 %v2188
        %2942 = vmatprep.subr.bf16.mxu0 0
        %2943 = vmatpush1.bf16.msra.mxu0 %v2189
        %2944 = vmatprep.subr.bf16.mxu0 0
        %2945 = vmatpush1.bf16.msra.mxu0 %v2190
        %2946 = vmatprep.subr.bf16.mxu0 0
        %2947 = vmatpush1.bf16.msra.mxu0 %v2191
        %2948 = vmatprep.subr.bf16.mxu0 0
        %2949 = vmatpush1.bf16.msra.mxu0 %v2192
        %2950 = vmatprep.subr.bf16.mxu0 0
        %2951 = vmatpush1.bf16.msra.mxu0 %v2193
        %2952 = vmatprep.subr.bf16.mxu0 0
        %2953 = vmatpush1.bf16.msra.mxu0 %v2194
        %2954 = vmatprep.subr.bf16.mxu0 0
        %2955 = vmatpush1.bf16.msra.mxu0 %v2195
        %2956 = vmatprep.subr.bf16.mxu0 0
        %2957 = vmatpush1.bf16.msra.mxu0 %v2196
        %2958 = vmatprep.subr.bf16.mxu0 0
        %2959 = vmatpush1.bf16.msra.mxu0 %v2197
        %2960 = vmatprep.subr.bf16.mxu0 0
        %2961 = vmatpush1.bf16.msra.mxu0 %v2198
        %2962 = vmatprep.mubr.f32.mxu0 %v379
        %2963 = vmatmul.mubr.f32.gmra.mrb[0].mxu0 %v378
        %v2964 = vpop.f32.mrb[0].mxu0
        %v2965 = vadd.f32 %v2902, %v2964
        %v2966 = vpop.f32.mrb[0].mxu0
        %2967 = vmatprep.mubr.f32.mxu0 %v411
        %2968 = vmatmul.mubr.f32.gmra.mrb[0].mxu0 %v410
        %v2969 = vpop.f32.mrb[0].mxu0
        %v2970 = vadd.f32 %v2907, %v2969
        %v2971 = vpop.f32.mrb[0].mxu0
        %2972 = vmatprep.mubr.f32.mxu0 %v443
        %2973 = vmatmul.mubr.f32.gmra.mrb[0].mxu0 %v442
        %v2974 = vpop.f32.mrb[0].mxu0
        %v2975 = vadd.f32 %v2912, %v2974
        %v2976 = vpop.f32.mrb[0].mxu0
        %2977 = vmatprep.mubr.f32.mxu0 %v475
        %2978 = vmatmul.mubr.f32.gmra.mrb[0].mxu0 %v474
        %v2979 = vpop.f32.mrb[0].mxu0
        %v2980 = vadd.f32 %v2917, %v2979
        %v2981 = vpop.f32.mrb[0].mxu0
        %2982 = vmatprep.mubr.f32.mxu0 %v507
        %2983 = vmatmul.mubr.f32.gmra.mrb[0].mxu0 %v506
        %v2984 = vpop.f32.mrb[0].mxu0
        %v2985 = vadd.f32 %v2922, %v2984
        %v2986 = vpop.f32.mrb[0].mxu0
        %2987 = vmatprep.mubr.f32.mxu0 %v539
        %2988 = vmatmul.mubr.f32.gmra.mrb[0].mxu0 %v538
        %v2989 = vpop.f32.mrb[0].mxu0
        %v2990 = vadd.f32 %v2927, %v2989
        %v2991 = vpop.f32.mrb[0].mxu0
        %2992 = vdwg.mxu0
        %2993 = vmatprep.subr.bf16.mxu0 0
        %2994 = vmatpush1.bf16.msra.mxu0 %v2199
        %2995 = vmatprep.subr.bf16.mxu0 0
        %2996 = vmatpush1.bf16.msra.mxu0 %v2200
        %2997 = vmatprep.subr.bf16.mxu0 0
        %2998 = vmatpush1.bf16.msra.mxu0 %v2201
        %2999 = vmatprep.subr.bf16.mxu0 0
        %3000 = vmatpush1.bf16.msra.mxu0 %v2202
        %3001 = vmatprep.subr.bf16.mxu0 0
        %3002 = vmatpush1.bf16.msra.mxu0 %v2203
        %3003 = vmatprep.subr.bf16.mxu0 0
        %3004 = vmatpush1.bf16.msra.mxu0 %v2204
        %3005 = vmatprep.subr.bf16.mxu0 0
        %3006 = vmatpush1.bf16.msra.mxu0 %v2205
        %3007 = vmatprep.subr.bf16.mxu0 0
        %3008 = vmatpush1.bf16.msra.mxu0 %v2206
        %3009 = vmatprep.subr.bf16.mxu0 0
        %3010 = vmatpush1.bf16.msra.mxu0 %v2207
        %3011 = vmatprep.subr.bf16.mxu0 0
        %3012 = vmatpush1.bf16.msra.mxu0 %v2208
        %3013 = vmatprep.subr.bf16.mxu0 0
        %3014 = vmatpush1.bf16.msra.mxu0 %v2209
        %3015 = vmatprep.subr.bf16.mxu0 0
        %3016 = vmatpush1.bf16.msra.mxu0 %v2210
        %3017 = vmatprep.subr.bf16.mxu0 0
        %3018 = vmatpush1.bf16.msra.mxu0 %v2211
        %3019 = vmatprep.subr.bf16.mxu0 0
        %3020 = vmatpush1.bf16.msra.mxu0 %v2212
        %3021 = vmatprep.subr.bf16.mxu0 0
        %3022 = vmatpush1.bf16.msra.mxu0 %v2213
        %3023 = vmatprep.subr.bf16.mxu0 0
        %3024 = vmatpush1.bf16.msra.mxu0 %v2214
        %3025 = vmatprep.mubr.f32.mxu0 %v381
        %3026 = vmatmul.mubr.f32.gmra.mrb[0].mxu0 %v380
        %v3027 = vpop.f32.mrb[0].mxu0
        %v3028 = vadd.f32 %v2965, %v3027
        %v3029 = vpop.f32.mrb[0].mxu0
        %3030 = vmatprep.mubr.f32.mxu0 %v413
        %3031 = vmatmul.mubr.f32.gmra.mrb[0].mxu0 %v412
        %v3032 = vpop.f32.mrb[0].mxu0
        %v3033 = vadd.f32 %v2970, %v3032
        %v3034 = vpop.f32.mrb[0].mxu0
        %3035 = vmatprep.mubr.f32.mxu0 %v445
        %3036 = vmatmul.mubr.f32.gmra.mrb[0].mxu0 %v444
        %v3037 = vpop.f32.mrb[0].mxu0
        %v3038 = vadd.f32 %v2975, %v3037
        %v3039 = vpop.f32.mrb[0].mxu0
        %3040 = vmatprep.mubr.f32.mxu0 %v477
        %3041 = vmatmul.mubr.f32.gmra.mrb[0].mxu0 %v476
        %v3042 = vpop.f32.mrb[0].mxu0
        %v3043 = vadd.f32 %v2980, %v3042
        %v3044 = vpop.f32.mrb[0].mxu0
        %3045 = vmatprep.mubr.f32.mxu0 %v509
        %3046 = vmatmul.mubr.f32.gmra.mrb[0].mxu0 %v508
        %v3047 = vpop.f32.mrb[0].mxu0
        %v3048 = vadd.f32 %v2985, %v3047
        %v3049 = vpop.f32.mrb[0].mxu0
        %3050 = vmatprep.mubr.f32.mxu0 %v541
        %3051 = vmatmul.mubr.f32.gmra.mrb[0].mxu0 %v540
        %v3052 = vpop.f32.mrb[0].mxu0
        %v3053 = vadd.f32 %v2990, %v3052
        %v3054 = vpop.f32.mrb[0].mxu0
        %3055 = vdwg.mxu0
        %3056 = vmatprep.subr.bf16.mxu0 0
        %3057 = vmatpush1.bf16.msra.mxu0 %v2215
        %3058 = vmatprep.subr.bf16.mxu0 0
        %3059 = vmatpush1.bf16.msra.mxu0 %v2216
        %3060 = vmatprep.subr.bf16.mxu0 0
        %3061 = vmatpush1.bf16.msra.mxu0 %v2217
        %3062 = vmatprep.subr.bf16.mxu0 0
        %3063 = vmatpush1.bf16.msra.mxu0 %v2218
        %3064 = vmatprep.subr.bf16.mxu0 0
        %3065 = vmatpush1.bf16.msra.mxu0 %v2219
        %3066 = vmatprep.subr.bf16.mxu0 0
        %3067 = vmatpush1.bf16.msra.mxu0 %v2220
        %3068 = vmatprep.subr.bf16.mxu0 0
        %3069 = vmatpush1.bf16.msra.mxu0 %v2221
        %3070 = vmatprep.subr.bf16.mxu0 0
        %3071 = vmatpush1.bf16.msra.mxu0 %v2222
        %3072 = vmatprep.subr.bf16.mxu0 0
        %3073 = vmatpush1.bf16.msra.mxu0 %v2223
        %3074 = vmatprep.subr.bf16.mxu0 0
        %3075 = vmatpush1.bf16.msra.mxu0 %v2224
        %3076 = vmatprep.subr.bf16.mxu0 0
        %3077 = vmatpush1.bf16.msra.mxu0 %v2225
        %3078 = vmatprep.subr.bf16.mxu0 0
        %3079 = vmatpush1.bf16.msra.mxu0 %v2226
        %3080 = vmatprep.subr.bf16.mxu0 0
        %3081 = vmatpush1.bf16.msra.mxu0 %v2227
        %3082 = vmatprep.subr.bf16.mxu0 0
        %3083 = vmatpush1.bf16.msra.mxu0 %v2228
        %3084 = vmatprep.subr.bf16.mxu0 0
        %3085 = vmatpush1.bf16.msra.mxu0 %v2229
        %3086 = vmatprep.subr.bf16.mxu0 0
        %3087 = vmatpush1.bf16.msra.mxu0 %v2230
        %3088 = vmatprep.mubr.f32.mxu0 %v383
        %3089 = vmatmul.mubr.f32.gmra.mrb[0].mxu0 %v382
        %v3090 = vpop.f32.mrb[0].mxu0
        %v3091 = vadd.f32 %v3028, %v3090
        %v3092 = vpop.f32.mrb[0].mxu0
        %3093 = vmatprep.mubr.f32.mxu0 %v415
        %3094 = vmatmul.mubr.f32.gmra.mrb[0].mxu0 %v414
        %v3095 = vpop.f32.mrb[0].mxu0
        %v3096 = vadd.f32 %v3033, %v3095
        %v3097 = vpop.f32.mrb[0].mxu0
        %3098 = vmatprep.mubr.f32.mxu0 %v447
        %3099 = vmatmul.mubr.f32.gmra.mrb[0].mxu0 %v446
        %v3100 = vpop.f32.mrb[0].mxu0
        %v3101 = vadd.f32 %v3038, %v3100
        %v3102 = vpop.f32.mrb[0].mxu0
        %3103 = vmatprep.mubr.f32.mxu0 %v479
        %3104 = vmatmul.mubr.f32.gmra.mrb[0].mxu0 %v478
        %v3105 = vpop.f32.mrb[0].mxu0
        %v3106 = vadd.f32 %v3043, %v3105
        %v3107 = vpop.f32.mrb[0].mxu0
        %3108 = vmatprep.mubr.f32.mxu0 %v511
        %3109 = vmatmul.mubr.f32.gmra.mrb[0].mxu0 %v510
        %v3110 = vpop.f32.mrb[0].mxu0
        %v3111 = vadd.f32 %v3048, %v3110
        %v3112 = vpop.f32.mrb[0].mxu0
        %3113 = vmatprep.mubr.f32.mxu0 %v543
        %3114 = vmatmul.mubr.f32.gmra.mrb[0].mxu0 %v542
        %v3115 = vpop.f32.mrb[0].mxu0
        %v3116 = vadd.f32 %v3053, %v3115
        %v3117 = vpop.f32.mrb[0].mxu0
        %3118 = vdwg.mxu0
        %3119 = vmatprep.subr.bf16.mxu0 0
        %3120 = vmatpush1.bf16.msra.mxu0 %v2231
        %3121 = vmatprep.subr.bf16.mxu0 0
        %3122 = vmatpush1.bf16.msra.mxu0 %v2232
        %3123 = vmatprep.subr.bf16.mxu0 0
        %3124 = vmatpush1.bf16.msra.mxu0 %v2233
        %3125 = vmatprep.subr.bf16.mxu0 0
        %3126 = vmatpush1.bf16.msra.mxu0 %v2234
        %3127 = vmatprep.subr.bf16.mxu0 0
        %3128 = vmatpush1.bf16.msra.mxu0 %v2235
        %3129 = vmatprep.subr.bf16.mxu0 0
        %3130 = vmatpush1.bf16.msra.mxu0 %v2236
        %3131 = vmatprep.subr.bf16.mxu0 0
        %3132 = vmatpush1.bf16.msra.mxu0 %v2237
        %3133 = vmatprep.subr.bf16.mxu0 0
        %3134 = vmatpush1.bf16.msra.mxu0 %v2238
        %3135 = vmatprep.subr.bf16.mxu0 0
        %3136 = vmatpush1.bf16.msra.mxu0 %v2239
        %3137 = vmatprep.subr.bf16.mxu0 0
        %3138 = vmatpush1.bf16.msra.mxu0 %v2240
        %3139 = vmatprep.subr.bf16.mxu0 0
        %3140 = vmatpush1.bf16.msra.mxu0 %v2241
        %3141 = vmatprep.subr.bf16.mxu0 0
        %3142 = vmatpush1.bf16.msra.mxu0 %v2242
        %3143 = vmatprep.subr.bf16.mxu0 0
        %3144 = vmatpush1.bf16.msra.mxu0 %v2243
        %3145 = vmatprep.subr.bf16.mxu0 0
        %3146 = vmatpush1.bf16.msra.mxu0 %v2244
        %3147 = vmatprep.subr.bf16.mxu0 0
        %3148 = vmatpush1.bf16.msra.mxu0 %v2245
        %3149 = vmatprep.subr.bf16.mxu0 0
        %3150 = vmatpush1.bf16.msra.mxu0 %v2246
        %3151 = vmatprep.mubr.f32.mxu0 %v385
        %3152 = vmatmul.mubr.f32.gmra.mrb[0].mxu0 %v384
        %v3153 = vpop.f32.mrb[0].mxu0
        %v3154 = vadd.f32 %v3091, %v3153
        %v3155 = vpop.f32.mrb[0].mxu0
        %3156 = vmatprep.mubr.f32.mxu0 %v417
        %3157 = vmatmul.mubr.f32.gmra.mrb[0].mxu0 %v416
        %v3158 = vpop.f32.mrb[0].mxu0
        %v3159 = vadd.f32 %v3096, %v3158
        %v3160 = vpop.f32.mrb[0].mxu0
        %3161 = vmatprep.mubr.f32.mxu0 %v449
        %3162 = vmatmul.mubr.f32.gmra.mrb[0].mxu0 %v448
        %v3163 = vpop.f32.mrb[0].mxu0
        %v3164 = vadd.f32 %v3101, %v3163
        %v3165 = vpop.f32.mrb[0].mxu0
        %3166 = vmatprep.mubr.f32.mxu0 %v481
        %3167 = vmatmul.mubr.f32.gmra.mrb[0].mxu0 %v480
        %v3168 = vpop.f32.mrb[0].mxu0
        %v3169 = vadd.f32 %v3106, %v3168
        %v3170 = vpop.f32.mrb[0].mxu0
        %3171 = vmatprep.mubr.f32.mxu0 %v513
        %3172 = vmatmul.mubr.f32.gmra.mrb[0].mxu0 %v512
        %v3173 = vpop.f32.mrb[0].mxu0
        %v3174 = vadd.f32 %v3111, %v3173
        %v3175 = vpop.f32.mrb[0].mxu0
        %3176 = vmatprep.mubr.f32.mxu0 %v545
        %3177 = vmatmul.mubr.f32.gmra.mrb[0].mxu0 %v544
        %v3178 = vpop.f32.mrb[0].mxu0
        %v3179 = vadd.f32 %v3116, %v3178
        %v3180 = vpop.f32.mrb[0].mxu0
        %3181 = vdwg.mxu0
        %3182 = vmatprep.subr.bf16.mxu0 0
        %3183 = vmatpush1.bf16.msra.mxu0 %v2247
        %3184 = vmatprep.subr.bf16.mxu0 0
        %3185 = vmatpush1.bf16.msra.mxu0 %v2248
        %3186 = vmatprep.subr.bf16.mxu0 0
        %3187 = vmatpush1.bf16.msra.mxu0 %v2249
        %3188 = vmatprep.subr.bf16.mxu0 0
        %3189 = vmatpush1.bf16.msra.mxu0 %v2250
        %3190 = vmatprep.subr.bf16.mxu0 0
        %3191 = vmatpush1.bf16.msra.mxu0 %v2251
        %3192 = vmatprep.subr.bf16.mxu0 0
        %3193 = vmatpush1.bf16.msra.mxu0 %v2252
        %3194 = vmatprep.subr.bf16.mxu0 0
        %3195 = vmatpush1.bf16.msra.mxu0 %v2253
        %3196 = vmatprep.subr.bf16.mxu0 0
        %3197 = vmatpush1.bf16.msra.mxu0 %v2254
        %3198 = vmatprep.subr.bf16.mxu0 0
        %3199 = vmatpush1.bf16.msra.mxu0 %v2255
        %3200 = vmatprep.subr.bf16.mxu0 0
        %3201 = vmatpush1.bf16.msra.mxu0 %v2256
        %3202 = vmatprep.subr.bf16.mxu0 0
        %3203 = vmatpush1.bf16.msra.mxu0 %v2257
        %3204 = vmatprep.subr.bf16.mxu0 0
        %3205 = vmatpush1.bf16.msra.mxu0 %v2258
        %3206 = vmatprep.subr.bf16.mxu0 0
        %3207 = vmatpush1.bf16.msra.mxu0 %v2259
        %3208 = vmatprep.subr.bf16.mxu0 0
        %3209 = vmatpush1.bf16.msra.mxu0 %v2260
        %3210 = vmatprep.subr.bf16.mxu0 0
        %3211 = vmatpush1.bf16.msra.mxu0 %v2261
        %3212 = vmatprep.subr.bf16.mxu0 0
        %3213 = vmatpush1.bf16.msra.mxu0 %v2262
        %3214 = vmatprep.mubr.f32.mxu0 %v387
        %3215 = vmatmul.mubr.f32.gmra.mrb[0].mxu0 %v386
        %v3216 = vpop.f32.mrb[0].mxu0
        %v3217 = vadd.f32 %v3154, %v3216
        %v3218 = vpop.f32.mrb[0].mxu0
        %3219 = vmatprep.mubr.f32.mxu0 %v419
        %3220 = vmatmul.mubr.f32.gmra.mrb[0].mxu0 %v418
        %v3221 = vpop.f32.mrb[0].mxu0
        %v3222 = vadd.f32 %v3159, %v3221
        %v3223 = vpop.f32.mrb[0].mxu0
        %3224 = vmatprep.mubr.f32.mxu0 %v451
        %3225 = vmatmul.mubr.f32.gmra.mrb[0].mxu0 %v450
        %v3226 = vpop.f32.mrb[0].mxu0
        %v3227 = vadd.f32 %v3164, %v3226
        %v3228 = vpop.f32.mrb[0].mxu0
        %3229 = vmatprep.mubr.f32.mxu0 %v483
        %3230 = vmatmul.mubr.f32.gmra.mrb[0].mxu0 %v482
        %v3231 = vpop.f32.mrb[0].mxu0
        %v3232 = vadd.f32 %v3169, %v3231
        %v3233 = vpop.f32.mrb[0].mxu0
        %3234 = vmatprep.mubr.f32.mxu0 %v515
        %3235 = vmatmul.mubr.f32.gmra.mrb[0].mxu0 %v514
        %v3236 = vpop.f32.mrb[0].mxu0
        %v3237 = vadd.f32 %v3174, %v3236
        %v3238 = vpop.f32.mrb[0].mxu0
        %3239 = vmatprep.mubr.f32.mxu0 %v547
        %3240 = vmatmul.mubr.f32.gmra.mrb[0].mxu0 %v546
        %v3241 = vpop.f32.mrb[0].mxu0
        %v3242 = vadd.f32 %v3179, %v3241
        %v3243 = vpop.f32.mrb[0].mxu0
        %3244 = vdwg.mxu0
        %3245 = vmatprep.subr.bf16.mxu0 0
        %3246 = vmatpush1.bf16.msra.mxu0 %v2263
        %3247 = vmatprep.subr.bf16.mxu0 0
        %3248 = vmatpush1.bf16.msra.mxu0 %v2264
        %3249 = vmatprep.subr.bf16.mxu0 0
        %3250 = vmatpush1.bf16.msra.mxu0 %v2265
        %3251 = vmatprep.subr.bf16.mxu0 0
        %3252 = vmatpush1.bf16.msra.mxu0 %v2266
        %3253 = vmatprep.subr.bf16.mxu0 0
        %3254 = vmatpush1.bf16.msra.mxu0 %v2267
        %3255 = vmatprep.subr.bf16.mxu0 0
        %3256 = vmatpush1.bf16.msra.mxu0 %v2268
        %3257 = vmatprep.subr.bf16.mxu0 0
        %3258 = vmatpush1.bf16.msra.mxu0 %v2269
        %3259 = vmatprep.subr.bf16.mxu0 0
        %3260 = vmatpush1.bf16.msra.mxu0 %v2270
        %3261 = vmatprep.subr.bf16.mxu0 0
        %3262 = vmatpush1.bf16.msra.mxu0 %v2271
        %3263 = vmatprep.subr.bf16.mxu0 0
        %3264 = vmatpush1.bf16.msra.mxu0 %v2272
        %3265 = vmatprep.subr.bf16.mxu0 0
        %3266 = vmatpush1.bf16.msra.mxu0 %v2273
        %3267 = vmatprep.subr.bf16.mxu0 0
        %3268 = vmatpush1.bf16.msra.mxu0 %v2274
        %3269 = vmatprep.subr.bf16.mxu0 0
        %3270 = vmatpush1.bf16.msra.mxu0 %v2275
        %3271 = vmatprep.subr.bf16.mxu0 0
        %3272 = vmatpush1.bf16.msra.mxu0 %v2276
        %3273 = vmatprep.subr.bf16.mxu0 0
        %3274 = vmatpush1.bf16.msra.mxu0 %v2277
        %3275 = vmatprep.subr.bf16.mxu0 0
        %3276 = vmatpush1.bf16.msra.mxu0 %v2278
        %3277 = vmatprep.mubr.f32.mxu0 %v389
        %3278 = vmatmul.mubr.f32.gmra.mrb[0].mxu0 %v388
        %v3279 = vpop.f32.mrb[0].mxu0
        %v3280 = vadd.f32 %v3217, %v3279
        %v3281 = vpop.f32.mrb[0].mxu0
        %3282 = vmatprep.mubr.f32.mxu0 %v421
        %3283 = vmatmul.mubr.f32.gmra.mrb[0].mxu0 %v420
        %v3284 = vpop.f32.mrb[0].mxu0
        %v3285 = vadd.f32 %v3222, %v3284
        %v3286 = vpop.f32.mrb[0].mxu0
        %3287 = vmatprep.mubr.f32.mxu0 %v453
        %3288 = vmatmul.mubr.f32.gmra.mrb[0].mxu0 %v452
        %v3289 = vpop.f32.mrb[0].mxu0
        %v3290 = vadd.f32 %v3227, %v3289
        %v3291 = vpop.f32.mrb[0].mxu0
        %3292 = vmatprep.mubr.f32.mxu0 %v485
        %3293 = vmatmul.mubr.f32.gmra.mrb[0].mxu0 %v484
        %v3294 = vpop.f32.mrb[0].mxu0
        %v3295 = vadd.f32 %v3232, %v3294
        %v3296 = vpop.f32.mrb[0].mxu0
        %3297 = vmatprep.mubr.f32.mxu0 %v517
        %3298 = vmatmul.mubr.f32.gmra.mrb[0].mxu0 %v516
        %v3299 = vpop.f32.mrb[0].mxu0
        %v3300 = vadd.f32 %v3237, %v3299
        %v3301 = vpop.f32.mrb[0].mxu0
        %3302 = vmatprep.mubr.f32.mxu0 %v549
        %3303 = vmatmul.mubr.f32.gmra.mrb[0].mxu0 %v548
        %v3304 = vpop.f32.mrb[0].mxu0
        %v3305 = vadd.f32 %v3242, %v3304
        %v3306 = vpop.f32.mrb[0].mxu0
        %3307 = vdwg.mxu0
        %3308 = vmatprep.subr.bf16.mxu0 0
        %3309 = vmatpush1.bf16.msra.mxu0 %v2279
        %3310 = vmatprep.subr.bf16.mxu0 0
        %3311 = vmatpush1.bf16.msra.mxu0 %v2280
        %3312 = vmatprep.subr.bf16.mxu0 0
        %3313 = vmatpush1.bf16.msra.mxu0 %v2281
        %3314 = vmatprep.subr.bf16.mxu0 0
        %3315 = vmatpush1.bf16.msra.mxu0 %v2282
        %3316 = vmatprep.subr.bf16.mxu0 0
        %3317 = vmatpush1.bf16.msra.mxu0 %v2283
        %3318 = vmatprep.subr.bf16.mxu0 0
        %3319 = vmatpush1.bf16.msra.mxu0 %v2284
        %3320 = vmatprep.subr.bf16.mxu0 0
        %3321 = vmatpush1.bf16.msra.mxu0 %v2285
        %3322 = vmatprep.subr.bf16.mxu0 0
        %3323 = vmatpush1.bf16.msra.mxu0 %v2286
        %3324 = vmatprep.subr.bf16.mxu0 0
        %3325 = vmatpush1.bf16.msra.mxu0 %v2287
        %3326 = vmatprep.subr.bf16.mxu0 0
        %3327 = vmatpush1.bf16.msra.mxu0 %v2288
        %3328 = vmatprep.subr.bf16.mxu0 0
        %3329 = vmatpush1.bf16.msra.mxu0 %v2289
        %3330 = vmatprep.subr.bf16.mxu0 0
        %3331 = vmatpush1.bf16.msra.mxu0 %v2290
        %3332 = vmatprep.subr.bf16.mxu0 0
        %3333 = vmatpush1.bf16.msra.mxu0 %v2291
        %3334 = vmatprep.subr.bf16.mxu0 0
        %3335 = vmatpush1.bf16.msra.mxu0 %v2292
        %3336 = vmatprep.subr.bf16.mxu0 0
        %3337 = vmatpush1.bf16.msra.mxu0 %v2293
        %3338 = vmatprep.subr.bf16.mxu0 0
        %3339 = vmatpush1.bf16.msra.mxu0 %v2294
        %3340 = vmatprep.mubr.f32.mxu0 %v391
        %3341 = vmatmul.mubr.f32.gmra.mrb[0].mxu0 %v390
        %v3342 = vpop.f32.mrb[0].mxu0
        %v3343 = vadd.f32 %v3280, %v3342
        %v3344 = vpop.f32.mrb[0].mxu0
        %3345 = vmatprep.mubr.f32.mxu0 %v423
        %3346 = vmatmul.mubr.f32.gmra.mrb[0].mxu0 %v422
        %v3347 = vpop.f32.mrb[0].mxu0
        %v3348 = vadd.f32 %v3285, %v3347
        %v3349 = vpop.f32.mrb[0].mxu0
        %3350 = vmatprep.mubr.f32.mxu0 %v455
        %3351 = vmatmul.mubr.f32.gmra.mrb[0].mxu0 %v454
        %v3352 = vpop.f32.mrb[0].mxu0
        %v3353 = vadd.f32 %v3290, %v3352
        %v3354 = vpop.f32.mrb[0].mxu0
        %3355 = vmatprep.mubr.f32.mxu0 %v487
        %3356 = vmatmul.mubr.f32.gmra.mrb[0].mxu0 %v486
        %v3357 = vpop.f32.mrb[0].mxu0
        %v3358 = vadd.f32 %v3295, %v3357
        %v3359 = vpop.f32.mrb[0].mxu0
        %3360 = vmatprep.mubr.f32.mxu0 %v519
        %3361 = vmatmul.mubr.f32.gmra.mrb[0].mxu0 %v518
        %v3362 = vpop.f32.mrb[0].mxu0
        %v3363 = vadd.f32 %v3300, %v3362
        %v3364 = vpop.f32.mrb[0].mxu0
        %3365 = vmatprep.mubr.f32.mxu0 %v551
        %3366 = vmatmul.mubr.f32.gmra.mrb[0].mxu0 %v550
        %v3367 = vpop.f32.mrb[0].mxu0
        %v3368 = vadd.f32 %v3305, %v3367
        %v3369 = vpop.f32.mrb[0].mxu0
        %3370 = vdwg.mxu0
        %3371 = vmatprep.subr.bf16.mxu0 0
        %3372 = vmatpush1.bf16.msra.mxu0 %v2295
        %3373 = vmatprep.subr.bf16.mxu0 0
        %3374 = vmatpush1.bf16.msra.mxu0 %v2296
        %3375 = vmatprep.subr.bf16.mxu0 0
        %3376 = vmatpush1.bf16.msra.mxu0 %v2297
        %3377 = vmatprep.subr.bf16.mxu0 0
        %3378 = vmatpush1.bf16.msra.mxu0 %v2298
        %3379 = vmatprep.subr.bf16.mxu0 0
        %3380 = vmatpush1.bf16.msra.mxu0 %v2299
        %3381 = vmatprep.subr.bf16.mxu0 0
        %3382 = vmatpush1.bf16.msra.mxu0 %v2300
        %3383 = vmatprep.subr.bf16.mxu0 0
        %3384 = vmatpush1.bf16.msra.mxu0 %v2301
        %3385 = vmatprep.subr.bf16.mxu0 0
        %3386 = vmatpush1.bf16.msra.mxu0 %v2302
        %3387 = vmatprep.subr.bf16.mxu0 0
        %3388 = vmatpush1.bf16.msra.mxu0 %v2303
        %3389 = vmatprep.subr.bf16.mxu0 0
        %3390 = vmatpush1.bf16.msra.mxu0 %v2304
        %3391 = vmatprep.subr.bf16.mxu0 0
        %3392 = vmatpush1.bf16.msra.mxu0 %v2305
        %3393 = vmatprep.subr.bf16.mxu0 0
        %3394 = vmatpush1.bf16.msra.mxu0 %v2306
        %3395 = vmatprep.subr.bf16.mxu0 0
        %3396 = vmatpush1.bf16.msra.mxu0 %v2307
        %3397 = vmatprep.subr.bf16.mxu0 0
        %3398 = vmatpush1.bf16.msra.mxu0 %v2308
        %3399 = vmatprep.subr.bf16.mxu0 0
        %3400 = vmatpush1.bf16.msra.mxu0 %v2309
        %3401 = vmatprep.subr.bf16.mxu0 0
        %3402 = vmatpush1.bf16.msra.mxu0 %v2310
        %3403 = vmatprep.mubr.f32.mxu0 %v393
        %3404 = vmatmul.mubr.f32.gmra.mrb[0].mxu0 %v392
        %v3405 = vpop.f32.mrb[0].mxu0
        %v3406 = vadd.f32 %v3343, %v3405
        %v3407 = vpop.f32.mrb[0].mxu0
        %3408 = vmatprep.mubr.f32.mxu0 %v425
        %3409 = vmatmul.mubr.f32.gmra.mrb[0].mxu0 %v424
        %v3410 = vpop.f32.mrb[0].mxu0
        %v3411 = vadd.f32 %v3348, %v3410
        %v3412 = vpop.f32.mrb[0].mxu0
        %3413 = vmatprep.mubr.f32.mxu0 %v457
        %3414 = vmatmul.mubr.f32.gmra.mrb[0].mxu0 %v456
        %v3415 = vpop.f32.mrb[0].mxu0
        %v3416 = vadd.f32 %v3353, %v3415
        %v3417 = vpop.f32.mrb[0].mxu0
        %3418 = vmatprep.mubr.f32.mxu0 %v489
        %3419 = vmatmul.mubr.f32.gmra.mrb[0].mxu0 %v488
        %v3420 = vpop.f32.mrb[0].mxu0
        %v3421 = vadd.f32 %v3358, %v3420
        %v3422 = vpop.f32.mrb[0].mxu0
        %3423 = vmatprep.mubr.f32.mxu0 %v521
        %3424 = vmatmul.mubr.f32.gmra.mrb[0].mxu0 %v520
        %v3425 = vpop.f32.mrb[0].mxu0
        %v3426 = vadd.f32 %v3363, %v3425
        %v3427 = vpop.f32.mrb[0].mxu0
        %3428 = vmatprep.mubr.f32.mxu0 %v553
        %3429 = vmatmul.mubr.f32.gmra.mrb[0].mxu0 %v552
        %v3430 = vpop.f32.mrb[0].mxu0
        %v3431 = vadd.f32 %v3368, %v3430
        %v3432 = vpop.f32.mrb[0].mxu0
        %3433 = vdwg.mxu0
        %3434 = vmatprep.subr.bf16.mxu0 0
        %3435 = vmatpush1.bf16.msra.mxu0 %v2311
        %3436 = vmatprep.subr.bf16.mxu0 0
        %3437 = vmatpush1.bf16.msra.mxu0 %v2312
        %3438 = vmatprep.subr.bf16.mxu0 0
        %3439 = vmatpush1.bf16.msra.mxu0 %v2313
        %3440 = vmatprep.subr.bf16.mxu0 0
        %3441 = vmatpush1.bf16.msra.mxu0 %v2314
        %3442 = vmatprep.subr.bf16.mxu0 0
        %3443 = vmatpush1.bf16.msra.mxu0 %v2315
        %3444 = vmatprep.subr.bf16.mxu0 0
        %3445 = vmatpush1.bf16.msra.mxu0 %v2316
        %3446 = vmatprep.subr.bf16.mxu0 0
        %3447 = vmatpush1.bf16.msra.mxu0 %v2317
        %3448 = vmatprep.subr.bf16.mxu0 0
        %3449 = vmatpush1.bf16.msra.mxu0 %v2318
        %3450 = vmatprep.subr.bf16.mxu0 0
        %3451 = vmatpush1.bf16.msra.mxu0 %v2319
        %3452 = vmatprep.subr.bf16.mxu0 0
        %3453 = vmatpush1.bf16.msra.mxu0 %v2320
        %3454 = vmatprep.subr.bf16.mxu0 0
        %3455 = vmatpush1.bf16.msra.mxu0 %v2321
        %3456 = vmatprep.subr.bf16.mxu0 0
        %3457 = vmatpush1.bf16.msra.mxu0 %v2322
        %3458 = vmatprep.subr.bf16.mxu0 0
        %3459 = vmatpush1.bf16.msra.mxu0 %v2323
        %3460 = vmatprep.subr.bf16.mxu0 0
        %3461 = vmatpush1.bf16.msra.mxu0 %v2324
        %3462 = vmatprep.subr.bf16.mxu0 0
        %3463 = vmatpush1.bf16.msra.mxu0 %v2325
        %3464 = vmatprep.subr.bf16.mxu0 0
        %3465 = vmatpush1.bf16.msra.mxu0 %v2326
        %3466 = vmatprep.mubr.f32.mxu0 %v395
        %3467 = vmatmul.mubr.f32.gmra.mrb[0].mxu0 %v394
        %v3468 = vpop.f32.mrb[0].mxu0
        %v3469 = vadd.f32 %v3406, %v3468
        %v3470 = vpop.f32.mrb[0].mxu0
        %3471 = vmatprep.mubr.f32.mxu0 %v427
        %3472 = vmatmul.mubr.f32.gmra.mrb[0].mxu0 %v426
        %v3473 = vpop.f32.mrb[0].mxu0
        %v3474 = vadd.f32 %v3411, %v3473
        %v3475 = vpop.f32.mrb[0].mxu0
        %3476 = vmatprep.mubr.f32.mxu0 %v459
        %3477 = vmatmul.mubr.f32.gmra.mrb[0].mxu0 %v458
        %v3478 = vpop.f32.mrb[0].mxu0
        %v3479 = vadd.f32 %v3416, %v3478
        %v3480 = vpop.f32.mrb[0].mxu0
        %3481 = vmatprep.mubr.f32.mxu0 %v491
        %3482 = vmatmul.mubr.f32.gmra.mrb[0].mxu0 %v490
        %v3483 = vpop.f32.mrb[0].mxu0
        %v3484 = vadd.f32 %v3421, %v3483
        %v3485 = vpop.f32.mrb[0].mxu0
        %3486 = vmatprep.mubr.f32.mxu0 %v523
        %3487 = vmatmul.mubr.f32.gmra.mrb[0].mxu0 %v522
        %v3488 = vpop.f32.mrb[0].mxu0
        %v3489 = vadd.f32 %v3426, %v3488
        %v3490 = vpop.f32.mrb[0].mxu0
        %3491 = vmatprep.mubr.f32.mxu0 %v555
        %3492 = vmatmul.mubr.f32.gmra.mrb[0].mxu0 %v554
        %v3493 = vpop.f32.mrb[0].mxu0
        %v3494 = vadd.f32 %v3431, %v3493
        %v3495 = vpop.f32.mrb[0].mxu0
        %3496 = vdwg.mxu0
        %3497 = vmatprep.subr.bf16.mxu0 0
        %3498 = vmatpush1.bf16.msra.mxu0 %v2327
        %3499 = vmatprep.subr.bf16.mxu0 0
        %3500 = vmatpush1.bf16.msra.mxu0 %v2328
        %3501 = vmatprep.subr.bf16.mxu0 0
        %3502 = vmatpush1.bf16.msra.mxu0 %v2329
        %3503 = vmatprep.subr.bf16.mxu0 0
        %3504 = vmatpush1.bf16.msra.mxu0 %v2330
        %3505 = vmatprep.subr.bf16.mxu0 0
        %3506 = vmatpush1.bf16.msra.mxu0 %v2331
        %3507 = vmatprep.subr.bf16.mxu0 0
        %3508 = vmatpush1.bf16.msra.mxu0 %v2332
        %3509 = vmatprep.subr.bf16.mxu0 0
        %3510 = vmatpush1.bf16.msra.mxu0 %v2333
        %3511 = vmatprep.subr.bf16.mxu0 0
        %3512 = vmatpush1.bf16.msra.mxu0 %v2334
        %3513 = vmatprep.subr.bf16.mxu0 0
        %3514 = vmatpush1.bf16.msra.mxu0 %v2335
        %3515 = vmatprep.subr.bf16.mxu0 0
        %3516 = vmatpush1.bf16.msra.mxu0 %v2336
        %3517 = vmatprep.subr.bf16.mxu0 0
        %3518 = vmatpush1.bf16.msra.mxu0 %v2337
        %3519 = vmatprep.subr.bf16.mxu0 0
        %3520 = vmatpush1.bf16.msra.mxu0 %v2338
        %3521 = vmatprep.subr.bf16.mxu0 0
        %3522 = vmatpush1.bf16.msra.mxu0 %v2339
        %3523 = vmatprep.subr.bf16.mxu0 0
        %3524 = vmatpush1.bf16.msra.mxu0 %v2340
        %3525 = vmatprep.subr.bf16.mxu0 0
        %3526 = vmatpush1.bf16.msra.mxu0 %v2341
        %3527 = vmatprep.subr.bf16.mxu0 0
        %3528 = vmatpush1.bf16.msra.mxu0 %v2342
        %3529 = vmatprep.mubr.f32.mxu0 %v397
        %3530 = vmatmul.mubr.f32.gmra.mrb[0].mxu0 %v396
        %v3531 = vpop.f32.mrb[0].mxu0
        %v3532 = vadd.f32 %v3469, %v3531
        %v3533 = vpop.f32.mrb[0].mxu0
        %3534 = vmatprep.mubr.f32.mxu0 %v429
        %3535 = vmatmul.mubr.f32.gmra.mrb[0].mxu0 %v428
        %v3536 = vpop.f32.mrb[0].mxu0
        %v3537 = vadd.f32 %v3474, %v3536
        %v3538 = vpop.f32.mrb[0].mxu0
        %3539 = vmatprep.mubr.f32.mxu0 %v461
        %3540 = vmatmul.mubr.f32.gmra.mrb[0].mxu0 %v460
        %v3541 = vpop.f32.mrb[0].mxu0
        %v3542 = vadd.f32 %v3479, %v3541
        %v3543 = vpop.f32.mrb[0].mxu0
        %3544 = vmatprep.mubr.f32.mxu0 %v493
        %3545 = vmatmul.mubr.f32.gmra.mrb[0].mxu0 %v492
        %v3546 = vpop.f32.mrb[0].mxu0
        %v3547 = vadd.f32 %v3484, %v3546
        %v3548 = vpop.f32.mrb[0].mxu0
        %3549 = vmatprep.mubr.f32.mxu0 %v525
        %3550 = vmatmul.mubr.f32.gmra.mrb[0].mxu0 %v524
        %v3551 = vpop.f32.mrb[0].mxu0
        %v3552 = vadd.f32 %v3489, %v3551
        %v3553 = vpop.f32.mrb[0].mxu0
        %3554 = vmatprep.mubr.f32.mxu0 %v557
        %3555 = vmatmul.mubr.f32.gmra.mrb[0].mxu0 %v556
        %v3556 = vpop.f32.mrb[0].mxu0
        %v3557 = vadd.f32 %v3494, %v3556
        %v3558 = vpop.f32.mrb[0].mxu0
        %3559 = vdwg.mxu0
        %3560 = vmatprep.subr.bf16.mxu0 0
        %3561 = vmatpush1.bf16.msra.mxu0 %v2343
        %3562 = vmatprep.subr.bf16.mxu0 0
        %3563 = vmatpush1.bf16.msra.mxu0 %v2344
        %3564 = vmatprep.subr.bf16.mxu0 0
        %3565 = vmatpush1.bf16.msra.mxu0 %v2345
        %3566 = vmatprep.subr.bf16.mxu0 0
        %3567 = vmatpush1.bf16.msra.mxu0 %v2346
        %3568 = vmatprep.subr.bf16.mxu0 0
        %3569 = vmatpush1.bf16.msra.mxu0 %v2347
        %3570 = vmatprep.subr.bf16.mxu0 0
        %3571 = vmatpush1.bf16.msra.mxu0 %v2348
        %3572 = vmatprep.subr.bf16.mxu0 0
        %3573 = vmatpush1.bf16.msra.mxu0 %v2349
        %3574 = vmatprep.subr.bf16.mxu0 0
        %3575 = vmatpush1.bf16.msra.mxu0 %v2350
        %3576 = vmatprep.subr.bf16.mxu0 0
        %3577 = vmatpush1.bf16.msra.mxu0 %v2351
        %3578 = vmatprep.subr.bf16.mxu0 0
        %3579 = vmatpush1.bf16.msra.mxu0 %v2352
        %3580 = vmatprep.subr.bf16.mxu0 0
        %3581 = vmatpush1.bf16.msra.mxu0 %v2353
        %3582 = vmatprep.subr.bf16.mxu0 0
        %3583 = vmatpush1.bf16.msra.mxu0 %v2354
        %3584 = vmatprep.subr.bf16.mxu0 0
        %3585 = vmatpush1.bf16.msra.mxu0 %v2355
        %3586 = vmatprep.subr.bf16.mxu0 0
        %3587 = vmatpush1.bf16.msra.mxu0 %v2356
        %3588 = vmatprep.subr.bf16.mxu0 0
        %3589 = vmatpush1.bf16.msra.mxu0 %v2357
        %3590 = vmatprep.subr.bf16.mxu0 0
        %3591 = vmatpush1.bf16.msra.mxu0 %v2358
        %3592 = vmatprep.mubr.f32.mxu0 %v399
        %3593 = vmatmul.mubr.f32.gmra.mrb[0].mxu0 %v398
        %v3594 = vpop.f32.mrb[0].mxu0
        %v3595 = vadd.f32 %v3532, %v3594
        %v3596 = vpop.f32.mrb[0].mxu0
        %3597 = vmatprep.mubr.f32.mxu0 %v431
        %3598 = vmatmul.mubr.f32.gmra.mrb[0].mxu0 %v430
        %v3599 = vpop.f32.mrb[0].mxu0
        %v3600 = vadd.f32 %v3537, %v3599
        %v3601 = vpop.f32.mrb[0].mxu0
        %3602 = vmatprep.mubr.f32.mxu0 %v463
        %3603 = vmatmul.mubr.f32.gmra.mrb[0].mxu0 %v462
        %v3604 = vpop.f32.mrb[0].mxu0
        %v3605 = vadd.f32 %v3542, %v3604
        %v3606 = vpop.f32.mrb[0].mxu0
        %3607 = vmatprep.mubr.f32.mxu0 %v495
        %3608 = vmatmul.mubr.f32.gmra.mrb[0].mxu0 %v494
        %v3609 = vpop.f32.mrb[0].mxu0
        %v3610 = vadd.f32 %v3547, %v3609
        %v3611 = vpop.f32.mrb[0].mxu0
        %3612 = vmatprep.mubr.f32.mxu0 %v527
        %3613 = vmatmul.mubr.f32.gmra.mrb[0].mxu0 %v526
        %v3614 = vpop.f32.mrb[0].mxu0
        %v3615 = vadd.f32 %v3552, %v3614
        %v3616 = vpop.f32.mrb[0].mxu0
        %3617 = vmatprep.mubr.f32.mxu0 %v559
        %3618 = vmatmul.mubr.f32.gmra.mrb[0].mxu0 %v558
        %v3619 = vpop.f32.mrb[0].mxu0
        %v3620 = vadd.f32 %v3557, %v3619
        %v3621 = vpop.f32.mrb[0].mxu0
        %3622 = vdwg.mxu0
        %v3623 = vmax.f32 %v3595, 0.0
        %v3624 = vmax.f32 %v3600, 0.0
        %v3625 = vmax.f32 %v3605, 0.0
        %v3626 = vmax.f32 %v3610, 0.0
        %v3627 = vmax.f32 %v3615, 0.0
        %v3628 = vmax.f32 %v3620, 0.0
        %v3629 = vld [vmem:[#allocation7] sm:$0xff]
        %v3630 = vld [vmem:[#allocation7 + $0x8] sm:$0xff]
        %v3631 = vld [vmem:[#allocation7 + $0x10] sm:$0xff]
        %v3632 = vld [vmem:[#allocation7 + $0x18] sm:$0xff]
        %v3633 = vld [vmem:[#allocation8] sm:$0x1]
        %v3635 = vlaneseq
        %v3636 = vshrl.u32 %v3635, 7
        %v3637 = vsub.s32 0, %v3636
        %v3638 = vrot.slane %v3633, %v3637
        %vm3640 = vcmask 261120
        %v3642 = vsel %vm3640, %v3623, 0
        %v3645 = vsel %vm3640, %v3624, 0
        %v3648 = vsel %vm3640, %v3625, 0
        %v3651 = vsel %vm3640, %v3626, 0
        %v3654 = vsel %vm3640, %v3627, 0
        %v3657 = vsel %vm3640, %v3628, 0
        %3659 = vmatprep.subr.mxu0 0.0
        %3660 = vmatpush1.msra.mxu0 %v3629
        %3661 = vmatprep.subr.mxu0 0.0
        %3662 = vmatpush1.msra.mxu0 %v3630
        %3663 = vmatprep.subr.mxu0 0.0
        %3664 = vmatpush1.msra.mxu0 %v3631
        %3665 = vmatprep.subr.mxu0 0.0
        %3666 = vmatpush1.msra.mxu0 %v3632
        %3667 = vmatprep.subr.mxu0 0.0
        %3668 = vmatpush1.msra.mxu0 0.0
        %3669 = vmatprep.subr.mxu0 0.0
        %3670 = vmatpush1.msra.mxu0 0.0
        %3671 = vmatprep.subr.mxu0 0.0
        %3672 = vmatpush1.msra.mxu0 0.0
        %3673 = vmatprep.subr.mxu0 0.0
        %3674 = vmatpush1.msra.mxu0 0.0
        %3675 = vmatprep.subr.mxu0 0.0
        %3676 = vmatpush1.msra.mxu0 0.0
        %3677 = vmatprep.subr.mxu0 0.0
        %3678 = vmatpush1.msra.mxu0 0.0
        %3679 = vmatprep.subr.mxu0 0.0
        %3680 = vmatpush1.msra.mxu0 0.0
        %3681 = vmatprep.subr.mxu0 0.0
        %3682 = vmatpush1.msra.mxu0 0.0
        %3683 = vmatprep.subr.mxu0 0.0
        %3684 = vmatpush1.msra.mxu0 0.0
        %3685 = vmatprep.subr.mxu0 0.0
        %3686 = vmatpush1.msra.mxu0 0.0
        %3687 = vmatprep.subr.mxu0 0.0
        %3688 = vmatpush1.msra.mxu0 0.0
        %3689 = vmatprep.subr.mxu0 0.0
        %3690 = vmatpush1.msra.mxu0 0.0
        %3691 = vmatprep.subr.mxu0 0.0
        %3692 = vmatpush1.msra.mxu0 0.0
        %3693 = vmatprep.subr.mxu0 0.0
        %3694 = vmatpush1.msra.mxu0 0.0
        %3695 = vmatprep.subr.mxu0 0.0
        %3696 = vmatpush1.msra.mxu0 0.0
        %3697 = vmatprep.subr.mxu0 0.0
        %3698 = vmatpush1.msra.mxu0 0.0
        %3699 = vmatprep.subr.mxu0 0.0
        %3700 = vmatpush1.msra.mxu0 0.0
        %3701 = vmatprep.subr.mxu0 0.0
        %3702 = vmatpush1.msra.mxu0 0.0
        %3703 = vmatprep.subr.mxu0 0.0
        %3704 = vmatpush1.msra.mxu0 0.0
        %3705 = vmatprep.subr.mxu0 0.0
        %3706 = vmatpush1.msra.mxu0 0.0
        %3707 = vmatprep.subr.mxu0 0.0
        %3708 = vmatpush1.msra.mxu0 0.0
        %3709 = vmatprep.subr.mxu0 0.0
        %3710 = vmatpush1.msra.mxu0 0.0
        %3711 = vmatprep.subr.mxu0 0.0
        %3712 = vmatpush1.msra.mxu0 0.0
        %3713 = vmatprep.subr.mxu0 0.0
        %3714 = vmatpush1.msra.mxu0 0.0
        %3715 = vmatprep.subr.mxu0 0.0
        %3716 = vmatpush1.msra.mxu0 0.0
        %3717 = vmatprep.subr.mxu0 0.0
        %3718 = vmatpush1.msra.mxu0 0.0
        %3719 = vmatprep.subr.mxu0 0.0
        %3720 = vmatpush1.msra.mxu0 0.0
        %3721 = vmatprep.subr.mxu0 0.0
        %3722 = vmatpush1.msra.mxu0 0.0
        %3723 = vmatprep.mubr.f32.mxu0 0.0
        %3724 = vmatmul.mubr.f32.gmra.mrb[0].mxu0 %v3642
        %v3725 = vpop.f32.mrb[0].mxu0
        %v3726 = vadd.f32 %v3638, %v3725
        %v3727 = vpop.f32.mrb[0].mxu0
        %3728 = vmatprep.mubr.f32.mxu0 0.0
        %3729 = vmatmul.mubr.f32.gmra.mrb[0].mxu0 %v3645
        %v3730 = vpop.f32.mrb[0].mxu0
        %v3731 = vadd.f32 %v3638, %v3730
        %v3732 = vpop.f32.mrb[0].mxu0
        %3733 = vmatprep.mubr.f32.mxu0 0.0
        %3734 = vmatmul.mubr.f32.gmra.mrb[0].mxu0 %v3648
        %v3735 = vpop.f32.mrb[0].mxu0
        %v3736 = vadd.f32 %v3638, %v3735
        %v3737 = vpop.f32.mrb[0].mxu0
        %3738 = vmatprep.mubr.f32.mxu0 0.0
        %3739 = vmatmul.mubr.f32.gmra.mrb[0].mxu0 %v3651
        %v3740 = vpop.f32.mrb[0].mxu0
        %v3741 = vadd.f32 %v3638, %v3740
        %v3742 = vpop.f32.mrb[0].mxu0
        %3743 = vmatprep.mubr.f32.mxu0 0.0
        %3744 = vmatmul.mubr.f32.gmra.mrb[0].mxu0 %v3654
        %v3745 = vpop.f32.mrb[0].mxu0
        %v3746 = vadd.f32 %v3638, %v3745
        %v3747 = vpop.f32.mrb[0].mxu0
        %3748 = vmatprep.mubr.f32.mxu0 0.0
        %3749 = vmatmul.mubr.f32.gmra.mrb[0].mxu0 %v3657
        %v3750 = vpop.f32.mrb[0].mxu0
        %v3751 = vadd.f32 %v3638, %v3750
        %v3752 = vpop.f32.mrb[0].mxu0
        %3753 = vdwg.mxu0
        %v3754 = vmax.f32 %v3726, 0.0
        %v3755 = vmax.f32 %v3731, 0.0
        %v3756 = vmax.f32 %v3736, 0.0
        %v3757 = vmax.f32 %v3741, 0.0
        %v3758 = vmax.f32 %v3746, 0.0
        %v3759 = vmax.f32 %v3751, 0.0
        %v3760 = vld [vmem:[#allocation10] sm:$0xff]
        %v3761 = vld [vmem:[#allocation10 + $0x8] sm:$0xff]
        %v3762 = vld [vmem:[#allocation10 + $0x10] sm:$0xff]
        %v3763 = vld [vmem:[#allocation10 + $0x18] sm:$0xff]
        %v3764 = vld [vmem:[#allocation11] sm:$0x1]
        %v3766 = vlaneseq
        %v3767 = vshrl.u32 %v3766, 7
        %v3768 = vsub.s32 0, %v3767
        %v3769 = vrot.slane %v3764, %v3768
        %v3772 = vsel %vm3640, %v3754, 0
        %v3775 = vsel %vm3640, %v3755, 0
        %v3778 = vsel %vm3640, %v3756, 0
        %v3781 = vsel %vm3640, %v3757, 0
        %v3784 = vsel %vm3640, %v3758, 0
        %v3787 = vsel %vm3640, %v3759, 0
        %3789 = vmatprep.subr.mxu0 0.0
        %3790 = vmatpush1.msra.mxu0 %v3760
        %3791 = vmatprep.subr.mxu0 0.0
        %3792 = vmatpush1.msra.mxu0 %v3761
        %3793 = vmatprep.subr.mxu0 0.0
        %3794 = vmatpush1.msra.mxu0 %v3762
        %3795 = vmatprep.subr.mxu0 0.0
        %3796 = vmatpush1.msra.mxu0 %v3763
        %3797 = vmatprep.subr.mxu0 0.0
        %3798 = vmatpush1.msra.mxu0 0.0
        %3799 = vmatprep.subr.mxu0 0.0
        %3800 = vmatpush1.msra.mxu0 0.0
        %3801 = vmatprep.subr.mxu0 0.0
        %3802 = vmatpush1.msra.mxu0 0.0
        %3803 = vmatprep.subr.mxu0 0.0
        %3804 = vmatpush1.msra.mxu0 0.0
        %3805 = vmatprep.subr.mxu0 0.0
        %3806 = vmatpush1.msra.mxu0 0.0
        %3807 = vmatprep.subr.mxu0 0.0
        %3808 = vmatpush1.msra.mxu0 0.0
        %3809 = vmatprep.subr.mxu0 0.0
        %3810 = vmatpush1.msra.mxu0 0.0
        %3811 = vmatprep.subr.mxu0 0.0
        %3812 = vmatpush1.msra.mxu0 0.0
        %3813 = vmatprep.subr.mxu0 0.0
        %3814 = vmatpush1.msra.mxu0 0.0
        %3815 = vmatprep.subr.mxu0 0.0
        %3816 = vmatpush1.msra.mxu0 0.0
        %3817 = vmatprep.subr.mxu0 0.0
        %3818 = vmatpush1.msra.mxu0 0.0
        %3819 = vmatprep.subr.mxu0 0.0
        %3820 = vmatpush1.msra.mxu0 0.0
        %3821 = vmatprep.subr.mxu0 0.0
        %3822 = vmatpush1.msra.mxu0 0.0
        %3823 = vmatprep.subr.mxu0 0.0
        %3824 = vmatpush1.msra.mxu0 0.0
        %3825 = vmatprep.subr.mxu0 0.0
        %3826 = vmatpush1.msra.mxu0 0.0
        %3827 = vmatprep.subr.mxu0 0.0
        %3828 = vmatpush1.msra.mxu0 0.0
        %3829 = vmatprep.subr.mxu0 0.0
        %3830 = vmatpush1.msra.mxu0 0.0
        %3831 = vmatprep.subr.mxu0 0.0
        %3832 = vmatpush1.msra.mxu0 0.0
        %3833 = vmatprep.subr.mxu0 0.0
        %3834 = vmatpush1.msra.mxu0 0.0
        %3835 = vmatprep.subr.mxu0 0.0
        %3836 = vmatpush1.msra.mxu0 0.0
        %3837 = vmatprep.subr.mxu0 0.0
        %3838 = vmatpush1.msra.mxu0 0.0
        %3839 = vmatprep.subr.mxu0 0.0
        %3840 = vmatpush1.msra.mxu0 0.0
        %3841 = vmatprep.subr.mxu0 0.0
        %3842 = vmatpush1.msra.mxu0 0.0
        %3843 = vmatprep.subr.mxu0 0.0
        %3844 = vmatpush1.msra.mxu0 0.0
        %3845 = vmatprep.subr.mxu0 0.0
        %3846 = vmatpush1.msra.mxu0 0.0
        %3847 = vmatprep.subr.mxu0 0.0
        %3848 = vmatpush1.msra.mxu0 0.0
        %3849 = vmatprep.subr.mxu0 0.0
        %3850 = vmatpush1.msra.mxu0 0.0
        %3851 = vmatprep.subr.mxu0 0.0
        %3852 = vmatpush1.msra.mxu0 0.0
        %3853 = vmatprep.mubr.f32.mxu0 0.0
        %3854 = vmatmul.mubr.f32.gmra.mrb[0].mxu0 %v3772
        %v3855 = vpop.f32.mrb[0].mxu0
        %v3856 = vadd.f32 %v3769, %v3855
        %v3857 = vpop.f32.mrb[0].mxu0
        %3858 = vmatprep.mubr.f32.mxu0 0.0
        %3859 = vmatmul.mubr.f32.gmra.mrb[0].mxu0 %v3775
        %v3860 = vpop.f32.mrb[0].mxu0
        %v3861 = vadd.f32 %v3769, %v3860
        %v3862 = vpop.f32.mrb[0].mxu0
        %3863 = vmatprep.mubr.f32.mxu0 0.0
        %3864 = vmatmul.mubr.f32.gmra.mrb[0].mxu0 %v3778
        %v3865 = vpop.f32.mrb[0].mxu0
        %v3866 = vadd.f32 %v3769, %v3865
        %v3867 = vpop.f32.mrb[0].mxu0
        %3868 = vmatprep.mubr.f32.mxu0 0.0
        %3869 = vmatmul.mubr.f32.gmra.mrb[0].mxu0 %v3781
        %v3870 = vpop.f32.mrb[0].mxu0
        %v3871 = vadd.f32 %v3769, %v3870
        %v3872 = vpop.f32.mrb[0].mxu0
        %3873 = vmatprep.mubr.f32.mxu0 0.0
        %3874 = vmatmul.mubr.f32.gmra.mrb[0].mxu0 %v3784
        %v3875 = vpop.f32.mrb[0].mxu0
        %v3876 = vadd.f32 %v3769, %v3875
        %v3877 = vpop.f32.mrb[0].mxu0
        %3878 = vmatprep.mubr.f32.mxu0 0.0
        %3879 = vmatmul.mubr.f32.gmra.mrb[0].mxu0 %v3787
        %v3880 = vpop.f32.mrb[0].mxu0
        %v3881 = vadd.f32 %v3769, %v3880
        %v3882 = vpop.f32.mrb[0].mxu0
        %3883 = vdwg.mxu0
        %3884 = vst [vmem:[%s364] sm:$0xff] %v3856
        %3885 = vst [vmem:[%s364 + $0x8] sm:$0xff] %v3861
        %3886 = vst [vmem:[%s364 + $0x10] sm:$0xff] %v3866
        %3887 = vst [vmem:[%s364 + $0x18] sm:$0xff] %v3871
        %3888 = vst [vmem:[%s364 + $0x20] sm:$0xff] %v3876
        %3889 = vst [vmem:[%s364 + $0x28] sm:$0xff] %v3881
        %s3890 = sand.u32 %s187, 1
        %s3891 = scalar_lea.sflag [#allocation4], %s3890
        %s3892 = sand.u32 %s187, 1
        %s3893 = smul.addr %s3892, 48
        %s3894 = scalar_lea.vmem [#allocation13], %s3893
        // Predicated region
        $region73: #{tpu_custom_call.1} parent=47 // pred_check
          %p3895 = pneg %p197
        $region74: #{tpu_custom_call.1} parent=47 // pred_check_branch
          %3897 = sbr.rel (%p3895) target = $region76
        $region75: #{tpu_custom_call.1} parent=47 // pred_region
          %s3898 = smul.u32 6, %s27
          %s3900 = ssub.s32 768, 768
          %3901 = vsyncadd %s3891, %s3900
          %s3902 = smul.addr %s3898, 128
          %s3903 = scalar_lea.hbm %s7, %s3902
          %s3904 = sshll.u32 %s3894, 4
          %s3905 = int_to_ptr.vmem [resolvable:$true] %s3904
          %3910 = dma.vmem_to_hbm [thread:$0]  %s3905, 768, %s3903, %s3891, 128, 128, 8
        $region76: #{tpu_custom_call.1} parent=47 // pred_fallthru
          _
      $region48: #{tpu_custom_call.1} parent=5 // pred_fallthru
        _
      %p3911 = scmp.le.s32.totalorder 2, %s22
      // Predicated region
      $region77: #{tpu_custom_call.1} parent=5 // pred_check
        %p3912 = pneg %p3911
      $region78: #{tpu_custom_call.1} parent=5 // pred_check_branch
        %3914 = sbr.rel (%p3912) target = $region80
      $region79: #{tpu_custom_call.1} parent=5 // pred_region
        %s3915 = ssub.s32 %s22, 2
        // Predicated region
        $region81: #{tpu_custom_call.1} parent=79 // pred_check
          %p3916 = pneg %p203
        $region82: #{tpu_custom_call.1} parent=79 // pred_check_branch
          %3918 = sbr.rel (%p3916) target = $region84
        $region83: #{tpu_custom_call.1} parent=79 // pred_region
          %s3919 = sand.u32 %s188, 1
          %s3920 = scalar_lea.sflag [#allocation4], %s3919
          %s3921 = sand.u32 %s188, 1
          %s3922 = smul.addr %s3921, 48
          %s3923 = scalar_lea.vmem [#allocation13], %s3922
          %3924 = dma.done %s3920, 768
        $region84: #{tpu_custom_call.1} parent=79 // pred_fallthru
          _
      $region80: #{tpu_custom_call.1} parent=5 // pred_fallthru
        _
    $region6: #{tpu_custom_call.1} parent=1 // loop_footer
      %s26 = sadd.s32 1, %s22
    $region7: #{tpu_custom_call.1} parent=1 // loop_footer_branch
      %21 = sbr.rel target = $region3
    $region8: #{tpu_custom_call.1} parent=1 // loop_exit
      _
    %3925 = vsyncpa [#allocation3], 1
    %s3926 = scalar_lea.sflag [#allocation3], 1
    %3927 = vsyncpa %s3926, 1
    %3928 = vsyncpa [#allocation6], 1
    %3929 = vsyncpa [#allocation9], 1
    %3930 = vsyncpa [#allocation12], 1
    %3931 = vsyncpa [#allocation4], 1
    %s3932 = scalar_lea.sflag [#allocation4], 1
    %3933 = vsyncpa %s3932, 1

</llo_original>
